<compile_context>
chip_gen: v5e
topology: v5e:2x2
jax: 0.10.0
libtpu: 0.0.40
codegen_flags: <defaults>
</compile_context>

<pallas_src>
import jax
import jax.numpy as jnp
from jax.experimental import pallas as pl
from jax.experimental.pallas import tpu as pltpu

LAYER_DIMS = [9, 64, 128, 256, 512, 256, 128, 64, 32, 16, 8, 4, 1]
NUM_LAYERS = len(LAYER_DIMS) - 1  # 12 Linear layers


def mlp_kernel(x_ref, *refs):
    """x_ref: (9, tile_b); refs = (w0, b0, ..., w11, b11, out_ref).

    Weights are (dout, din) (PyTorch nn.Linear layout), biases are (dout, 1).
    Activations stay feature-major with the batch on the lane axis, so the
    final (1, tile_b) store is lane-dense and needs no transpose.
    """
    out_ref = refs[-1]
    p = refs[:-1]

    h = x_ref[...].astype(jnp.float32)                      # (9, tile_b)
    for i in range(NUM_LAYERS):
        w = p[2 * i][...]                                   # (dout, din), f32 or bf16
        b = p[2 * i + 1][...]                               # (dout, 1), f32
        # MXU matmul with f32 accumulation; bias/ReLU stay on the f32 VPU path.
        h = jnp.dot(w, h.astype(w.dtype),
                    preferred_element_type=jnp.float32) + b
        if i < NUM_LAYERS - 1:
            h = jnp.maximum(h, 0.0)                         # ReLU on all but last layer
    # Sigmoid: exp goes to the EUP, reciprocal avoids a VALU divide sequence.
    out_ref[...] = pl.reciprocal(1.0 + jnp.exp(-h), approx=False).astype(out_ref.dtype)


def ann_forward(x, params, *, tile_b=None, compute_dtype=jnp.float32):
    """Full MLP in one Pallas kernel, tiled over the batch (batch on lanes)."""
    B, F = x.shape
    assert F == LAYER_DIMS[0]

    if tile_b is None:
        tile_b = B if B <= 512 else 512          # big lane-dense tiles; 1 step if small
    B_pad = ((B + tile_b - 1) // tile_b) * tile_b
    grid = (B_pad // tile_b,)
    if grid[0] > 1:
        assert tile_b % 128 == 0, "multi-step grids need a 128-multiple batch tile"

    # Present the input as (features, batch) so batch sits on the lane axis.
    xT = jnp.transpose(x)
    if B_pad != B:
        xT = jnp.pad(xT, ((0, 0), (0, B_pad - B)))

    in_specs = [pl.BlockSpec((LAYER_DIMS[0], tile_b), lambda i: (0, i))]
    flat_params = []
    for li, (w, b) in enumerate(params):
        din, dout = LAYER_DIMS[li], LAYER_DIMS[li + 1]
        assert w.shape == (dout, din) and b.shape == (dout, 1)
        # Full-array blocks with a constant index_map → weights stay resident
        # in VMEM across grid steps (no re-DMA).
        in_specs.append(pl.BlockSpec((dout, din), lambda i: (0, 0)))
        in_specs.append(pl.BlockSpec((dout, 1), lambda i: (0, 0)))
        flat_params += [w.astype(compute_dtype), b.astype(jnp.float32)]

    out_specs = pl.BlockSpec((1, tile_b), lambda i: (0, i))   # lane-dense output

    out_row = pl.pallas_call(
        mlp_kernel,
        out_shape=jax.ShapeDtypeStruct((1, B_pad), jnp.float32),
        grid_spec=pltpu.PrefetchScalarGridSpec(
            num_scalar_prefetch=0,
            grid=grid,
            in_specs=in_specs,
            out_specs=out_specs,
        ),
        compiler_params=pltpu.CompilerParams(
            dimension_semantics=("parallel",),   # shard steps across TCs (v7x megacore)
        ),
    )(xT, *flat_params)

    # Back to the PyTorch-shaped (B, 1) output; drop batch padding.
    return out_row[0, :B].reshape(B, 1)


def init_params(key):
    """Mimics torch.nn.Linear default init: U(-1/sqrt(in), 1/sqrt(in)).

    Weights are stored in PyTorch layout (out_features, in_features),
    biases as (out_features, 1).
    """
    params = []
    for li in range(NUM_LAYERS):
        din, dout = LAYER_DIMS[li], LAYER_DIMS[li + 1]
        key, kw, kb = jax.random.split(key, 3)
        bound = 1.0 / (din ** 0.5)
        w = jax.random.uniform(kw, (dout, din), jnp.float32, -bound, bound)
        b = jax.random.uniform(kb, (dout, 1), jnp.float32, -bound, bound)
        params.append((w, b))
    return params


def reference_forward(x, params):
    """Pure-JAX reference (x: (B, 9) row-major, PyTorch semantics)."""
    h = x
    for i, (w, b) in enumerate(params):
        h = h @ w.T + b.reshape(1, -1)
        if i < NUM_LAYERS - 1:
            h = jnp.maximum(h, 0.0)
    return jax.nn.sigmoid(h)


if __name__ == "__main__":
    key = jax.random.PRNGKey(0)
    key, kx1, kx2 = jax.random.split(key, 3)
    params = init_params(key)

    # Small-shape check: whole batch in a single grid step.
    x_small = jax.random.normal(kx1, (16, LAYER_DIMS[0]), jnp.float32)
    out_small = jax.block_until_ready(ann_forward(x_small, params))
    ref_small = reference_forward(x_small, params)
    assert out_small.shape == (16, 1)
    assert jnp.allclose(out_small, ref_small, atol=1e-5, rtol=1e-5), "f32 small-batch mismatch"

    # Tiled + ragged-batch check: 400 rows padded to 512, 4 lane-dense tiles of 128.
    x_big = jax.random.normal(kx2, (400, LAYER_DIMS[0]), jnp.float32)
    out_big = jax.block_until_ready(ann_forward(x_big, params, tile_b=128))
    ref_big = reference_forward(x_big, params)
    assert out_big.shape == (400, 1)
    assert jnp.allclose(out_big, ref_big, atol=1e-5, rtol=1e-5), "f32 tiled mismatch"

    # bf16 MXU inputs (f32 accumulation + f32 VPU epilogue), loose tolerance.
    out_bf16 = jax.block_until_ready(
        ann_forward(x_big, params, tile_b=128, compute_dtype=jnp.bfloat16))
    assert out_bf16.shape == (400, 1)
    assert float(jnp.max(jnp.abs(out_bf16 - ref_big))) < 0.1, "bf16 path drifted too far"

    print("KERNEL_OK")
</pallas_src>

<mosaic_0001>
module attributes {stable_mosaic.version = 11 : i64} {
  func.func @mlp_kernel(%arg0: i32, %arg1: memref<9x16xf32, #tpu.memory_space<vmem>>, %arg2: memref<64x9xf32, #tpu.memory_space<vmem>>, %arg3: memref<64x1xf32, #tpu.memory_space<vmem>>, %arg4: memref<128x64xf32, #tpu.memory_space<vmem>>, %arg5: memref<128x1xf32, #tpu.memory_space<vmem>>, %arg6: memref<256x128xf32, #tpu.memory_space<vmem>>, %arg7: memref<256x1xf32, #tpu.memory_space<vmem>>, %arg8: memref<512x256xf32, #tpu.memory_space<vmem>>, %arg9: memref<512x1xf32, #tpu.memory_space<vmem>>, %arg10: memref<256x512xf32, #tpu.memory_space<vmem>>, %arg11: memref<256x1xf32, #tpu.memory_space<vmem>>, %arg12: memref<128x256xf32, #tpu.memory_space<vmem>>, %arg13: memref<128x1xf32, #tpu.memory_space<vmem>>, %arg14: memref<64x128xf32, #tpu.memory_space<vmem>>, %arg15: memref<64x1xf32, #tpu.memory_space<vmem>>, %arg16: memref<32x64xf32, #tpu.memory_space<vmem>>, %arg17: memref<32x1xf32, #tpu.memory_space<vmem>>, %arg18: memref<16x32xf32, #tpu.memory_space<vmem>>, %arg19: memref<16x1xf32, #tpu.memory_space<vmem>>, %arg20: memref<8x16xf32, #tpu.memory_space<vmem>>, %arg21: memref<8x1xf32, #tpu.memory_space<vmem>>, %arg22: memref<4x8xf32, #tpu.memory_space<vmem>>, %arg23: memref<4x1xf32, #tpu.memory_space<vmem>>, %arg24: memref<1x4xf32, #tpu.memory_space<vmem>>, %arg25: memref<1x1xf32, #tpu.memory_space<vmem>>, %arg26: memref<1x16xf32, #tpu.memory_space<vmem>>) attributes {dimension_semantics = [#tpu.dimension_semantics<parallel>], iteration_bounds = array<i64: 1>, scalar_prefetch = 0 : i64, scratch_operands = 0 : i64, tpu.core_type = #tpu.core_type<tc>, window_params = [{transform_indices = @transform_0, window_bounds = array<i64: 9, 16>}, {pipeline_mode = #tpu.pipeline_mode<synchronous>, transform_indices = @transform_1, window_bounds = array<i64: 64, 9>}, {pipeline_mode = #tpu.pipeline_mode<synchronous>, transform_indices = @transform_2, window_bounds = array<i64: 64, 1>}, {pipeline_mode = #tpu.pipeline_mode<synchronous>, transform_indices = @transform_3, window_bounds = array<i64: 128, 64>}, {pipeline_mode = #tpu.pipeline_mode<synchronous>, transform_indices = @transform_4, window_bounds = array<i64: 128, 1>}, {pipeline_mode = #tpu.pipeline_mode<synchronous>, transform_indices = @transform_5, window_bounds = array<i64: 256, 128>}, {pipeline_mode = #tpu.pipeline_mode<synchronous>, transform_indices = @transform_6, window_bounds = array<i64: 256, 1>}, {pipeline_mode = #tpu.pipeline_mode<synchronous>, transform_indices = @transform_7, window_bounds = array<i64: 512, 256>}, {pipeline_mode = #tpu.pipeline_mode<synchronous>, transform_indices = @transform_8, window_bounds = array<i64: 512, 1>}, {pipeline_mode = #tpu.pipeline_mode<synchronous>, transform_indices = @transform_9, window_bounds = array<i64: 256, 512>}, {pipeline_mode = #tpu.pipeline_mode<synchronous>, transform_indices = @transform_10, window_bounds = array<i64: 256, 1>}, {pipeline_mode = #tpu.pipeline_mode<synchronous>, transform_indices = @transform_11, window_bounds = array<i64: 128, 256>}, {pipeline_mode = #tpu.pipeline_mode<synchronous>, transform_indices = @transform_12, window_bounds = array<i64: 128, 1>}, {pipeline_mode = #tpu.pipeline_mode<synchronous>, transform_indices = @transform_13, window_bounds = array<i64: 64, 128>}, {pipeline_mode = #tpu.pipeline_mode<synchronous>, transform_indices = @transform_14, window_bounds = array<i64: 64, 1>}, {pipeline_mode = #tpu.pipeline_mode<synchronous>, transform_indices = @transform_15, window_bounds = array<i64: 32, 64>}, {pipeline_mode = #tpu.pipeline_mode<synchronous>, transform_indices = @transform_16, window_bounds = array<i64: 32, 1>}, {pipeline_mode = #tpu.pipeline_mode<synchronous>, transform_indices = @transform_17, window_bounds = array<i64: 16, 32>}, {pipeline_mode = #tpu.pipeline_mode<synchronous>, transform_indices = @transform_18, window_bounds = array<i64: 16, 1>}, {pipeline_mode = #tpu.pipeline_mode<synchronous>, transform_indices = @transform_19, window_bounds = array<i64: 8, 16>}, {pipeline_mode = #tpu.pipeline_mode<synchronous>, transform_indices = @transform_20, window_bounds = array<i64: 8, 1>}, {pipeline_mode = #tpu.pipeline_mode<synchronous>, transform_indices = @transform_21, window_bounds = array<i64: 4, 8>}, {pipeline_mode = #tpu.pipeline_mode<synchronous>, transform_indices = @transform_22, window_bounds = array<i64: 4, 1>}, {pipeline_mode = #tpu.pipeline_mode<synchronous>, transform_indices = @transform_23, window_bounds = array<i64: 1, 4>}, {pipeline_mode = #tpu.pipeline_mode<synchronous>, transform_indices = @transform_24, window_bounds = array<i64: 1, 1>}, {transform_indices = @transform_25, window_bounds = array<i64: 1, 16>}]} {
    %c0 = arith.constant 0 : index
    %c0_0 = arith.constant 0 : index
    %0 = vector.load %arg1[%c0, %c0_0] : memref<9x16xf32, #tpu.memory_space<vmem>>, vector<9x16xf32>
    %c0_1 = arith.constant 0 : index
    %c0_2 = arith.constant 0 : index
    %1 = vector.load %arg2[%c0_1, %c0_2] : memref<64x9xf32, #tpu.memory_space<vmem>>, vector<64x9xf32>
    %c0_3 = arith.constant 0 : index
    %c0_4 = arith.constant 0 : index
    %2 = vector.load %arg3[%c0_3, %c0_4] : memref<64x1xf32, #tpu.memory_space<vmem>>, vector<64x1xf32>
    %cst = arith.constant dense<0.000000e+00> : vector<64x16xf32>
    %3 = tpu.matmul %1, %0, %cst {dimension_numbers = #tpu.dot_dimension_numbers<[1], [0], [0], [1], [0, 0, 1, 1], [], []>} : vector<64x9xf32>, vector<9x16xf32>, vector<64x16xf32> -> vector<64x16xf32>
    %4 = vector.broadcast %2 : vector<64x1xf32> to vector<64x16xf32>
    %5 = arith.addf %3, %4 : vector<64x16xf32>
    %cst_5 = arith.constant 0.000000e+00 : f32
    %6 = vector.broadcast %cst_5 : f32 to vector<64x16xf32>
    %7 = arith.maximumf %5, %6 : vector<64x16xf32>
    %c0_6 = arith.constant 0 : index
    %c0_7 = arith.constant 0 : index
    %8 = vector.load %arg4[%c0_6, %c0_7] : memref<128x64xf32, #tpu.memory_space<vmem>>, vector<128x64xf32>
    %c0_8 = arith.constant 0 : index
    %c0_9 = arith.constant 0 : index
    %9 = vector.load %arg5[%c0_8, %c0_9] : memref<128x1xf32, #tpu.memory_space<vmem>>, vector<128x1xf32>
    %cst_10 = arith.constant dense<0.000000e+00> : vector<128x16xf32>
    %10 = tpu.matmul %8, %7, %cst_10 {dimension_numbers = #tpu.dot_dimension_numbers<[1], [0], [0], [1], [0, 0, 1, 1], [], []>} : vector<128x64xf32>, vector<64x16xf32>, vector<128x16xf32> -> vector<128x16xf32>
    %11 = vector.broadcast %9 : vector<128x1xf32> to vector<128x16xf32>
    %12 = arith.addf %10, %11 : vector<128x16xf32>
    %cst_11 = arith.constant 0.000000e+00 : f32
    %13 = vector.broadcast %cst_11 : f32 to vector<128x16xf32>
    %14 = arith.maximumf %12, %13 : vector<128x16xf32>
    %c0_12 = arith.constant 0 : index
    %c0_13 = arith.constant 0 : index
    %15 = vector.load %arg6[%c0_12, %c0_13] : memref<256x128xf32, #tpu.memory_space<vmem>>, vector<256x128xf32>
    %c0_14 = arith.constant 0 : index
    %c0_15 = arith.constant 0 : index
    %16 = vector.load %arg7[%c0_14, %c0_15] : memref<256x1xf32, #tpu.memory_space<vmem>>, vector<256x1xf32>
    %cst_16 = arith.constant dense<0.000000e+00> : vector<256x16xf32>
    %17 = tpu.matmul %15, %14, %cst_16 {dimension_numbers = #tpu.dot_dimension_numbers<[1], [0], [0], [1], [0, 0, 1, 1], [], []>} : vector<256x128xf32>, vector<128x16xf32>, vector<256x16xf32> -> vector<256x16xf32>
    %18 = vector.broadcast %16 : vector<256x1xf32> to vector<256x16xf32>
    %19 = arith.addf %17, %18 : vector<256x16xf32>
    %cst_17 = arith.constant 0.000000e+00 : f32
    %20 = vector.broadcast %cst_17 : f32 to vector<256x16xf32>
    %21 = arith.maximumf %19, %20 : vector<256x16xf32>
    %c0_18 = arith.constant 0 : index
    %c0_19 = arith.constant 0 : index
    %22 = vector.load %arg8[%c0_18, %c0_19] : memref<512x256xf32, #tpu.memory_space<vmem>>, vector<512x256xf32>
    %c0_20 = arith.constant 0 : index
    %c0_21 = arith.constant 0 : index
    %23 = vector.load %arg9[%c0_20, %c0_21] : memref<512x1xf32, #tpu.memory_space<vmem>>, vector<512x1xf32>
    %cst_22 = arith.constant dense<0.000000e+00> : vector<512x16xf32>
    %24 = tpu.matmul %22, %21, %cst_22 {dimension_numbers = #tpu.dot_dimension_numbers<[1], [0], [0], [1], [0, 0, 1, 1], [], []>} : vector<512x256xf32>, vector<256x16xf32>, vector<512x16xf32> -> vector<512x16xf32>
    %25 = vector.broadcast %23 : vector<512x1xf32> to vector<512x16xf32>
    %26 = arith.addf %24, %25 : vector<512x16xf32>
    %cst_23 = arith.constant 0.000000e+00 : f32
    %27 = vector.broadcast %cst_23 : f32 to vector<512x16xf32>
    %28 = arith.maximumf %26, %27 : vector<512x16xf32>
    %c0_24 = arith.constant 0 : index
    %c0_25 = arith.constant 0 : index
    %29 = vector.load %arg10[%c0_24, %c0_25] : memref<256x512xf32, #tpu.memory_space<vmem>>, vector<256x512xf32>
    %c0_26 = arith.constant 0 : index
    %c0_27 = arith.constant 0 : index
    %30 = vector.load %arg11[%c0_26, %c0_27] : memref<256x1xf32, #tpu.memory_space<vmem>>, vector<256x1xf32>
    %cst_28 = arith.constant dense<0.000000e+00> : vector<256x16xf32>
    %31 = tpu.matmul %29, %28, %cst_28 {dimension_numbers = #tpu.dot_dimension_numbers<[1], [0], [0], [1], [0, 0, 1, 1], [], []>} : vector<256x512xf32>, vector<512x16xf32>, vector<256x16xf32> -> vector<256x16xf32>
    %32 = vector.broadcast %30 : vector<256x1xf32> to vector<256x16xf32>
    %33 = arith.addf %31, %32 : vector<256x16xf32>
    %cst_29 = arith.constant 0.000000e+00 : f32
    %34 = vector.broadcast %cst_29 : f32 to vector<256x16xf32>
    %35 = arith.maximumf %33, %34 : vector<256x16xf32>
    %c0_30 = arith.constant 0 : index
    %c0_31 = arith.constant 0 : index
    %36 = vector.load %arg12[%c0_30, %c0_31] : memref<128x256xf32, #tpu.memory_space<vmem>>, vector<128x256xf32>
    %c0_32 = arith.constant 0 : index
    %c0_33 = arith.constant 0 : index
    %37 = vector.load %arg13[%c0_32, %c0_33] : memref<128x1xf32, #tpu.memory_space<vmem>>, vector<128x1xf32>
    %cst_34 = arith.constant dense<0.000000e+00> : vector<128x16xf32>
    %38 = tpu.matmul %36, %35, %cst_34 {dimension_numbers = #tpu.dot_dimension_numbers<[1], [0], [0], [1], [0, 0, 1, 1], [], []>} : vector<128x256xf32>, vector<256x16xf32>, vector<128x16xf32> -> vector<128x16xf32>
    %39 = vector.broadcast %37 : vector<128x1xf32> to vector<128x16xf32>
    %40 = arith.addf %38, %39 : vector<128x16xf32>
    %cst_35 = arith.constant 0.000000e+00 : f32
    %41 = vector.broadcast %cst_35 : f32 to vector<128x16xf32>
    %42 = arith.maximumf %40, %41 : vector<128x16xf32>
    %c0_36 = arith.constant 0 : index
    %c0_37 = arith.constant 0 : index
    %43 = vector.load %arg14[%c0_36, %c0_37] : memref<64x128xf32, #tpu.memory_space<vmem>>, vector<64x128xf32>
    %c0_38 = arith.constant 0 : index
    %c0_39 = arith.constant 0 : index
    %44 = vector.load %arg15[%c0_38, %c0_39] : memref<64x1xf32, #tpu.memory_space<vmem>>, vector<64x1xf32>
    %cst_40 = arith.constant dense<0.000000e+00> : vector<64x16xf32>
    %45 = tpu.matmul %43, %42, %cst_40 {dimension_numbers = #tpu.dot_dimension_numbers<[1], [0], [0], [1], [0, 0, 1, 1], [], []>} : vector<64x128xf32>, vector<128x16xf32>, vector<64x16xf32> -> vector<64x16xf32>
    %46 = vector.broadcast %44 : vector<64x1xf32> to vector<64x16xf32>
    %47 = arith.addf %45, %46 : vector<64x16xf32>
    %cst_41 = arith.constant 0.000000e+00 : f32
    %48 = vector.broadcast %cst_41 : f32 to vector<64x16xf32>
    %49 = arith.maximumf %47, %48 : vector<64x16xf32>
    %c0_42 = arith.constant 0 : index
    %c0_43 = arith.constant 0 : index
    %50 = vector.load %arg16[%c0_42, %c0_43] : memref<32x64xf32, #tpu.memory_space<vmem>>, vector<32x64xf32>
    %c0_44 = arith.constant 0 : index
    %c0_45 = arith.constant 0 : index
    %51 = vector.load %arg17[%c0_44, %c0_45] : memref<32x1xf32, #tpu.memory_space<vmem>>, vector<32x1xf32>
    %cst_46 = arith.constant dense<0.000000e+00> : vector<32x16xf32>
    %52 = tpu.matmul %50, %49, %cst_46 {dimension_numbers = #tpu.dot_dimension_numbers<[1], [0], [0], [1], [0, 0, 1, 1], [], []>} : vector<32x64xf32>, vector<64x16xf32>, vector<32x16xf32> -> vector<32x16xf32>
    %53 = vector.broadcast %51 : vector<32x1xf32> to vector<32x16xf32>
    %54 = arith.addf %52, %53 : vector<32x16xf32>
    %cst_47 = arith.constant 0.000000e+00 : f32
    %55 = vector.broadcast %cst_47 : f32 to vector<32x16xf32>
    %56 = arith.maximumf %54, %55 : vector<32x16xf32>
    %c0_48 = arith.constant 0 : index
    %c0_49 = arith.constant 0 : index
    %57 = vector.load %arg18[%c0_48, %c0_49] : memref<16x32xf32, #tpu.memory_space<vmem>>, vector<16x32xf32>
    %c0_50 = arith.constant 0 : index
    %c0_51 = arith.constant 0 : index
    %58 = vector.load %arg19[%c0_50, %c0_51] : memref<16x1xf32, #tpu.memory_space<vmem>>, vector<16x1xf32>
    %cst_52 = arith.constant dense<0.000000e+00> : vector<16x16xf32>
    %59 = tpu.matmul %57, %56, %cst_52 {dimension_numbers = #tpu.dot_dimension_numbers<[1], [0], [0], [1], [0, 0, 1, 1], [], []>} : vector<16x32xf32>, vector<32x16xf32>, vector<16x16xf32> -> vector<16x16xf32>
    %60 = vector.broadcast %58 : vector<16x1xf32> to vector<16x16xf32>
    %61 = arith.addf %59, %60 : vector<16x16xf32>
    %cst_53 = arith.constant 0.000000e+00 : f32
    %62 = vector.broadcast %cst_53 : f32 to vector<16x16xf32>
    %63 = arith.maximumf %61, %62 : vector<16x16xf32>
    %c0_54 = arith.constant 0 : index
    %c0_55 = arith.constant 0 : index
    %64 = vector.load %arg20[%c0_54, %c0_55] : memref<8x16xf32, #tpu.memory_space<vmem>>, vector<8x16xf32>
    %c0_56 = arith.constant 0 : index
    %c0_57 = arith.constant 0 : index
    %65 = vector.load %arg21[%c0_56, %c0_57] : memref<8x1xf32, #tpu.memory_space<vmem>>, vector<8x1xf32>
    %cst_58 = arith.constant dense<0.000000e+00> : vector<8x16xf32>
    %66 = tpu.matmul %64, %63, %cst_58 {dimension_numbers = #tpu.dot_dimension_numbers<[1], [0], [0], [1], [0, 0, 1, 1], [], []>} : vector<8x16xf32>, vector<16x16xf32>, vector<8x16xf32> -> vector<8x16xf32>
    %67 = vector.broadcast %65 : vector<8x1xf32> to vector<8x16xf32>
    %68 = arith.addf %66, %67 : vector<8x16xf32>
    %cst_59 = arith.constant 0.000000e+00 : f32
    %69 = vector.broadcast %cst_59 : f32 to vector<8x16xf32>
    %70 = arith.maximumf %68, %69 : vector<8x16xf32>
    %c0_60 = arith.constant 0 : index
    %c0_61 = arith.constant 0 : index
    %71 = vector.load %arg22[%c0_60, %c0_61] : memref<4x8xf32, #tpu.memory_space<vmem>>, vector<4x8xf32>
    %c0_62 = arith.constant 0 : index
    %c0_63 = arith.constant 0 : index
    %72 = vector.load %arg23[%c0_62, %c0_63] : memref<4x1xf32, #tpu.memory_space<vmem>>, vector<4x1xf32>
    %cst_64 = arith.constant dense<0.000000e+00> : vector<4x16xf32>
    %73 = tpu.matmul %71, %70, %cst_64 {dimension_numbers = #tpu.dot_dimension_numbers<[1], [0], [0], [1], [0, 0, 1, 1], [], []>} : vector<4x8xf32>, vector<8x16xf32>, vector<4x16xf32> -> vector<4x16xf32>
    %74 = vector.broadcast %72 : vector<4x1xf32> to vector<4x16xf32>
    %75 = arith.addf %73, %74 : vector<4x16xf32>
    %cst_65 = arith.constant 0.000000e+00 : f32
    %76 = vector.broadcast %cst_65 : f32 to vector<4x16xf32>
    %77 = arith.maximumf %75, %76 : vector<4x16xf32>
    %c0_66 = arith.constant 0 : index
    %c0_67 = arith.constant 0 : index
    %78 = vector.load %arg24[%c0_66, %c0_67] : memref<1x4xf32, #tpu.memory_space<vmem>>, vector<1x4xf32>
    %c0_68 = arith.constant 0 : index
    %c0_69 = arith.constant 0 : index
    %79 = vector.load %arg25[%c0_68, %c0_69] : memref<1x1xf32, #tpu.memory_space<vmem>>, vector<1x1xf32>
    %cst_70 = arith.constant dense<0.000000e+00> : vector<1x16xf32>
    %80 = tpu.matmul %78, %77, %cst_70 {dimension_numbers = #tpu.dot_dimension_numbers<[1], [0], [0], [1], [0, 0, 1, 1], [], []>} : vector<1x4xf32>, vector<4x16xf32>, vector<1x16xf32> -> vector<1x16xf32>
    %81 = vector.broadcast %79 : vector<1x1xf32> to vector<1x16xf32>
    %82 = arith.addf %80, %81 : vector<1x16xf32>
    %cst_71 = arith.constant 0.000000e+00 : f32
    %83 = vector.broadcast %cst_71 : f32 to vector<1x16xf32>
    %84 = arith.subf %83, %82 : vector<1x16xf32>
    %85 = math.exp %84 : vector<1x16xf32>
    %cst_72 = arith.constant 1.000000e+00 : f32
    %86 = vector.broadcast %cst_72 : f32 to vector<1x16xf32>
    %87 = arith.addf %86, %85 : vector<1x16xf32>
    %88 = tpu.reciprocal %87 : vector<1x16xf32> -> vector<1x16xf32>
    %c0_73 = arith.constant 0 : index
    %c0_74 = arith.constant 0 : index
    %89 = vector.load %arg26[%c0_73, %c0_74] : memref<1x16xf32, #tpu.memory_space<vmem>>, vector<1x16xf32>
    tpu.vector_store %arg26[%c0_73, %c0_74], %88 {strides = array<i32>} : memref<1x16xf32, #tpu.memory_space<vmem>>, vector<1x16xf32>,
    return
  }
  func.func @transform_0(%arg0: i32) -> (i32, i32) {
    %c0_i32 = arith.constant 0 : i32
    %c0_i32_0 = arith.constant 0 : i32
    return %c0_i32, %arg0 : i32, i32
  }
  func.func @transform_1(%arg0: i32) -> (i32, i32) {
    %c0_i32 = arith.constant 0 : i32
    %c0_i32_0 = arith.constant 0 : i32
    %c0_i32_1 = arith.constant 0 : i32
    return %c0_i32, %c0_i32_0 : i32, i32
  }
  func.func @transform_2(%arg0: i32) -> (i32, i32) {
    %c0_i32 = arith.constant 0 : i32
    %c0_i32_0 = arith.constant 0 : i32
    %c0_i32_1 = arith.constant 0 : i32
    return %c0_i32, %c0_i32_0 : i32, i32
  }
  func.func @transform_3(%arg0: i32) -> (i32, i32) {
    %c0_i32 = arith.constant 0 : i32
    %c0_i32_0 = arith.constant 0 : i32
    %c0_i32_1 = arith.constant 0 : i32
    return %c0_i32, %c0_i32_0 : i32, i32
  }
  func.func @transform_4(%arg0: i32) -> (i32, i32) {
    %c0_i32 = arith.constant 0 : i32
    %c0_i32_0 = arith.constant 0 : i32
    %c0_i32_1 = arith.constant 0 : i32
    return %c0_i32, %c0_i32_0 : i32, i32
  }
  func.func @transform_5(%arg0: i32) -> (i32, i32) {
    %c0_i32 = arith.constant 0 : i32
    %c0_i32_0 = arith.constant 0 : i32
    %c0_i32_1 = arith.constant 0 : i32
    return %c0_i32, %c0_i32_0 : i32, i32
  }
  func.func @transform_6(%arg0: i32) -> (i32, i32) {
    %c0_i32 = arith.constant 0 : i32
    %c0_i32_0 = arith.constant 0 : i32
    %c0_i32_1 = arith.constant 0 : i32
    return %c0_i32, %c0_i32_0 : i32, i32
  }
  func.func @transform_7(%arg0: i32) -> (i32, i32) {
    %c0_i32 = arith.constant 0 : i32
    %c0_i32_0 = arith.constant 0 : i32
    %c0_i32_1 = arith.constant 0 : i32
    return %c0_i32, %c0_i32_0 : i32, i32
  }
  func.func @transform_8(%arg0: i32) -> (i32, i32) {
    %c0_i32 = arith.constant 0 : i32
    %c0_i32_0 = arith.constant 0 : i32
    %c0_i32_1 = arith.constant 0 : i32
    return %c0_i32, %c0_i32_0 : i32, i32
  }
  func.func @transform_9(%arg0: i32) -> (i32, i32) {
    %c0_i32 = arith.constant 0 : i32
    %c0_i32_0 = arith.constant 0 : i32
    %c0_i32_1 = arith.constant 0 : i32
    return %c0_i32, %c0_i32_0 : i32, i32
  }
  func.func @transform_10(%arg0: i32) -> (i32, i32) {
    %c0_i32 = arith.constant 0 : i32
    %c0_i32_0 = arith.constant 0 : i32
    %c0_i32_1 = arith.constant 0 : i32
    return %c0_i32, %c0_i32_0 : i32, i32
  }
  func.func @transform_11(%arg0: i32) -> (i32, i32) {
    %c0_i32 = arith.constant 0 : i32
    %c0_i32_0 = arith.constant 0 : i32
    %c0_i32_1 = arith.constant 0 : i32
    return %c0_i32, %c0_i32_0 : i32, i32
  }
  func.func @transform_12(%arg0: i32) -> (i32, i32) {
    %c0_i32 = arith.constant 0 : i32
    %c0_i32_0 = arith.constant 0 : i32
    %c0_i32_1 = arith.constant 0 : i32
    return %c0_i32, %c0_i32_0 : i32, i32
  }
  func.func @transform_13(%arg0: i32) -> (i32, i32) {
    %c0_i32 = arith.constant 0 : i32
    %c0_i32_0 = arith.constant 0 : i32
    %c0_i32_1 = arith.constant 0 : i32
    return %c0_i32, %c0_i32_0 : i32, i32
  }
  func.func @transform_14(%arg0: i32) -> (i32, i32) {
    %c0_i32 = arith.constant 0 : i32
    %c0_i32_0 = arith.constant 0 : i32
    %c0_i32_1 = arith.constant 0 : i32
    return %c0_i32, %c0_i32_0 : i32, i32
  }
  func.func @transform_15(%arg0: i32) -> (i32, i32) {
    %c0_i32 = arith.constant 0 : i32
    %c0_i32_0 = arith.constant 0 : i32
    %c0_i32_1 = arith.constant 0 : i32
    return %c0_i32, %c0_i32_0 : i32, i32
  }
  func.func @transform_16(%arg0: i32) -> (i32, i32) {
    %c0_i32 = arith.constant 0 : i32
    %c0_i32_0 = arith.constant 0 : i32
    %c0_i32_1 = arith.constant 0 : i32
    return %c0_i32, %c0_i32_0 : i32, i32
  }
  func.func @transform_17(%arg0: i32) -> (i32, i32) {
    %c0_i32 = arith.constant 0 : i32
    %c0_i32_0 = arith.constant 0 : i32
    %c0_i32_1 = arith.constant 0 : i32
    return %c0_i32, %c0_i32_0 : i32, i32
  }
  func.func @transform_18(%arg0: i32) -> (i32, i32) {
    %c0_i32 = arith.constant 0 : i32
    %c0_i32_0 = arith.constant 0 : i32
    %c0_i32_1 = arith.constant 0 : i32
    return %c0_i32, %c0_i32_0 : i32, i32
  }
  func.func @transform_19(%arg0: i32) -> (i32, i32) {
    %c0_i32 = arith.constant 0 : i32
    %c0_i32_0 = arith.constant 0 : i32
    %c0_i32_1 = arith.constant 0 : i32
    return %c0_i32, %c0_i32_0 : i32, i32
  }
  func.func @transform_20(%arg0: i32) -> (i32, i32) {
    %c0_i32 = arith.constant 0 : i32
    %c0_i32_0 = arith.constant 0 : i32
    %c0_i32_1 = arith.constant 0 : i32
    return %c0_i32, %c0_i32_0 : i32, i32
  }
  func.func @transform_21(%arg0: i32) -> (i32, i32) {
    %c0_i32 = arith.constant 0 : i32
    %c0_i32_0 = arith.constant 0 : i32
    %c0_i32_1 = arith.constant 0 : i32
    return %c0_i32, %c0_i32_0 : i32, i32
  }
  func.func @transform_22(%arg0: i32) -> (i32, i32) {
    %c0_i32 = arith.constant 0 : i32
    %c0_i32_0 = arith.constant 0 : i32
    %c0_i32_1 = arith.constant 0 : i32
    return %c0_i32, %c0_i32_0 : i32, i32
  }
  func.func @transform_23(%arg0: i32) -> (i32, i32) {
    %c0_i32 = arith.constant 0 : i32
    %c0_i32_0 = arith.constant 0 : i32
    %c0_i32_1 = arith.constant 0 : i32
    return %c0_i32, %c0_i32_0 : i32, i32
  }
  func.func @transform_24(%arg0: i32) -> (i32, i32) {
    %c0_i32 = arith.constant 0 : i32
    %c0_i32_0 = arith.constant 0 : i32
    %c0_i32_1 = arith.constant 0 : i32
    return %c0_i32, %c0_i32_0 : i32, i32
  }
  func.func @transform_25(%arg0: i32) -> (i32, i32) {
    %c0_i32 = arith.constant 0 : i32
    %c0_i32_0 = arith.constant 0 : i32
    return %c0_i32, %arg0 : i32, i32
  }
}

</mosaic_0001>

<llo_original>
// kernel: tpu_custom_call.1
$region0: #{tpu_custom_call.1}
  #allocation0 [shape = 'u32[]', space=smem, size = 0x4, offset = 0x4, fixed_abs, tag = 'smem constant byte address 0x4 - core index']
  #allocation1 [shape = 'u32[72,128]{1,0:T(1,128)}', space=vmem, size = 0x9000, scoped, tag = 'internal scratch']
  #allocation2 [shape = 'f32[1,1]{1,0:T(1,128)S(1)}', space=vmem, size = 0x200, scoped, tag = 'scoped memory for tpu_custom_call.1']
  %s0 = inlined_call_operand.vmem [shape: f32[9,16], index: 0, kind: input, shape index: {}]
  %s1 = inlined_call_operand.vmem [shape: f32[64,9], index: 1, kind: input, shape index: {}]
  %s2 = inlined_call_operand.vmem [shape: f32[64,1], index: 2, kind: input, shape index: {}]
  %s3 = inlined_call_operand.vmem [shape: f32[128,64], index: 3, kind: input, shape index: {}]
  %s4 = inlined_call_operand.vmem [shape: f32[128,1], index: 4, kind: input, shape index: {}]
  %s5 = inlined_call_operand.vmem [shape: f32[256,128], index: 5, kind: input, shape index: {}]
  %s6 = inlined_call_operand.vmem [shape: f32[256,1], index: 6, kind: input, shape index: {}]
  %s7 = inlined_call_operand.hbm [shape: f32[512,256], index: 7, kind: input, shape index: {}]
  %s8 = inlined_call_operand.vmem [shape: f32[512,1], index: 8, kind: input, shape index: {}]
  %s9 = inlined_call_operand.hbm [shape: f32[256,512], index: 9, kind: input, shape index: {}]
  %s10 = inlined_call_operand.vmem [shape: f32[256,1], index: 10, kind: input, shape index: {}]
  %s11 = inlined_call_operand.vmem [shape: f32[128,256], index: 11, kind: input, shape index: {}]
  %s12 = inlined_call_operand.vmem [shape: f32[128,1], index: 12, kind: input, shape index: {}]
  %s13 = inlined_call_operand.vmem [shape: f32[64,128], index: 13, kind: input, shape index: {}]
  %s14 = inlined_call_operand.vmem [shape: f32[64,1], index: 14, kind: input, shape index: {}]
  %s15 = inlined_call_operand.vmem [shape: f32[32,64], index: 15, kind: input, shape index: {}]
  %s16 = inlined_call_operand.vmem [shape: f32[32,1], index: 16, kind: input, shape index: {}]
  %s17 = inlined_call_operand.vmem [shape: f32[16,32], index: 17, kind: input, shape index: {}]
  %s18 = inlined_call_operand.vmem [shape: f32[16,1], index: 18, kind: input, shape index: {}]
  %s19 = inlined_call_operand.vmem [shape: f32[8,16], index: 19, kind: input, shape index: {}]
  %s20 = inlined_call_operand.vmem [shape: f32[8,1], index: 20, kind: input, shape index: {}]
  %s21 = inlined_call_operand.vmem [shape: f32[4,8], index: 21, kind: input, shape index: {}]
  %s22 = inlined_call_operand.vmem [shape: f32[4,1], index: 22, kind: input, shape index: {}]
  %s23 = inlined_call_operand.vmem [shape: f32[1,4], index: 23, kind: input, shape index: {}]
  %s24 = inlined_call_operand.<no memory space> [shape: f32[1,1], index: 24, kind: input, shape index: {}]
  %s25 = inlined_call_operand.hbm [shape: f32[1,16], index: 25, kind: output, shape index: {}]
  %s26 = sld [smem:[#allocation0]]
  $region118: #{tpu_custom_call.1} parent=0
    _
  %s28 = ssub.s32 1, %s26
  %s29 = scalar_select 0, %s28, %s26
  %v30 = vstv %s24
  %31 = vst [vmem:[#allocation2] sm:$0x1] %v30
  $region1: #{tpu_custom_call.1} parent=0
    #allocation3 [shape = 'u8[524288]{0}', space=vmem, size = 0x80000, scoped, tag = 'input window, operand 7, single buffered']
    #allocation4 [shape = 's32[1]{0}', space=sflag, size = 0x4, scoped, tag = 'scoped memory for tpu_custom_call.1']
    #allocation5 [shape = 's32[1]{0}', space=sflag, size = 0x4, scoped, tag = 'scoped memory for tpu_custom_call.1']
    #allocation6 [shape = 'u8[524288]{0}', space=vmem, size = 0x80000, scoped, tag = 'input window, operand 9, single buffered']
    #allocation7 [shape = 's32[1]{0}', space=sflag, size = 0x4, scoped, tag = 'scoped memory for tpu_custom_call.1']
    #allocation8 [shape = 'u8[512]{0}', space=vmem, size = 0x400, scoped, tag = 'output window, operand 0, single buffered']
    %32 = vsyncpa [#allocation4], 0
    %33 = vsyncpa [#allocation7], 0
    %34 = vsyncpa [#allocation5], 0
    // Predicated region
    $region2: #{tpu_custom_call.1} parent=1 // pred_check
      _
    $region3: #{tpu_custom_call.1} parent=1 // pred_check_branch
      %36 = sbr.rel (0) target = $region5
    $region4: #{tpu_custom_call.1} parent=1 // pred_region
      _
    $region5: #{tpu_custom_call.1} parent=1 // pred_fallthru
      _
    // Predicated region
    $region6: #{tpu_custom_call.1} parent=1 // pred_check
      _
    $region7: #{tpu_custom_call.1} parent=1 // pred_check_branch
      %38 = sbr.rel (0) target = $region9
    $region8: #{tpu_custom_call.1} parent=1 // pred_region
      _
    $region9: #{tpu_custom_call.1} parent=1 // pred_fallthru
      _
    // Predicated region
    $region10: #{tpu_custom_call.1} parent=1 // pred_check
      _
    $region11: #{tpu_custom_call.1} parent=1 // pred_check_branch
      %40 = sbr.rel (0) target = $region13
    $region12: #{tpu_custom_call.1} parent=1 // pred_region
      _
    $region13: #{tpu_custom_call.1} parent=1 // pred_fallthru
      _
    // Predicated region
    $region14: #{tpu_custom_call.1} parent=1 // pred_check
      _
    $region15: #{tpu_custom_call.1} parent=1 // pred_check_branch
      %42 = sbr.rel (0) target = $region17
    $region16: #{tpu_custom_call.1} parent=1 // pred_region
      _
    $region17: #{tpu_custom_call.1} parent=1 // pred_fallthru
      _
    // Predicated region
    $region18: #{tpu_custom_call.1} parent=1 // pred_check
      _
    $region19: #{tpu_custom_call.1} parent=1 // pred_check_branch
      %44 = sbr.rel (0) target = $region21
    $region20: #{tpu_custom_call.1} parent=1 // pred_region
      _
    $region21: #{tpu_custom_call.1} parent=1 // pred_fallthru
      _
    // Predicated region
    $region22: #{tpu_custom_call.1} parent=1 // pred_check
      _
    $region23: #{tpu_custom_call.1} parent=1 // pred_check_branch
      %46 = sbr.rel (0) target = $region25
    $region24: #{tpu_custom_call.1} parent=1 // pred_region
      _
    $region25: #{tpu_custom_call.1} parent=1 // pred_fallthru
      _
    // Predicated region
    $region26: #{tpu_custom_call.1} parent=1 // pred_check
      _
    $region27: #{tpu_custom_call.1} parent=1 // pred_check_branch
      %48 = sbr.rel (0) target = $region29
    $region28: #{tpu_custom_call.1} parent=1 // pred_region
      _
    $region29: #{tpu_custom_call.1} parent=1 // pred_fallthru
      _
    // Predicated region
    $region30: #{tpu_custom_call.1} parent=1 // pred_check
      _
    $region31: #{tpu_custom_call.1} parent=1 // pred_check_branch
      %50 = sbr.rel (0) target = $region33
    $region32: #{tpu_custom_call.1} parent=1 // pred_region
      %52 = vsyncadd [#allocation4], 0
      %s53 = sshll.u32 %s7, 4
      %s54 = int_to_ptr.hbm [resolvable:$true] %s53
      %s55 = sshll.u32 [#allocation3], 4
      %s56 = int_to_ptr.vmem [resolvable:$true] %s55
      %61 = dma.hbm_to_vmem [thread:$0]  %s54, 16384, %s56, [#allocation4], 256, 256, 16
    $region33: #{tpu_custom_call.1} parent=1 // pred_fallthru
      _
    // Predicated region
    $region34: #{tpu_custom_call.1} parent=1 // pred_check
      _
    $region35: #{tpu_custom_call.1} parent=1 // pred_check_branch
      %63 = sbr.rel (0) target = $region37
    $region36: #{tpu_custom_call.1} parent=1 // pred_region
      _
    $region37: #{tpu_custom_call.1} parent=1 // pred_fallthru
      _
    // Predicated region
    $region38: #{tpu_custom_call.1} parent=1 // pred_check
      _
    $region39: #{tpu_custom_call.1} parent=1 // pred_check_branch
      %65 = sbr.rel (0) target = $region41
    $region40: #{tpu_custom_call.1} parent=1 // pred_region
      %67 = vsyncadd [#allocation7], 0
      %s68 = sshll.u32 %s9, 4
      %s69 = int_to_ptr.hbm [resolvable:$true] %s68
      %s70 = sshll.u32 [#allocation6], 4
      %s71 = int_to_ptr.vmem [resolvable:$true] %s70
      %76 = dma.hbm_to_vmem [thread:$0]  %s69, 16384, %s71, [#allocation7], 512, 512, 32
    $region41: #{tpu_custom_call.1} parent=1 // pred_fallthru
      _
    // Predicated region
    $region42: #{tpu_custom_call.1} parent=1 // pred_check
      _
    $region43: #{tpu_custom_call.1} parent=1 // pred_check_branch
      %78 = sbr.rel (0) target = $region45
    $region44: #{tpu_custom_call.1} parent=1 // pred_region
      _
    $region45: #{tpu_custom_call.1} parent=1 // pred_fallthru
      _
    // Predicated region
    $region46: #{tpu_custom_call.1} parent=1 // pred_check
      _
    $region47: #{tpu_custom_call.1} parent=1 // pred_check_branch
      %80 = sbr.rel (0) target = $region49
    $region48: #{tpu_custom_call.1} parent=1 // pred_region
      _
    $region49: #{tpu_custom_call.1} parent=1 // pred_fallthru
      _
    // Predicated region
    $region50: #{tpu_custom_call.1} parent=1 // pred_check
      _
    $region51: #{tpu_custom_call.1} parent=1 // pred_check_branch
      %82 = sbr.rel (0) target = $region53
    $region52: #{tpu_custom_call.1} parent=1 // pred_region
      _
    $region53: #{tpu_custom_call.1} parent=1 // pred_fallthru
      _
    // Predicated region
    $region54: #{tpu_custom_call.1} parent=1 // pred_check
      _
    $region55: #{tpu_custom_call.1} parent=1 // pred_check_branch
      %84 = sbr.rel (0) target = $region57
    $region56: #{tpu_custom_call.1} parent=1 // pred_region
      _
    $region57: #{tpu_custom_call.1} parent=1 // pred_fallthru
      _
    // Predicated region
    $region58: #{tpu_custom_call.1} parent=1 // pred_check
      _
    $region59: #{tpu_custom_call.1} parent=1 // pred_check_branch
      %86 = sbr.rel (0) target = $region61
    $region60: #{tpu_custom_call.1} parent=1 // pred_region
      _
    $region61: #{tpu_custom_call.1} parent=1 // pred_fallthru
      _
    // Predicated region
    $region62: #{tpu_custom_call.1} parent=1 // pred_check
      _
    $region63: #{tpu_custom_call.1} parent=1 // pred_check_branch
      %88 = sbr.rel (0) target = $region65
    $region64: #{tpu_custom_call.1} parent=1 // pred_region
      _
    $region65: #{tpu_custom_call.1} parent=1 // pred_fallthru
      _
    // Predicated region
    $region66: #{tpu_custom_call.1} parent=1 // pred_check
      _
    $region67: #{tpu_custom_call.1} parent=1 // pred_check_branch
      %90 = sbr.rel (0) target = $region69
    $region68: #{tpu_custom_call.1} parent=1 // pred_region
      _
    $region69: #{tpu_custom_call.1} parent=1 // pred_fallthru
      _
    // Predicated region
    $region70: #{tpu_custom_call.1} parent=1 // pred_check
      _
    $region71: #{tpu_custom_call.1} parent=1 // pred_check_branch
      %92 = sbr.rel (0) target = $region73
    $region72: #{tpu_custom_call.1} parent=1 // pred_region
      _
    $region73: #{tpu_custom_call.1} parent=1 // pred_fallthru
      _
    // Predicated region
    $region74: #{tpu_custom_call.1} parent=1 // pred_check
      _
    $region75: #{tpu_custom_call.1} parent=1 // pred_check_branch
      %94 = sbr.rel (0) target = $region77
    $region76: #{tpu_custom_call.1} parent=1 // pred_region
      _
    $region77: #{tpu_custom_call.1} parent=1 // pred_fallthru
      _
    // Predicated region
    $region78: #{tpu_custom_call.1} parent=1 // pred_check
      _
    $region79: #{tpu_custom_call.1} parent=1 // pred_check_branch
      %96 = sbr.rel (0) target = $region81
    $region80: #{tpu_custom_call.1} parent=1 // pred_region
      _
    $region81: #{tpu_custom_call.1} parent=1 // pred_fallthru
      _
    // Predicated region
    $region82: #{tpu_custom_call.1} parent=1 // pred_check
      _
    $region83: #{tpu_custom_call.1} parent=1 // pred_check_branch
      %98 = sbr.rel (0) target = $region85
    $region84: #{tpu_custom_call.1} parent=1 // pred_region
      _
    $region85: #{tpu_custom_call.1} parent=1 // pred_fallthru
      _
    // Predicated region
    $region86: #{tpu_custom_call.1} parent=1 // pred_check
      _
    $region87: #{tpu_custom_call.1} parent=1 // pred_check_branch
      %100 = sbr.rel (0) target = $region89
    $region88: #{tpu_custom_call.1} parent=1 // pred_region
      _
    $region89: #{tpu_custom_call.1} parent=1 // pred_fallthru
      _
    // Predicated region
    $region90: #{tpu_custom_call.1} parent=1 // pred_check
      _
    $region91: #{tpu_custom_call.1} parent=1 // pred_check_branch
      %102 = sbr.rel (0) target = $region93
    $region92: #{tpu_custom_call.1} parent=1 // pred_region
      _
    $region93: #{tpu_custom_call.1} parent=1 // pred_fallthru
      _
    // Predicated region
    $region94: #{tpu_custom_call.1} parent=1 // pred_check
      _
    $region95: #{tpu_custom_call.1} parent=1 // pred_check_branch
      %104 = sbr.rel (0) target = $region97
    $region96: #{tpu_custom_call.1} parent=1 // pred_region
      _
    $region97: #{tpu_custom_call.1} parent=1 // pred_fallthru
      _
    // Predicated region
    $region98: #{tpu_custom_call.1} parent=1 // pred_check
      _
    $region99: #{tpu_custom_call.1} parent=1 // pred_check_branch
      %106 = sbr.rel (0) target = $region101
    $region100: #{tpu_custom_call.1} parent=1 // pred_region
      _
    $region101: #{tpu_custom_call.1} parent=1 // pred_fallthru
      _
    // Predicated region
    $region102: #{tpu_custom_call.1} parent=1 // pred_check
      _
    $region103: #{tpu_custom_call.1} parent=1 // pred_check_branch
      %108 = sbr.rel (0) target = $region105
    $region104: #{tpu_custom_call.1} parent=1 // pred_region
      %110 = dma.done [#allocation4], 16384
    $region105: #{tpu_custom_call.1} parent=1 // pred_fallthru
      _
    // Predicated region
    $region106: #{tpu_custom_call.1} parent=1 // pred_check
      _
    $region107: #{tpu_custom_call.1} parent=1 // pred_check_branch
      %112 = sbr.rel (0) target = $region109
    $region108: #{tpu_custom_call.1} parent=1 // pred_region
      %114 = dma.done [#allocation7], 16384
    $region109: #{tpu_custom_call.1} parent=1 // pred_fallthru
      _
    %v115 = vld [vmem:[%s0] sm:$0xff]
    %v116 = vld [vmem:[%s0 + $0x8] sm:$0x1]
    %v117 = vld [vmem:[%s1] sm:$0xff]
    %v118 = vld [vmem:[%s1 + $0x8] sm:$0xff]
    %v119 = vld [vmem:[%s1 + $0x10] sm:$0xff]
    %v120 = vld [vmem:[%s1 + $0x18] sm:$0xff]
    %v121 = vld [vmem:[%s1 + $0x20] sm:$0xff]
    %v122 = vld [vmem:[%s1 + $0x28] sm:$0xff]
    %v123 = vld [vmem:[%s1 + $0x30] sm:$0xff]
    %v124 = vld [vmem:[%s1 + $0x38] sm:$0xff]
    %v125 = vld [vmem:[%s2] sm:$0xff]
    %v126 = vld [vmem:[%s2 + $0x8] sm:$0xff]
    %v127 = vld [vmem:[%s2 + $0x10] sm:$0xff]
    %v128 = vld [vmem:[%s2 + $0x18] sm:$0xff]
    %v129 = vld [vmem:[%s2 + $0x20] sm:$0xff]
    %v130 = vld [vmem:[%s2 + $0x28] sm:$0xff]
    %v131 = vld [vmem:[%s2 + $0x30] sm:$0xff]
    %v132 = vld [vmem:[%s2 + $0x38] sm:$0xff]
    %134 = vset.pattern.permute.xlu0 0
    %135 = vperm.xlu0 %134, %v125
    %v136 = vpop.permute.xlu0 %135
    %139 = vset.pattern.permute.xlu0 0
    %140 = vperm.xlu0 %139, %v126
    %v141 = vpop.permute.xlu0 %140
    %144 = vset.pattern.permute.xlu0 0
    %145 = vperm.xlu0 %144, %v127
    %v146 = vpop.permute.xlu0 %145
    %149 = vset.pattern.permute.xlu0 0
    %150 = vperm.xlu0 %149, %v128
    %v151 = vpop.permute.xlu0 %150
    %154 = vset.pattern.permute.xlu0 0
    %155 = vperm.xlu0 %154, %v129
    %v156 = vpop.permute.xlu0 %155
    %159 = vset.pattern.permute.xlu0 0
    %160 = vperm.xlu0 %159, %v130
    %v161 = vpop.permute.xlu0 %160
    %164 = vset.pattern.permute.xlu0 0
    %165 = vperm.xlu0 %164, %v131
    %v166 = vpop.permute.xlu0 %165
    %169 = vset.pattern.permute.xlu0 0
    %170 = vperm.xlu0 %169, %v132
    %v171 = vpop.permute.xlu0 %170
    %vm173 = vcmask 72704
    %v175 = vsel %vm173, %v117, 0
    %v178 = vsel %vm173, %v118, 0
    %v181 = vsel %vm173, %v119, 0
    %v184 = vsel %vm173, %v120, 0
    %v187 = vsel %vm173, %v121, 0
    %v190 = vsel %vm173, %v122, 0
    %v193 = vsel %vm173, %v123, 0
    %v196 = vsel %vm173, %v124, 0
    %vm198 = vcmask 1040384
    %v200 = vsel %vm198, %v116, 0
    %202 = vmatpush.msra.mxu0 0.0
    %203 = vmatpush.msra.mxu0 0.0
    %204 = vmatpush.msra.mxu0 0.0
    %205 = vmatpush.msra.mxu0 0.0
    %206 = vmatpush.msra.mxu0 0.0
    %207 = vmatpush.msra.mxu0 0.0
    %208 = vmatpush.msra.mxu0 0.0
    %209 = vmatpush.msra.mxu0 0.0
    %210 = vmatpush.msra.mxu0 0.0
    %211 = vmatpush.msra.mxu0 0.0
    %212 = vmatpush.msra.mxu0 0.0
    %213 = vmatpush.msra.mxu0 0.0
    %214 = vmatpush.msra.mxu0 0.0
    %215 = vmatpush.msra.mxu0 0.0
    %216 = vmatpush.msra.mxu0 %v200
    %217 = vmatpush.msra.mxu0 %v115
    %218 = vmatmul.f32.gmra.mxu0 %v175
    %v219 = vpop.f32.mrf.mxu0
    %v220 = vadd.f32 %v136, %v219
    %221 = vmatmul.f32.gmra.mxu0 %v178
    %v222 = vpop.f32.mrf.mxu0
    %v223 = vadd.f32 %v141, %v222
    %224 = vmatmul.f32.gmra.mxu0 %v181
    %v225 = vpop.f32.mrf.mxu0
    %v226 = vadd.f32 %v146, %v225
    %227 = vmatmul.f32.gmra.mxu0 %v184
    %v228 = vpop.f32.mrf.mxu0
    %v229 = vadd.f32 %v151, %v228
    %230 = vmatmul.f32.gmra.mxu0 %v187
    %v231 = vpop.f32.mrf.mxu0
    %v232 = vadd.f32 %v156, %v231
    %233 = vmatmul.f32.gmra.mxu0 %v190
    %v234 = vpop.f32.mrf.mxu0
    %v235 = vadd.f32 %v161, %v234
    %236 = vmatmul.f32.gmra.mxu0 %v193
    %v237 = vpop.f32.mrf.mxu0
    %v238 = vadd.f32 %v166, %v237
    %239 = vmatmul.f32.gmra.mxu0 %v196
    %v240 = vpop.f32.mrf.mxu0
    %v241 = vadd.f32 %v171, %v240
    %242 = vdwg.mxu0
    %v243 = vmax.f32 %v220, 0.0
    %v244 = vmax.f32 %v223, 0.0
    %v245 = vmax.f32 %v226, 0.0
    %v246 = vmax.f32 %v229, 0.0
    %v247 = vmax.f32 %v232, 0.0
    %v248 = vmax.f32 %v235, 0.0
    %v249 = vmax.f32 %v238, 0.0
    %v250 = vmax.f32 %v241, 0.0
    %v251 = vld [vmem:[%s3] sm:$0xff]
    %v252 = vld [vmem:[%s3 + $0x8] sm:$0xff]
    %v253 = vld [vmem:[%s3 + $0x10] sm:$0xff]
    %v254 = vld [vmem:[%s3 + $0x18] sm:$0xff]
    %v255 = vld [vmem:[%s3 + $0x20] sm:$0xff]
    %v256 = vld [vmem:[%s3 + $0x28] sm:$0xff]
    %v257 = vld [vmem:[%s3 + $0x30] sm:$0xff]
    %v258 = vld [vmem:[%s3 + $0x38] sm:$0xff]
    %v259 = vld [vmem:[%s3 + $0x40] sm:$0xff]
    %v260 = vld [vmem:[%s3 + $0x48] sm:$0xff]
    %v261 = vld [vmem:[%s3 + $0x50] sm:$0xff]
    %v262 = vld [vmem:[%s3 + $0x58] sm:$0xff]
    %v263 = vld [vmem:[%s3 + $0x60] sm:$0xff]
    %v264 = vld [vmem:[%s3 + $0x68] sm:$0xff]
    %v265 = vld [vmem:[%s3 + $0x70] sm:$0xff]
    %v266 = vld [vmem:[%s3 + $0x78] sm:$0xff]
    %v267 = vld [vmem:[%s4] sm:$0xff]
    %v268 = vld [vmem:[%s4 + $0x8] sm:$0xff]
    %v269 = vld [vmem:[%s4 + $0x10] sm:$0xff]
    %v270 = vld [vmem:[%s4 + $0x18] sm:$0xff]
    %v271 = vld [vmem:[%s4 + $0x20] sm:$0xff]
    %v272 = vld [vmem:[%s4 + $0x28] sm:$0xff]
    %v273 = vld [vmem:[%s4 + $0x30] sm:$0xff]
    %v274 = vld [vmem:[%s4 + $0x38] sm:$0xff]
    %v275 = vld [vmem:[%s4 + $0x40] sm:$0xff]
    %v276 = vld [vmem:[%s4 + $0x48] sm:$0xff]
    %v277 = vld [vmem:[%s4 + $0x50] sm:$0xff]
    %v278 = vld [vmem:[%s4 + $0x58] sm:$0xff]
    %v279 = vld [vmem:[%s4 + $0x60] sm:$0xff]
    %v280 = vld [vmem:[%s4 + $0x68] sm:$0xff]
    %v281 = vld [vmem:[%s4 + $0x70] sm:$0xff]
    %v282 = vld [vmem:[%s4 + $0x78] sm:$0xff]
    %284 = vset.pattern.permute.xlu0 0
    %285 = vperm.xlu0 %284, %v267
    %v286 = vpop.permute.xlu0 %285
    %289 = vset.pattern.permute.xlu0 0
    %290 = vperm.xlu0 %289, %v268
    %v291 = vpop.permute.xlu0 %290
    %294 = vset.pattern.permute.xlu0 0
    %295 = vperm.xlu0 %294, %v269
    %v296 = vpop.permute.xlu0 %295
    %299 = vset.pattern.permute.xlu0 0
    %300 = vperm.xlu0 %299, %v270
    %v301 = vpop.permute.xlu0 %300
    %304 = vset.pattern.permute.xlu0 0
    %305 = vperm.xlu0 %304, %v271
    %v306 = vpop.permute.xlu0 %305
    %309 = vset.pattern.permute.xlu0 0
    %310 = vperm.xlu0 %309, %v272
    %v311 = vpop.permute.xlu0 %310
    %314 = vset.pattern.permute.xlu0 0
    %315 = vperm.xlu0 %314, %v273
    %v316 = vpop.permute.xlu0 %315
    %319 = vset.pattern.permute.xlu0 0
    %320 = vperm.xlu0 %319, %v274
    %v321 = vpop.permute.xlu0 %320
    %324 = vset.pattern.permute.xlu0 0
    %325 = vperm.xlu0 %324, %v275
    %v326 = vpop.permute.xlu0 %325
    %329 = vset.pattern.permute.xlu0 0
    %330 = vperm.xlu0 %329, %v276
    %v331 = vpop.permute.xlu0 %330
    %334 = vset.pattern.permute.xlu0 0
    %335 = vperm.xlu0 %334, %v277
    %v336 = vpop.permute.xlu0 %335
    %339 = vset.pattern.permute.xlu0 0
    %340 = vperm.xlu0 %339, %v278
    %v341 = vpop.permute.xlu0 %340
    %344 = vset.pattern.permute.xlu0 0
    %345 = vperm.xlu0 %344, %v279
    %v346 = vpop.permute.xlu0 %345
    %349 = vset.pattern.permute.xlu0 0
    %350 = vperm.xlu0 %349, %v280
    %v351 = vpop.permute.xlu0 %350
    %354 = vset.pattern.permute.xlu0 0
    %355 = vperm.xlu0 %354, %v281
    %v356 = vpop.permute.xlu0 %355
    %359 = vset.pattern.permute.xlu0 0
    %360 = vperm.xlu0 %359, %v282
    %v361 = vpop.permute.xlu0 %360
    %vm363 = vcmask 523264
    %v365 = vsel %vm363, %v251, 0
    %v368 = vsel %vm363, %v252, 0
    %v371 = vsel %vm363, %v253, 0
    %v374 = vsel %vm363, %v254, 0
    %v377 = vsel %vm363, %v255, 0
    %v380 = vsel %vm363, %v256, 0
    %v383 = vsel %vm363, %v257, 0
    %v386 = vsel %vm363, %v258, 0
    %v389 = vsel %vm363, %v259, 0
    %v392 = vsel %vm363, %v260, 0
    %v395 = vsel %vm363, %v261, 0
    %v398 = vsel %vm363, %v262, 0
    %v401 = vsel %vm363, %v263, 0
    %v404 = vsel %vm363, %v264, 0
    %v407 = vsel %vm363, %v265, 0
    %v410 = vsel %vm363, %v266, 0
    %412 = vmatpush.msra.mxu0 0.0
    %413 = vmatpush.msra.mxu0 0.0
    %414 = vmatpush.msra.mxu0 0.0
    %415 = vmatpush.msra.mxu0 0.0
    %416 = vmatpush.msra.mxu0 0.0
    %417 = vmatpush.msra.mxu0 0.0
    %418 = vmatpush.msra.mxu0 0.0
    %419 = vmatpush.msra.mxu0 0.0
    %420 = vmatpush.msra.mxu0 %v250
    %421 = vmatpush.msra.mxu0 %v249
    %422 = vmatpush.msra.mxu0 %v248
    %423 = vmatpush.msra.mxu0 %v247
    %424 = vmatpush.msra.mxu0 %v246
    %425 = vmatpush.msra.mxu0 %v245
    %426 = vmatpush.msra.mxu0 %v244
    %427 = vmatpush.msra.mxu0 %v243
    %428 = vmatmul.f32.gmra.mxu0 %v365
    %v429 = vpop.f32.mrf.mxu0
    %v430 = vadd.f32 %v286, %v429
    %431 = vmatmul.f32.gmra.mxu0 %v368
    %v432 = vpop.f32.mrf.mxu0
    %v433 = vadd.f32 %v291, %v432
    %434 = vmatmul.f32.gmra.mxu0 %v371
    %v435 = vpop.f32.mrf.mxu0
    %v436 = vadd.f32 %v296, %v435
    %437 = vmatmul.f32.gmra.mxu0 %v374
    %v438 = vpop.f32.mrf.mxu0
    %v439 = vadd.f32 %v301, %v438
    %440 = vmatmul.f32.gmra.mxu0 %v377
    %v441 = vpop.f32.mrf.mxu0
    %v442 = vadd.f32 %v306, %v441
    %443 = vmatmul.f32.gmra.mxu0 %v380
    %v444 = vpop.f32.mrf.mxu0
    %v445 = vadd.f32 %v311, %v444
    %446 = vmatmul.f32.gmra.mxu0 %v383
    %v447 = vpop.f32.mrf.mxu0
    %v448 = vadd.f32 %v316, %v447
    %449 = vmatmul.f32.gmra.mxu0 %v386
    %v450 = vpop.f32.mrf.mxu0
    %v451 = vadd.f32 %v321, %v450
    %452 = vmatmul.f32.gmra.mxu0 %v389
    %v453 = vpop.f32.mrf.mxu0
    %v454 = vadd.f32 %v326, %v453
    %455 = vmatmul.f32.gmra.mxu0 %v392
    %v456 = vpop.f32.mrf.mxu0
    %v457 = vadd.f32 %v331, %v456
    %458 = vmatmul.f32.gmra.mxu0 %v395
    %v459 = vpop.f32.mrf.mxu0
    %v460 = vadd.f32 %v336, %v459
    %461 = vmatmul.f32.gmra.mxu0 %v398
    %v462 = vpop.f32.mrf.mxu0
    %v463 = vadd.f32 %v341, %v462
    %464 = vmatmul.f32.gmra.mxu0 %v401
    %v465 = vpop.f32.mrf.mxu0
    %v466 = vadd.f32 %v346, %v465
    %467 = vmatmul.f32.gmra.mxu0 %v404
    %v468 = vpop.f32.mrf.mxu0
    %v469 = vadd.f32 %v351, %v468
    %470 = vmatmul.f32.gmra.mxu0 %v407
    %v471 = vpop.f32.mrf.mxu0
    %v472 = vadd.f32 %v356, %v471
    %473 = vmatmul.f32.gmra.mxu0 %v410
    %v474 = vpop.f32.mrf.mxu0
    %v475 = vadd.f32 %v361, %v474
    %476 = vdwg.mxu0
    %v477 = vmax.f32 %v430, 0.0
    %v478 = vmax.f32 %v433, 0.0
    %v479 = vmax.f32 %v436, 0.0
    %v480 = vmax.f32 %v439, 0.0
    %v481 = vmax.f32 %v442, 0.0
    %v482 = vmax.f32 %v445, 0.0
    %v483 = vmax.f32 %v448, 0.0
    %v484 = vmax.f32 %v451, 0.0
    %v485 = vmax.f32 %v454, 0.0
    %v486 = vmax.f32 %v457, 0.0
    %v487 = vmax.f32 %v460, 0.0
    %v488 = vmax.f32 %v463, 0.0
    %v489 = vmax.f32 %v466, 0.0
    %v490 = vmax.f32 %v469, 0.0
    %v491 = vmax.f32 %v472, 0.0
    %v492 = vmax.f32 %v475, 0.0
    %v493 = vld [vmem:[%s5] sm:$0xff]
    %v494 = vld [vmem:[%s5 + $0x8] sm:$0xff]
    %v495 = vld [vmem:[%s5 + $0x10] sm:$0xff]
    %v496 = vld [vmem:[%s5 + $0x18] sm:$0xff]
    %v497 = vld [vmem:[%s5 + $0x20] sm:$0xff]
    %v498 = vld [vmem:[%s5 + $0x28] sm:$0xff]
    %v499 = vld [vmem:[%s5 + $0x30] sm:$0xff]
    %v500 = vld [vmem:[%s5 + $0x38] sm:$0xff]
    %v501 = vld [vmem:[%s5 + $0x40] sm:$0xff]
    %v502 = vld [vmem:[%s5 + $0x48] sm:$0xff]
    %v503 = vld [vmem:[%s5 + $0x50] sm:$0xff]
    %v504 = vld [vmem:[%s5 + $0x58] sm:$0xff]
    %v505 = vld [vmem:[%s5 + $0x60] sm:$0xff]
    %v506 = vld [vmem:[%s5 + $0x68] sm:$0xff]
    %v507 = vld [vmem:[%s5 + $0x70] sm:$0xff]
    %v508 = vld [vmem:[%s5 + $0x78] sm:$0xff]
    %v509 = vld [vmem:[%s5 + $0x80] sm:$0xff]
    %v510 = vld [vmem:[%s5 + $0x88] sm:$0xff]
    %v511 = vld [vmem:[%s5 + $0x90] sm:$0xff]
    %v512 = vld [vmem:[%s5 + $0x98] sm:$0xff]
    %v513 = vld [vmem:[%s5 + $0xa0] sm:$0xff]
    %v514 = vld [vmem:[%s5 + $0xa8] sm:$0xff]
    %v515 = vld [vmem:[%s5 + $0xb0] sm:$0xff]
    %v516 = vld [vmem:[%s5 + $0xb8] sm:$0xff]
    %v517 = vld [vmem:[%s5 + $0xc0] sm:$0xff]
    %v518 = vld [vmem:[%s5 + $0xc8] sm:$0xff]
    %v519 = vld [vmem:[%s5 + $0xd0] sm:$0xff]
    %v520 = vld [vmem:[%s5 + $0xd8] sm:$0xff]
    %v521 = vld [vmem:[%s5 + $0xe0] sm:$0xff]
    %v522 = vld [vmem:[%s5 + $0xe8] sm:$0xff]
    %v523 = vld [vmem:[%s5 + $0xf0] sm:$0xff]
    %v524 = vld [vmem:[%s5 + $0xf8] sm:$0xff]
    %v525 = vld [vmem:[%s6] sm:$0xff]
    %v526 = vld [vmem:[%s6 + $0x8] sm:$0xff]
    %v527 = vld [vmem:[%s6 + $0x10] sm:$0xff]
    %v528 = vld [vmem:[%s6 + $0x18] sm:$0xff]
    %v529 = vld [vmem:[%s6 + $0x20] sm:$0xff]
    %v530 = vld [vmem:[%s6 + $0x28] sm:$0xff]
    %v531 = vld [vmem:[%s6 + $0x30] sm:$0xff]
    %v532 = vld [vmem:[%s6 + $0x38] sm:$0xff]
    %v533 = vld [vmem:[%s6 + $0x40] sm:$0xff]
    %v534 = vld [vmem:[%s6 + $0x48] sm:$0xff]
    %v535 = vld [vmem:[%s6 + $0x50] sm:$0xff]
    %v536 = vld [vmem:[%s6 + $0x58] sm:$0xff]
    %v537 = vld [vmem:[%s6 + $0x60] sm:$0xff]
    %v538 = vld [vmem:[%s6 + $0x68] sm:$0xff]
    %v539 = vld [vmem:[%s6 + $0x70] sm:$0xff]
    %v540 = vld [vmem:[%s6 + $0x78] sm:$0xff]
    %v541 = vld [vmem:[%s6 + $0x80] sm:$0xff]
    %v542 = vld [vmem:[%s6 + $0x88] sm:$0xff]
    %v543 = vld [vmem:[%s6 + $0x90] sm:$0xff]
    %v544 = vld [vmem:[%s6 + $0x98] sm:$0xff]
    %v545 = vld [vmem:[%s6 + $0xa0] sm:$0xff]
    %v546 = vld [vmem:[%s6 + $0xa8] sm:$0xff]
    %v547 = vld [vmem:[%s6 + $0xb0] sm:$0xff]
    %v548 = vld [vmem:[%s6 + $0xb8] sm:$0xff]
    %v549 = vld [vmem:[%s6 + $0xc0] sm:$0xff]
    %v550 = vld [vmem:[%s6 + $0xc8] sm:$0xff]
    %v551 = vld [vmem:[%s6 + $0xd0] sm:$0xff]
    %v552 = vld [vmem:[%s6 + $0xd8] sm:$0xff]
    %v553 = vld [vmem:[%s6 + $0xe0] sm:$0xff]
    %v554 = vld [vmem:[%s6 + $0xe8] sm:$0xff]
    %v555 = vld [vmem:[%s6 + $0xf0] sm:$0xff]
    %v556 = vld [vmem:[%s6 + $0xf8] sm:$0xff]
    %558 = vset.pattern.permute.xlu0 0
    %559 = vperm.xlu0 %558, %v525
    %v560 = vpop.permute.xlu0 %559
    %563 = vset.pattern.permute.xlu0 0
    %564 = vperm.xlu0 %563, %v526
    %v565 = vpop.permute.xlu0 %564
    %568 = vset.pattern.permute.xlu0 0
    %569 = vperm.xlu0 %568, %v527
    %v570 = vpop.permute.xlu0 %569
    %573 = vset.pattern.permute.xlu0 0
    %574 = vperm.xlu0 %573, %v528
    %v575 = vpop.permute.xlu0 %574
    %578 = vset.pattern.permute.xlu0 0
    %579 = vperm.xlu0 %578, %v529
    %v580 = vpop.permute.xlu0 %579
    %583 = vset.pattern.permute.xlu0 0
    %584 = vperm.xlu0 %583, %v530
    %v585 = vpop.permute.xlu0 %584
    %588 = vset.pattern.permute.xlu0 0
    %589 = vperm.xlu0 %588, %v531
    %v590 = vpop.permute.xlu0 %589
    %593 = vset.pattern.permute.xlu0 0
    %594 = vperm.xlu0 %593, %v532
    %v595 = vpop.permute.xlu0 %594
    %598 = vset.pattern.permute.xlu0 0
    %599 = vperm.xlu0 %598, %v533
    %v600 = vpop.permute.xlu0 %599
    %603 = vset.pattern.permute.xlu0 0
    %604 = vperm.xlu0 %603, %v534
    %v605 = vpop.permute.xlu0 %604
    %608 = vset.pattern.permute.xlu0 0
    %609 = vperm.xlu0 %608, %v535
    %v610 = vpop.permute.xlu0 %609
    %613 = vset.pattern.permute.xlu0 0
    %614 = vperm.xlu0 %613, %v536
    %v615 = vpop.permute.xlu0 %614
    %618 = vset.pattern.permute.xlu0 0
    %619 = vperm.xlu0 %618, %v537
    %v620 = vpop.permute.xlu0 %619
    %623 = vset.pattern.permute.xlu0 0
    %624 = vperm.xlu0 %623, %v538
    %v625 = vpop.permute.xlu0 %624
    %628 = vset.pattern.permute.xlu0 0
    %629 = vperm.xlu0 %628, %v539
    %v630 = vpop.permute.xlu0 %629
    %633 = vset.pattern.permute.xlu0 0
    %634 = vperm.xlu0 %633, %v540
    %v635 = vpop.permute.xlu0 %634
    %638 = vset.pattern.permute.xlu0 0
    %639 = vperm.xlu0 %638, %v541
    %v640 = vpop.permute.xlu0 %639
    %643 = vset.pattern.permute.xlu0 0
    %644 = vperm.xlu0 %643, %v542
    %v645 = vpop.permute.xlu0 %644
    %648 = vset.pattern.permute.xlu0 0
    %649 = vperm.xlu0 %648, %v543
    %v650 = vpop.permute.xlu0 %649
    %653 = vset.pattern.permute.xlu0 0
    %654 = vperm.xlu0 %653, %v544
    %v655 = vpop.permute.xlu0 %654
    %658 = vset.pattern.permute.xlu0 0
    %659 = vperm.xlu0 %658, %v545
    %v660 = vpop.permute.xlu0 %659
    %663 = vset.pattern.permute.xlu0 0
    %664 = vperm.xlu0 %663, %v546
    %v665 = vpop.permute.xlu0 %664
    %668 = vset.pattern.permute.xlu0 0
    %669 = vperm.xlu0 %668, %v547
    %v670 = vpop.permute.xlu0 %669
    %673 = vset.pattern.permute.xlu0 0
    %674 = vperm.xlu0 %673, %v548
    %v675 = vpop.permute.xlu0 %674
    %678 = vset.pattern.permute.xlu0 0
    %679 = vperm.xlu0 %678, %v549
    %v680 = vpop.permute.xlu0 %679
    %683 = vset.pattern.permute.xlu0 0
    %684 = vperm.xlu0 %683, %v550
    %v685 = vpop.permute.xlu0 %684
    %688 = vset.pattern.permute.xlu0 0
    %689 = vperm.xlu0 %688, %v551
    %v690 = vpop.permute.xlu0 %689
    %693 = vset.pattern.permute.xlu0 0
    %694 = vperm.xlu0 %693, %v552
    %v695 = vpop.permute.xlu0 %694
    %698 = vset.pattern.permute.xlu0 0
    %699 = vperm.xlu0 %698, %v553
    %v700 = vpop.permute.xlu0 %699
    %703 = vset.pattern.permute.xlu0 0
    %704 = vperm.xlu0 %703, %v554
    %v705 = vpop.permute.xlu0 %704
    %708 = vset.pattern.permute.xlu0 0
    %709 = vperm.xlu0 %708, %v555
    %v710 = vpop.permute.xlu0 %709
    %713 = vset.pattern.permute.xlu0 0
    %714 = vperm.xlu0 %713, %v556
    %v715 = vpop.permute.xlu0 %714
    %717 = vmatpush.msra.mxu0 %v492
    %718 = vmatpush.msra.mxu0 %v491
    %719 = vmatpush.msra.mxu0 %v490
    %720 = vmatpush.msra.mxu0 %v489
    %721 = vmatpush.msra.mxu0 %v488
    %722 = vmatpush.msra.mxu0 %v487
    %723 = vmatpush.msra.mxu0 %v486
    %724 = vmatpush.msra.mxu0 %v485
    %725 = vmatpush.msra.mxu0 %v484
    %726 = vmatpush.msra.mxu0 %v483
    %727 = vmatpush.msra.mxu0 %v482
    %728 = vmatpush.msra.mxu0 %v481
    %729 = vmatpush.msra.mxu0 %v480
    %730 = vmatpush.msra.mxu0 %v479
    %731 = vmatpush.msra.mxu0 %v478
    %732 = vmatpush.msra.mxu0 %v477
    %733 = vmatmul.f32.gmra.mxu0 %v493
    %v734 = vpop.f32.mrf.mxu0
    %v735 = vadd.f32 %v560, %v734
    %736 = vmatmul.f32.gmra.mxu0 %v494
    %v737 = vpop.f32.mrf.mxu0
    %v738 = vadd.f32 %v565, %v737
    %739 = vmatmul.f32.gmra.mxu0 %v495
    %v740 = vpop.f32.mrf.mxu0
    %v741 = vadd.f32 %v570, %v740
    %742 = vmatmul.f32.gmra.mxu0 %v496
    %v743 = vpop.f32.mrf.mxu0
    %v744 = vadd.f32 %v575, %v743
    %745 = vmatmul.f32.gmra.mxu0 %v497
    %v746 = vpop.f32.mrf.mxu0
    %v747 = vadd.f32 %v580, %v746
    %748 = vmatmul.f32.gmra.mxu0 %v498
    %v749 = vpop.f32.mrf.mxu0
    %v750 = vadd.f32 %v585, %v749
    %751 = vmatmul.f32.gmra.mxu0 %v499
    %v752 = vpop.f32.mrf.mxu0
    %v753 = vadd.f32 %v590, %v752
    %754 = vmatmul.f32.gmra.mxu0 %v500
    %v755 = vpop.f32.mrf.mxu0
    %v756 = vadd.f32 %v595, %v755
    %757 = vmatmul.f32.gmra.mxu0 %v501
    %v758 = vpop.f32.mrf.mxu0
    %v759 = vadd.f32 %v600, %v758
    %760 = vmatmul.f32.gmra.mxu0 %v502
    %v761 = vpop.f32.mrf.mxu0
    %v762 = vadd.f32 %v605, %v761
    %763 = vmatmul.f32.gmra.mxu0 %v503
    %v764 = vpop.f32.mrf.mxu0
    %v765 = vadd.f32 %v610, %v764
    %766 = vmatmul.f32.gmra.mxu0 %v504
    %v767 = vpop.f32.mrf.mxu0
    %v768 = vadd.f32 %v615, %v767
    %769 = vmatmul.f32.gmra.mxu0 %v505
    %v770 = vpop.f32.mrf.mxu0
    %v771 = vadd.f32 %v620, %v770
    %772 = vmatmul.f32.gmra.mxu0 %v506
    %v773 = vpop.f32.mrf.mxu0
    %v774 = vadd.f32 %v625, %v773
    %775 = vmatmul.f32.gmra.mxu0 %v507
    %v776 = vpop.f32.mrf.mxu0
    %v777 = vadd.f32 %v630, %v776
    %778 = vmatmul.f32.gmra.mxu0 %v508
    %v779 = vpop.f32.mrf.mxu0
    %v780 = vadd.f32 %v635, %v779
    %781 = vmatmul.f32.gmra.mxu0 %v509
    %v782 = vpop.f32.mrf.mxu0
    %v783 = vadd.f32 %v640, %v782
    %784 = vmatmul.f32.gmra.mxu0 %v510
    %v785 = vpop.f32.mrf.mxu0
    %v786 = vadd.f32 %v645, %v785
    %787 = vmatmul.f32.gmra.mxu0 %v511
    %v788 = vpop.f32.mrf.mxu0
    %v789 = vadd.f32 %v650, %v788
    %790 = vmatmul.f32.gmra.mxu0 %v512
    %v791 = vpop.f32.mrf.mxu0
    %v792 = vadd.f32 %v655, %v791
    %793 = vmatmul.f32.gmra.mxu0 %v513
    %v794 = vpop.f32.mrf.mxu0
    %v795 = vadd.f32 %v660, %v794
    %796 = vmatmul.f32.gmra.mxu0 %v514
    %v797 = vpop.f32.mrf.mxu0
    %v798 = vadd.f32 %v665, %v797
    %799 = vmatmul.f32.gmra.mxu0 %v515
    %v800 = vpop.f32.mrf.mxu0
    %v801 = vadd.f32 %v670, %v800
    %802 = vmatmul.f32.gmra.mxu0 %v516
    %v803 = vpop.f32.mrf.mxu0
    %v804 = vadd.f32 %v675, %v803
    %805 = vmatmul.f32.gmra.mxu0 %v517
    %v806 = vpop.f32.mrf.mxu0
    %v807 = vadd.f32 %v680, %v806
    %808 = vmatmul.f32.gmra.mxu0 %v518
    %v809 = vpop.f32.mrf.mxu0
    %v810 = vadd.f32 %v685, %v809
    %811 = vmatmul.f32.gmra.mxu0 %v519
    %v812 = vpop.f32.mrf.mxu0
    %v813 = vadd.f32 %v690, %v812
    %814 = vmatmul.f32.gmra.mxu0 %v520
    %v815 = vpop.f32.mrf.mxu0
    %v816 = vadd.f32 %v695, %v815
    %817 = vmatmul.f32.gmra.mxu0 %v521
    %v818 = vpop.f32.mrf.mxu0
    %v819 = vadd.f32 %v700, %v818
    %820 = vmatmul.f32.gmra.mxu0 %v522
    %v821 = vpop.f32.mrf.mxu0
    %v822 = vadd.f32 %v705, %v821
    %823 = vmatmul.f32.gmra.mxu0 %v523
    %v824 = vpop.f32.mrf.mxu0
    %v825 = vadd.f32 %v710, %v824
    %826 = vmatmul.f32.gmra.mxu0 %v524
    %v827 = vpop.f32.mrf.mxu0
    %v828 = vadd.f32 %v715, %v827
    %829 = vdwg.mxu0
    %v830 = vmax.f32 %v735, 0.0
    %v831 = vmax.f32 %v738, 0.0
    %v832 = vmax.f32 %v741, 0.0
    %v833 = vmax.f32 %v744, 0.0
    %v834 = vmax.f32 %v747, 0.0
    %v835 = vmax.f32 %v750, 0.0
    %v836 = vmax.f32 %v753, 0.0
    %v837 = vmax.f32 %v756, 0.0
    %v838 = vmax.f32 %v759, 0.0
    %v839 = vmax.f32 %v762, 0.0
    %v840 = vmax.f32 %v765, 0.0
    %v841 = vmax.f32 %v768, 0.0
    %v842 = vmax.f32 %v771, 0.0
    %v843 = vmax.f32 %v774, 0.0
    %v844 = vmax.f32 %v777, 0.0
    %v845 = vmax.f32 %v780, 0.0
    %v846 = vmax.f32 %v783, 0.0
    %v847 = vmax.f32 %v786, 0.0
    %v848 = vmax.f32 %v789, 0.0
    %v849 = vmax.f32 %v792, 0.0
    %v850 = vmax.f32 %v795, 0.0
    %v851 = vmax.f32 %v798, 0.0
    %v852 = vmax.f32 %v801, 0.0
    %v853 = vmax.f32 %v804, 0.0
    %v854 = vmax.f32 %v807, 0.0
    %v855 = vmax.f32 %v810, 0.0
    %v856 = vmax.f32 %v813, 0.0
    %v857 = vmax.f32 %v816, 0.0
    %v858 = vmax.f32 %v819, 0.0
    %v859 = vmax.f32 %v822, 0.0
    %v860 = vmax.f32 %v825, 0.0
    %v861 = vmax.f32 %v828, 0.0
    %v862 = vld [vmem:[#allocation3] sm:$0xff]
    %v863 = vld [vmem:[#allocation3 + $0x8] sm:$0xff]
    %v864 = vld [vmem:[#allocation3 + $0x10] sm:$0xff]
    %v865 = vld [vmem:[#allocation3 + $0x18] sm:$0xff]
    %v866 = vld [vmem:[#allocation3 + $0x20] sm:$0xff]
    %v867 = vld [vmem:[#allocation3 + $0x28] sm:$0xff]
    %v868 = vld [vmem:[#allocation3 + $0x30] sm:$0xff]
    %v869 = vld [vmem:[#allocation3 + $0x38] sm:$0xff]
    %v870 = vld [vmem:[#allocation3 + $0x40] sm:$0xff]
    %v871 = vld [vmem:[#allocation3 + $0x48] sm:$0xff]
    %v872 = vld [vmem:[#allocation3 + $0x50] sm:$0xff]
    %v873 = vld [vmem:[#allocation3 + $0x58] sm:$0xff]
    %v874 = vld [vmem:[#allocation3 + $0x60] sm:$0xff]
    %v875 = vld [vmem:[#allocation3 + $0x68] sm:$0xff]
    %v876 = vld [vmem:[#allocation3 + $0x70] sm:$0xff]
    %v877 = vld [vmem:[#allocation3 + $0x78] sm:$0xff]
    %v878 = vld [vmem:[#allocation3 + $0x80] sm:$0xff]
    %v879 = vld [vmem:[#allocation3 + $0x88] sm:$0xff]
    %v880 = vld [vmem:[#allocation3 + $0x90] sm:$0xff]
    %v881 = vld [vmem:[#allocation3 + $0x98] sm:$0xff]
    %v882 = vld [vmem:[#allocation3 + $0xa0] sm:$0xff]
    %v883 = vld [vmem:[#allocation3 + $0xa8] sm:$0xff]
    %v884 = vld [vmem:[#allocation3 + $0xb0] sm:$0xff]
    %v885 = vld [vmem:[#allocation3 + $0xb8] sm:$0xff]
    %v886 = vld [vmem:[#allocation3 + $0xc0] sm:$0xff]
    %v887 = vld [vmem:[#allocation3 + $0xc8] sm:$0xff]
    %v888 = vld [vmem:[#allocation3 + $0xd0] sm:$0xff]
    %v889 = vld [vmem:[#allocation3 + $0xd8] sm:$0xff]
    %v890 = vld [vmem:[#allocation3 + $0xe0] sm:$0xff]
    %v891 = vld [vmem:[#allocation3 + $0xe8] sm:$0xff]
    %v892 = vld [vmem:[#allocation3 + $0xf0] sm:$0xff]
    %v893 = vld [vmem:[#allocation3 + $0xf8] sm:$0xff]
    %v894 = vld [vmem:[#allocation3 + $0x100] sm:$0xff]
    %v895 = vld [vmem:[#allocation3 + $0x108] sm:$0xff]
    %v896 = vld [vmem:[#allocation3 + $0x110] sm:$0xff]
    %v897 = vld [vmem:[#allocation3 + $0x118] sm:$0xff]
    %v898 = vld [vmem:[#allocation3 + $0x120] sm:$0xff]
    %v899 = vld [vmem:[#allocation3 + $0x128] sm:$0xff]
    %v900 = vld [vmem:[#allocation3 + $0x130] sm:$0xff]
    %v901 = vld [vmem:[#allocation3 + $0x138] sm:$0xff]
    %v902 = vld [vmem:[#allocation3 + $0x140] sm:$0xff]
    %v903 = vld [vmem:[#allocation3 + $0x148] sm:$0xff]
    %v904 = vld [vmem:[#allocation3 + $0x150] sm:$0xff]
    %v905 = vld [vmem:[#allocation3 + $0x158] sm:$0xff]
    %v906 = vld [vmem:[#allocation3 + $0x160] sm:$0xff]
    %v907 = vld [vmem:[#allocation3 + $0x168] sm:$0xff]
    %v908 = vld [vmem:[#allocation3 + $0x170] sm:$0xff]
    %v909 = vld [vmem:[#allocation3 + $0x178] sm:$0xff]
    %v910 = vld [vmem:[#allocation3 + $0x180] sm:$0xff]
    %v911 = vld [vmem:[#allocation3 + $0x188] sm:$0xff]
    %v912 = vld [vmem:[#allocation3 + $0x190] sm:$0xff]
    %v913 = vld [vmem:[#allocation3 + $0x198] sm:$0xff]
    %v914 = vld [vmem:[#allocation3 + $0x1a0] sm:$0xff]
    %v915 = vld [vmem:[#allocation3 + $0x1a8] sm:$0xff]
    %v916 = vld [vmem:[#allocation3 + $0x1b0] sm:$0xff]
    %v917 = vld [vmem:[#allocation3 + $0x1b8] sm:$0xff]
    %v918 = vld [vmem:[#allocation3 + $0x1c0] sm:$0xff]
    %v919 = vld [vmem:[#allocation3 + $0x1c8] sm:$0xff]
    %v920 = vld [vmem:[#allocation3 + $0x1d0] sm:$0xff]
    %v921 = vld [vmem:[#allocation3 + $0x1d8] sm:$0xff]
    %v922 = vld [vmem:[#allocation3 + $0x1e0] sm:$0xff]
    %v923 = vld [vmem:[#allocation3 + $0x1e8] sm:$0xff]
    %v924 = vld [vmem:[#allocation3 + $0x1f0] sm:$0xff]
    %v925 = vld [vmem:[#allocation3 + $0x1f8] sm:$0xff]
    %v926 = vld [vmem:[#allocation3 + $0x200] sm:$0xff]
    %v927 = vld [vmem:[#allocation3 + $0x208] sm:$0xff]
    %v928 = vld [vmem:[#allocation3 + $0x210] sm:$0xff]
    %v929 = vld [vmem:[#allocation3 + $0x218] sm:$0xff]
    %v930 = vld [vmem:[#allocation3 + $0x220] sm:$0xff]
    %v931 = vld [vmem:[#allocation3 + $0x228] sm:$0xff]
    %v932 = vld [vmem:[#allocation3 + $0x230] sm:$0xff]
    %v933 = vld [vmem:[#allocation3 + $0x238] sm:$0xff]
    %v934 = vld [vmem:[#allocation3 + $0x240] sm:$0xff]
    %v935 = vld [vmem:[#allocation3 + $0x248] sm:$0xff]
    %v936 = vld [vmem:[#allocation3 + $0x250] sm:$0xff]
    %v937 = vld [vmem:[#allocation3 + $0x258] sm:$0xff]
    %v938 = vld [vmem:[#allocation3 + $0x260] sm:$0xff]
    %v939 = vld [vmem:[#allocation3 + $0x268] sm:$0xff]
    %v940 = vld [vmem:[#allocation3 + $0x270] sm:$0xff]
    %v941 = vld [vmem:[#allocation3 + $0x278] sm:$0xff]
    %v942 = vld [vmem:[#allocation3 + $0x280] sm:$0xff]
    %v943 = vld [vmem:[#allocation3 + $0x288] sm:$0xff]
    %v944 = vld [vmem:[#allocation3 + $0x290] sm:$0xff]
    %v945 = vld [vmem:[#allocation3 + $0x298] sm:$0xff]
    %v946 = vld [vmem:[#allocation3 + $0x2a0] sm:$0xff]
    %v947 = vld [vmem:[#allocation3 + $0x2a8] sm:$0xff]
    %v948 = vld [vmem:[#allocation3 + $0x2b0] sm:$0xff]
    %v949 = vld [vmem:[#allocation3 + $0x2b8] sm:$0xff]
    %v950 = vld [vmem:[#allocation3 + $0x2c0] sm:$0xff]
    %v951 = vld [vmem:[#allocation3 + $0x2c8] sm:$0xff]
    %v952 = vld [vmem:[#allocation3 + $0x2d0] sm:$0xff]
    %v953 = vld [vmem:[#allocation3 + $0x2d8] sm:$0xff]
    %v954 = vld [vmem:[#allocation3 + $0x2e0] sm:$0xff]
    %v955 = vld [vmem:[#allocation3 + $0x2e8] sm:$0xff]
    %v956 = vld [vmem:[#allocation3 + $0x2f0] sm:$0xff]
    %v957 = vld [vmem:[#allocation3 + $0x2f8] sm:$0xff]
    %v958 = vld [vmem:[#allocation3 + $0x300] sm:$0xff]
    %v959 = vld [vmem:[#allocation3 + $0x308] sm:$0xff]
    %v960 = vld [vmem:[#allocation3 + $0x310] sm:$0xff]
    %v961 = vld [vmem:[#allocation3 + $0x318] sm:$0xff]
    %v962 = vld [vmem:[#allocation3 + $0x320] sm:$0xff]
    %v963 = vld [vmem:[#allocation3 + $0x328] sm:$0xff]
    %v964 = vld [vmem:[#allocation3 + $0x330] sm:$0xff]
    %v965 = vld [vmem:[#allocation3 + $0x338] sm:$0xff]
    %v966 = vld [vmem:[#allocation3 + $0x340] sm:$0xff]
    %v967 = vld [vmem:[#allocation3 + $0x348] sm:$0xff]
    %v968 = vld [vmem:[#allocation3 + $0x350] sm:$0xff]
    %v969 = vld [vmem:[#allocation3 + $0x358] sm:$0xff]
    %v970 = vld [vmem:[#allocation3 + $0x360] sm:$0xff]
    %v971 = vld [vmem:[#allocation3 + $0x368] sm:$0xff]
    %v972 = vld [vmem:[#allocation3 + $0x370] sm:$0xff]
    %v973 = vld [vmem:[#allocation3 + $0x378] sm:$0xff]
    %v974 = vld [vmem:[#allocation3 + $0x380] sm:$0xff]
    %v975 = vld [vmem:[#allocation3 + $0x388] sm:$0xff]
    %v976 = vld [vmem:[#allocation3 + $0x390] sm:$0xff]
    %v977 = vld [vmem:[#allocation3 + $0x398] sm:$0xff]
    %v978 = vld [vmem:[#allocation3 + $0x3a0] sm:$0xff]
    %v979 = vld [vmem:[#allocation3 + $0x3a8] sm:$0xff]
    %v980 = vld [vmem:[#allocation3 + $0x3b0] sm:$0xff]
    %v981 = vld [vmem:[#allocation3 + $0x3b8] sm:$0xff]
    %v982 = vld [vmem:[#allocation3 + $0x3c0] sm:$0xff]
    %v983 = vld [vmem:[#allocation3 + $0x3c8] sm:$0xff]
    %v984 = vld [vmem:[#allocation3 + $0x3d0] sm:$0xff]
    %v985 = vld [vmem:[#allocation3 + $0x3d8] sm:$0xff]
    %v986 = vld [vmem:[#allocation3 + $0x3e0] sm:$0xff]
    %v987 = vld [vmem:[#allocation3 + $0x3e8] sm:$0xff]
    %v988 = vld [vmem:[#allocation3 + $0x3f0] sm:$0xff]
    %v989 = vld [vmem:[#allocation3 + $0x3f8] sm:$0xff]
    %v990 = vld [vmem:[%s8] sm:$0xff]
    %v991 = vld [vmem:[%s8 + $0x8] sm:$0xff]
    %v992 = vld [vmem:[%s8 + $0x10] sm:$0xff]
    %v993 = vld [vmem:[%s8 + $0x18] sm:$0xff]
    %v994 = vld [vmem:[%s8 + $0x20] sm:$0xff]
    %v995 = vld [vmem:[%s8 + $0x28] sm:$0xff]
    %v996 = vld [vmem:[%s8 + $0x30] sm:$0xff]
    %v997 = vld [vmem:[%s8 + $0x38] sm:$0xff]
    %v998 = vld [vmem:[%s8 + $0x40] sm:$0xff]
    %v999 = vld [vmem:[%s8 + $0x48] sm:$0xff]
    %v1000 = vld [vmem:[%s8 + $0x50] sm:$0xff]
    %v1001 = vld [vmem:[%s8 + $0x58] sm:$0xff]
    %v1002 = vld [vmem:[%s8 + $0x60] sm:$0xff]
    %v1003 = vld [vmem:[%s8 + $0x68] sm:$0xff]
    %v1004 = vld [vmem:[%s8 + $0x70] sm:$0xff]
    %v1005 = vld [vmem:[%s8 + $0x78] sm:$0xff]
    %v1006 = vld [vmem:[%s8 + $0x80] sm:$0xff]
    %v1007 = vld [vmem:[%s8 + $0x88] sm:$0xff]
    %v1008 = vld [vmem:[%s8 + $0x90] sm:$0xff]
    %v1009 = vld [vmem:[%s8 + $0x98] sm:$0xff]
    %v1010 = vld [vmem:[%s8 + $0xa0] sm:$0xff]
    %v1011 = vld [vmem:[%s8 + $0xa8] sm:$0xff]
    %v1012 = vld [vmem:[%s8 + $0xb0] sm:$0xff]
    %v1013 = vld [vmem:[%s8 + $0xb8] sm:$0xff]
    %v1014 = vld [vmem:[%s8 + $0xc0] sm:$0xff]
    %v1015 = vld [vmem:[%s8 + $0xc8] sm:$0xff]
    %v1016 = vld [vmem:[%s8 + $0xd0] sm:$0xff]
    %v1017 = vld [vmem:[%s8 + $0xd8] sm:$0xff]
    %v1018 = vld [vmem:[%s8 + $0xe0] sm:$0xff]
    %v1019 = vld [vmem:[%s8 + $0xe8] sm:$0xff]
    %v1020 = vld [vmem:[%s8 + $0xf0] sm:$0xff]
    %v1021 = vld [vmem:[%s8 + $0xf8] sm:$0xff]
    %v1022 = vld [vmem:[%s8 + $0x100] sm:$0xff]
    %v1023 = vld [vmem:[%s8 + $0x108] sm:$0xff]
    %v1024 = vld [vmem:[%s8 + $0x110] sm:$0xff]
    %v1025 = vld [vmem:[%s8 + $0x118] sm:$0xff]
    %v1026 = vld [vmem:[%s8 + $0x120] sm:$0xff]
    %v1027 = vld [vmem:[%s8 + $0x128] sm:$0xff]
    %v1028 = vld [vmem:[%s8 + $0x130] sm:$0xff]
    %v1029 = vld [vmem:[%s8 + $0x138] sm:$0xff]
    %v1030 = vld [vmem:[%s8 + $0x140] sm:$0xff]
    %v1031 = vld [vmem:[%s8 + $0x148] sm:$0xff]
    %v1032 = vld [vmem:[%s8 + $0x150] sm:$0xff]
    %v1033 = vld [vmem:[%s8 + $0x158] sm:$0xff]
    %v1034 = vld [vmem:[%s8 + $0x160] sm:$0xff]
    %v1035 = vld [vmem:[%s8 + $0x168] sm:$0xff]
    %v1036 = vld [vmem:[%s8 + $0x170] sm:$0xff]
    %v1037 = vld [vmem:[%s8 + $0x178] sm:$0xff]
    %v1038 = vld [vmem:[%s8 + $0x180] sm:$0xff]
    %v1039 = vld [vmem:[%s8 + $0x188] sm:$0xff]
    %v1040 = vld [vmem:[%s8 + $0x190] sm:$0xff]
    %v1041 = vld [vmem:[%s8 + $0x198] sm:$0xff]
    %v1042 = vld [vmem:[%s8 + $0x1a0] sm:$0xff]
    %v1043 = vld [vmem:[%s8 + $0x1a8] sm:$0xff]
    %v1044 = vld [vmem:[%s8 + $0x1b0] sm:$0xff]
    %v1045 = vld [vmem:[%s8 + $0x1b8] sm:$0xff]
    %v1046 = vld [vmem:[%s8 + $0x1c0] sm:$0xff]
    %v1047 = vld [vmem:[%s8 + $0x1c8] sm:$0xff]
    %v1048 = vld [vmem:[%s8 + $0x1d0] sm:$0xff]
    %v1049 = vld [vmem:[%s8 + $0x1d8] sm:$0xff]
    %v1050 = vld [vmem:[%s8 + $0x1e0] sm:$0xff]
    %v1051 = vld [vmem:[%s8 + $0x1e8] sm:$0xff]
    %v1052 = vld [vmem:[%s8 + $0x1f0] sm:$0xff]
    %v1053 = vld [vmem:[%s8 + $0x1f8] sm:$0xff]
    %1055 = vset.pattern.permute.xlu0 0
    %1056 = vperm.xlu0 %1055, %v990
    %v1057 = vpop.permute.xlu0 %1056
    %1060 = vset.pattern.permute.xlu0 0
    %1061 = vperm.xlu0 %1060, %v991
    %v1062 = vpop.permute.xlu0 %1061
    %1065 = vset.pattern.permute.xlu0 0
    %1066 = vperm.xlu0 %1065, %v992
    %v1067 = vpop.permute.xlu0 %1066
    %1070 = vset.pattern.permute.xlu0 0
    %1071 = vperm.xlu0 %1070, %v993
    %v1072 = vpop.permute.xlu0 %1071
    %1075 = vset.pattern.permute.xlu0 0
    %1076 = vperm.xlu0 %1075, %v994
    %v1077 = vpop.permute.xlu0 %1076
    %1080 = vset.pattern.permute.xlu0 0
    %1081 = vperm.xlu0 %1080, %v995
    %v1082 = vpop.permute.xlu0 %1081
    %1085 = vset.pattern.permute.xlu0 0
    %1086 = vperm.xlu0 %1085, %v996
    %v1087 = vpop.permute.xlu0 %1086
    %1090 = vset.pattern.permute.xlu0 0
    %1091 = vperm.xlu0 %1090, %v997
    %v1092 = vpop.permute.xlu0 %1091
    %1095 = vset.pattern.permute.xlu0 0
    %1096 = vperm.xlu0 %1095, %v998
    %v1097 = vpop.permute.xlu0 %1096
    %1100 = vset.pattern.permute.xlu0 0
    %1101 = vperm.xlu0 %1100, %v999
    %v1102 = vpop.permute.xlu0 %1101
    %1105 = vset.pattern.permute.xlu0 0
    %1106 = vperm.xlu0 %1105, %v1000
    %v1107 = vpop.permute.xlu0 %1106
    %1110 = vset.pattern.permute.xlu0 0
    %1111 = vperm.xlu0 %1110, %v1001
    %v1112 = vpop.permute.xlu0 %1111
    %1115 = vset.pattern.permute.xlu0 0
    %1116 = vperm.xlu0 %1115, %v1002
    %v1117 = vpop.permute.xlu0 %1116
    %1120 = vset.pattern.permute.xlu0 0
    %1121 = vperm.xlu0 %1120, %v1003
    %v1122 = vpop.permute.xlu0 %1121
    %1125 = vset.pattern.permute.xlu0 0
    %1126 = vperm.xlu0 %1125, %v1004
    %v1127 = vpop.permute.xlu0 %1126
    %1130 = vset.pattern.permute.xlu0 0
    %1131 = vperm.xlu0 %1130, %v1005
    %v1132 = vpop.permute.xlu0 %1131
    %1135 = vset.pattern.permute.xlu0 0
    %1136 = vperm.xlu0 %1135, %v1006
    %v1137 = vpop.permute.xlu0 %1136
    %1140 = vset.pattern.permute.xlu0 0
    %1141 = vperm.xlu0 %1140, %v1007
    %v1142 = vpop.permute.xlu0 %1141
    %1145 = vset.pattern.permute.xlu0 0
    %1146 = vperm.xlu0 %1145, %v1008
    %v1147 = vpop.permute.xlu0 %1146
    %1150 = vset.pattern.permute.xlu0 0
    %1151 = vperm.xlu0 %1150, %v1009
    %v1152 = vpop.permute.xlu0 %1151
    %1155 = vset.pattern.permute.xlu0 0
    %1156 = vperm.xlu0 %1155, %v1010
    %v1157 = vpop.permute.xlu0 %1156
    %1160 = vset.pattern.permute.xlu0 0
    %1161 = vperm.xlu0 %1160, %v1011
    %v1162 = vpop.permute.xlu0 %1161
    %1165 = vset.pattern.permute.xlu0 0
    %1166 = vperm.xlu0 %1165, %v1012
    %v1167 = vpop.permute.xlu0 %1166
    %1170 = vset.pattern.permute.xlu0 0
    %1171 = vperm.xlu0 %1170, %v1013
    %v1172 = vpop.permute.xlu0 %1171
    %1175 = vset.pattern.permute.xlu0 0
    %1176 = vperm.xlu0 %1175, %v1014
    %v1177 = vpop.permute.xlu0 %1176
    %1180 = vset.pattern.permute.xlu0 0
    %1181 = vperm.xlu0 %1180, %v1015
    %v1182 = vpop.permute.xlu0 %1181
    %1185 = vset.pattern.permute.xlu0 0
    %1186 = vperm.xlu0 %1185, %v1016
    %v1187 = vpop.permute.xlu0 %1186
    %1190 = vset.pattern.permute.xlu0 0
    %1191 = vperm.xlu0 %1190, %v1017
    %v1192 = vpop.permute.xlu0 %1191
    %1195 = vset.pattern.permute.xlu0 0
    %1196 = vperm.xlu0 %1195, %v1018
    %v1197 = vpop.permute.xlu0 %1196
    %1200 = vset.pattern.permute.xlu0 0
    %1201 = vperm.xlu0 %1200, %v1019
    %v1202 = vpop.permute.xlu0 %1201
    %1205 = vset.pattern.permute.xlu0 0
    %1206 = vperm.xlu0 %1205, %v1020
    %v1207 = vpop.permute.xlu0 %1206
    %1210 = vset.pattern.permute.xlu0 0
    %1211 = vperm.xlu0 %1210, %v1021
    %v1212 = vpop.permute.xlu0 %1211
    %1215 = vset.pattern.permute.xlu0 0
    %1216 = vperm.xlu0 %1215, %v1022
    %v1217 = vpop.permute.xlu0 %1216
    %1220 = vset.pattern.permute.xlu0 0
    %1221 = vperm.xlu0 %1220, %v1023
    %v1222 = vpop.permute.xlu0 %1221
    %1225 = vset.pattern.permute.xlu0 0
    %1226 = vperm.xlu0 %1225, %v1024
    %v1227 = vpop.permute.xlu0 %1226
    %1230 = vset.pattern.permute.xlu0 0
    %1231 = vperm.xlu0 %1230, %v1025
    %v1232 = vpop.permute.xlu0 %1231
    %1235 = vset.pattern.permute.xlu0 0
    %1236 = vperm.xlu0 %1235, %v1026
    %v1237 = vpop.permute.xlu0 %1236
    %1240 = vset.pattern.permute.xlu0 0
    %1241 = vperm.xlu0 %1240, %v1027
    %v1242 = vpop.permute.xlu0 %1241
    %1245 = vset.pattern.permute.xlu0 0
    %1246 = vperm.xlu0 %1245, %v1028
    %v1247 = vpop.permute.xlu0 %1246
    %1250 = vset.pattern.permute.xlu0 0
    %1251 = vperm.xlu0 %1250, %v1029
    %v1252 = vpop.permute.xlu0 %1251
    %1255 = vset.pattern.permute.xlu0 0
    %1256 = vperm.xlu0 %1255, %v1030
    %v1257 = vpop.permute.xlu0 %1256
    %1260 = vset.pattern.permute.xlu0 0
    %1261 = vperm.xlu0 %1260, %v1031
    %v1262 = vpop.permute.xlu0 %1261
    %1265 = vset.pattern.permute.xlu0 0
    %1266 = vperm.xlu0 %1265, %v1032
    %v1267 = vpop.permute.xlu0 %1266
    %1270 = vset.pattern.permute.xlu0 0
    %1271 = vperm.xlu0 %1270, %v1033
    %v1272 = vpop.permute.xlu0 %1271
    %1275 = vset.pattern.permute.xlu0 0
    %1276 = vperm.xlu0 %1275, %v1034
    %v1277 = vpop.permute.xlu0 %1276
    %1280 = vset.pattern.permute.xlu0 0
    %1281 = vperm.xlu0 %1280, %v1035
    %v1282 = vpop.permute.xlu0 %1281
    %1285 = vset.pattern.permute.xlu0 0
    %1286 = vperm.xlu0 %1285, %v1036
    %v1287 = vpop.permute.xlu0 %1286
    %1290 = vset.pattern.permute.xlu0 0
    %1291 = vperm.xlu0 %1290, %v1037
    %v1292 = vpop.permute.xlu0 %1291
    %1295 = vset.pattern.permute.xlu0 0
    %1296 = vperm.xlu0 %1295, %v1038
    %v1297 = vpop.permute.xlu0 %1296
    %1300 = vset.pattern.permute.xlu0 0
    %1301 = vperm.xlu0 %1300, %v1039
    %v1302 = vpop.permute.xlu0 %1301
    %1305 = vset.pattern.permute.xlu0 0
    %1306 = vperm.xlu0 %1305, %v1040
    %v1307 = vpop.permute.xlu0 %1306
    %1310 = vset.pattern.permute.xlu0 0
    %1311 = vperm.xlu0 %1310, %v1041
    %v1312 = vpop.permute.xlu0 %1311
    %1315 = vset.pattern.permute.xlu0 0
    %1316 = vperm.xlu0 %1315, %v1042
    %v1317 = vpop.permute.xlu0 %1316
    %1320 = vset.pattern.permute.xlu0 0
    %1321 = vperm.xlu0 %1320, %v1043
    %v1322 = vpop.permute.xlu0 %1321
    %1325 = vset.pattern.permute.xlu0 0
    %1326 = vperm.xlu0 %1325, %v1044
    %v1327 = vpop.permute.xlu0 %1326
    %1330 = vset.pattern.permute.xlu0 0
    %1331 = vperm.xlu0 %1330, %v1045
    %v1332 = vpop.permute.xlu0 %1331
    %1335 = vset.pattern.permute.xlu0 0
    %1336 = vperm.xlu0 %1335, %v1046
    %v1337 = vpop.permute.xlu0 %1336
    %1340 = vset.pattern.permute.xlu0 0
    %1341 = vperm.xlu0 %1340, %v1047
    %v1342 = vpop.permute.xlu0 %1341
    %1345 = vset.pattern.permute.xlu0 0
    %1346 = vperm.xlu0 %1345, %v1048
    %v1347 = vpop.permute.xlu0 %1346
    %1350 = vset.pattern.permute.xlu0 0
    %1351 = vperm.xlu0 %1350, %v1049
    %v1352 = vpop.permute.xlu0 %1351
    %1355 = vset.pattern.permute.xlu0 0
    %1356 = vperm.xlu0 %1355, %v1050
    %v1357 = vpop.permute.xlu0 %1356
    %1360 = vset.pattern.permute.xlu0 0
    %1361 = vperm.xlu0 %1360, %v1051
    %v1362 = vpop.permute.xlu0 %1361
    %1365 = vset.pattern.permute.xlu0 0
    %1366 = vperm.xlu0 %1365, %v1052
    %v1367 = vpop.permute.xlu0 %1366
    %1370 = vset.pattern.permute.xlu0 0
    %1371 = vperm.xlu0 %1370, %v1053
    %v1372 = vpop.permute.xlu0 %1371
    %1374 = vmatpush.msra.mxu0 %v845
    %1375 = vmatpush.msra.mxu0 %v844
    %1376 = vmatpush.msra.mxu0 %v843
    %1377 = vmatpush.msra.mxu0 %v842
    %1378 = vmatpush.msra.mxu0 %v841
    %1379 = vmatpush.msra.mxu0 %v840
    %1380 = vmatpush.msra.mxu0 %v839
    %1381 = vmatpush.msra.mxu0 %v838
    %1382 = vmatpush.msra.mxu0 %v837
    %1383 = vmatpush.msra.mxu0 %v836
    %1384 = vmatpush.msra.mxu0 %v835
    %1385 = vmatpush.msra.mxu0 %v834
    %1386 = vmatpush.msra.mxu0 %v833
    %1387 = vmatpush.msra.mxu0 %v832
    %1388 = vmatpush.msra.mxu0 %v831
    %1389 = vmatpush.msra.mxu0 %v830
    %1390 = vmatmul.f32.gmra.mxu0 %v862
    %v1391 = vpop.f32.mrf.mxu0
    %v1392 = vadd.f32 %v1057, %v1391
    %1393 = vmatmul.f32.gmra.mxu0 %v864
    %v1394 = vpop.f32.mrf.mxu0
    %v1395 = vadd.f32 %v1062, %v1394
    %1396 = vmatmul.f32.gmra.mxu0 %v866
    %v1397 = vpop.f32.mrf.mxu0
    %v1398 = vadd.f32 %v1067, %v1397
    %1399 = vmatmul.f32.gmra.mxu0 %v868
    %v1400 = vpop.f32.mrf.mxu0
    %v1401 = vadd.f32 %v1072, %v1400
    %1402 = vmatmul.f32.gmra.mxu0 %v870
    %v1403 = vpop.f32.mrf.mxu0
    %v1404 = vadd.f32 %v1077, %v1403
    %1405 = vmatmul.f32.gmra.mxu0 %v872
    %v1406 = vpop.f32.mrf.mxu0
    %v1407 = vadd.f32 %v1082, %v1406
    %1408 = vmatmul.f32.gmra.mxu0 %v874
    %v1409 = vpop.f32.mrf.mxu0
    %v1410 = vadd.f32 %v1087, %v1409
    %1411 = vmatmul.f32.gmra.mxu0 %v876
    %v1412 = vpop.f32.mrf.mxu0
    %v1413 = vadd.f32 %v1092, %v1412
    %1414 = vmatmul.f32.gmra.mxu0 %v878
    %v1415 = vpop.f32.mrf.mxu0
    %v1416 = vadd.f32 %v1097, %v1415
    %1417 = vmatmul.f32.gmra.mxu0 %v880
    %v1418 = vpop.f32.mrf.mxu0
    %v1419 = vadd.f32 %v1102, %v1418
    %1420 = vmatmul.f32.gmra.mxu0 %v882
    %v1421 = vpop.f32.mrf.mxu0
    %v1422 = vadd.f32 %v1107, %v1421
    %1423 = vmatmul.f32.gmra.mxu0 %v884
    %v1424 = vpop.f32.mrf.mxu0
    %v1425 = vadd.f32 %v1112, %v1424
    %1426 = vmatmul.f32.gmra.mxu0 %v886
    %v1427 = vpop.f32.mrf.mxu0
    %v1428 = vadd.f32 %v1117, %v1427
    %1429 = vmatmul.f32.gmra.mxu0 %v888
    %v1430 = vpop.f32.mrf.mxu0
    %v1431 = vadd.f32 %v1122, %v1430
    %1432 = vmatmul.f32.gmra.mxu0 %v890
    %v1433 = vpop.f32.mrf.mxu0
    %v1434 = vadd.f32 %v1127, %v1433
    %1435 = vmatmul.f32.gmra.mxu0 %v892
    %v1436 = vpop.f32.mrf.mxu0
    %v1437 = vadd.f32 %v1132, %v1436
    %1438 = vmatmul.f32.gmra.mxu0 %v894
    %v1439 = vpop.f32.mrf.mxu0
    %v1440 = vadd.f32 %v1137, %v1439
    %1441 = vmatmul.f32.gmra.mxu0 %v896
    %v1442 = vpop.f32.mrf.mxu0
    %v1443 = vadd.f32 %v1142, %v1442
    %1444 = vmatmul.f32.gmra.mxu0 %v898
    %v1445 = vpop.f32.mrf.mxu0
    %v1446 = vadd.f32 %v1147, %v1445
    %1447 = vmatmul.f32.gmra.mxu0 %v900
    %v1448 = vpop.f32.mrf.mxu0
    %v1449 = vadd.f32 %v1152, %v1448
    %1450 = vmatmul.f32.gmra.mxu0 %v902
    %v1451 = vpop.f32.mrf.mxu0
    %v1452 = vadd.f32 %v1157, %v1451
    %1453 = vmatmul.f32.gmra.mxu0 %v904
    %v1454 = vpop.f32.mrf.mxu0
    %v1455 = vadd.f32 %v1162, %v1454
    %1456 = vmatmul.f32.gmra.mxu0 %v906
    %v1457 = vpop.f32.mrf.mxu0
    %v1458 = vadd.f32 %v1167, %v1457
    %1459 = vmatmul.f32.gmra.mxu0 %v908
    %v1460 = vpop.f32.mrf.mxu0
    %v1461 = vadd.f32 %v1172, %v1460
    %1462 = vmatmul.f32.gmra.mxu0 %v910
    %v1463 = vpop.f32.mrf.mxu0
    %v1464 = vadd.f32 %v1177, %v1463
    %1465 = vmatmul.f32.gmra.mxu0 %v912
    %v1466 = vpop.f32.mrf.mxu0
    %v1467 = vadd.f32 %v1182, %v1466
    %1468 = vmatmul.f32.gmra.mxu0 %v914
    %v1469 = vpop.f32.mrf.mxu0
    %v1470 = vadd.f32 %v1187, %v1469
    %1471 = vmatmul.f32.gmra.mxu0 %v916
    %v1472 = vpop.f32.mrf.mxu0
    %v1473 = vadd.f32 %v1192, %v1472
    %1474 = vmatmul.f32.gmra.mxu0 %v918
    %v1475 = vpop.f32.mrf.mxu0
    %v1476 = vadd.f32 %v1197, %v1475
    %1477 = vmatmul.f32.gmra.mxu0 %v920
    %v1478 = vpop.f32.mrf.mxu0
    %v1479 = vadd.f32 %v1202, %v1478
    %1480 = vmatmul.f32.gmra.mxu0 %v922
    %v1481 = vpop.f32.mrf.mxu0
    %v1482 = vadd.f32 %v1207, %v1481
    %1483 = vmatmul.f32.gmra.mxu0 %v924
    %v1484 = vpop.f32.mrf.mxu0
    %v1485 = vadd.f32 %v1212, %v1484
    %1486 = vmatmul.f32.gmra.mxu0 %v926
    %v1487 = vpop.f32.mrf.mxu0
    %v1488 = vadd.f32 %v1217, %v1487
    %1489 = vmatmul.f32.gmra.mxu0 %v928
    %v1490 = vpop.f32.mrf.mxu0
    %v1491 = vadd.f32 %v1222, %v1490
    %1492 = vmatmul.f32.gmra.mxu0 %v930
    %v1493 = vpop.f32.mrf.mxu0
    %v1494 = vadd.f32 %v1227, %v1493
    %1495 = vmatmul.f32.gmra.mxu0 %v932
    %v1496 = vpop.f32.mrf.mxu0
    %v1497 = vadd.f32 %v1232, %v1496
    %1498 = vmatmul.f32.gmra.mxu0 %v934
    %v1499 = vpop.f32.mrf.mxu0
    %v1500 = vadd.f32 %v1237, %v1499
    %1501 = vmatmul.f32.gmra.mxu0 %v936
    %v1502 = vpop.f32.mrf.mxu0
    %v1503 = vadd.f32 %v1242, %v1502
    %1504 = vmatmul.f32.gmra.mxu0 %v938
    %v1505 = vpop.f32.mrf.mxu0
    %v1506 = vadd.f32 %v1247, %v1505
    %1507 = vmatmul.f32.gmra.mxu0 %v940
    %v1508 = vpop.f32.mrf.mxu0
    %v1509 = vadd.f32 %v1252, %v1508
    %1510 = vmatmul.f32.gmra.mxu0 %v942
    %v1511 = vpop.f32.mrf.mxu0
    %v1512 = vadd.f32 %v1257, %v1511
    %1513 = vmatmul.f32.gmra.mxu0 %v944
    %v1514 = vpop.f32.mrf.mxu0
    %v1515 = vadd.f32 %v1262, %v1514
    %1516 = vmatmul.f32.gmra.mxu0 %v946
    %v1517 = vpop.f32.mrf.mxu0
    %v1518 = vadd.f32 %v1267, %v1517
    %1519 = vmatmul.f32.gmra.mxu0 %v948
    %v1520 = vpop.f32.mrf.mxu0
    %v1521 = vadd.f32 %v1272, %v1520
    %1522 = vmatmul.f32.gmra.mxu0 %v950
    %v1523 = vpop.f32.mrf.mxu0
    %v1524 = vadd.f32 %v1277, %v1523
    %1525 = vmatmul.f32.gmra.mxu0 %v952
    %v1526 = vpop.f32.mrf.mxu0
    %v1527 = vadd.f32 %v1282, %v1526
    %1528 = vmatmul.f32.gmra.mxu0 %v954
    %v1529 = vpop.f32.mrf.mxu0
    %v1530 = vadd.f32 %v1287, %v1529
    %1531 = vmatmul.f32.gmra.mxu0 %v956
    %v1532 = vpop.f32.mrf.mxu0
    %v1533 = vadd.f32 %v1292, %v1532
    %1534 = vmatmul.f32.gmra.mxu0 %v958
    %v1535 = vpop.f32.mrf.mxu0
    %v1536 = vadd.f32 %v1297, %v1535
    %1537 = vmatmul.f32.gmra.mxu0 %v960
    %v1538 = vpop.f32.mrf.mxu0
    %v1539 = vadd.f32 %v1302, %v1538
    %1540 = vmatmul.f32.gmra.mxu0 %v962
    %v1541 = vpop.f32.mrf.mxu0
    %v1542 = vadd.f32 %v1307, %v1541
    %1543 = vmatmul.f32.gmra.mxu0 %v964
    %v1544 = vpop.f32.mrf.mxu0
    %v1545 = vadd.f32 %v1312, %v1544
    %1546 = vmatmul.f32.gmra.mxu0 %v966
    %v1547 = vpop.f32.mrf.mxu0
    %v1548 = vadd.f32 %v1317, %v1547
    %1549 = vmatmul.f32.gmra.mxu0 %v968
    %v1550 = vpop.f32.mrf.mxu0
    %v1551 = vadd.f32 %v1322, %v1550
    %1552 = vmatmul.f32.gmra.mxu0 %v970
    %v1553 = vpop.f32.mrf.mxu0
    %v1554 = vadd.f32 %v1327, %v1553
    %1555 = vmatmul.f32.gmra.mxu0 %v972
    %v1556 = vpop.f32.mrf.mxu0
    %v1557 = vadd.f32 %v1332, %v1556
    %1558 = vmatmul.f32.gmra.mxu0 %v974
    %v1559 = vpop.f32.mrf.mxu0
    %v1560 = vadd.f32 %v1337, %v1559
    %1561 = vmatmul.f32.gmra.mxu0 %v976
    %v1562 = vpop.f32.mrf.mxu0
    %v1563 = vadd.f32 %v1342, %v1562
    %1564 = vmatmul.f32.gmra.mxu0 %v978
    %v1565 = vpop.f32.mrf.mxu0
    %v1566 = vadd.f32 %v1347, %v1565
    %1567 = vmatmul.f32.gmra.mxu0 %v980
    %v1568 = vpop.f32.mrf.mxu0
    %v1569 = vadd.f32 %v1352, %v1568
    %1570 = vmatmul.f32.gmra.mxu0 %v982
    %v1571 = vpop.f32.mrf.mxu0
    %v1572 = vadd.f32 %v1357, %v1571
    %1573 = vmatmul.f32.gmra.mxu0 %v984
    %v1574 = vpop.f32.mrf.mxu0
    %v1575 = vadd.f32 %v1362, %v1574
    %1576 = vmatmul.f32.gmra.mxu0 %v986
    %v1577 = vpop.f32.mrf.mxu0
    %v1578 = vadd.f32 %v1367, %v1577
    %1579 = vmatmul.f32.gmra.mxu0 %v988
    %v1580 = vpop.f32.mrf.mxu0
    %v1581 = vadd.f32 %v1372, %v1580
    %1582 = vdwg.mxu0
    %1583 = vmatpush.msra.mxu0 %v861
    %1584 = vmatpush.msra.mxu0 %v860
    %1585 = vmatpush.msra.mxu0 %v859
    %1586 = vmatpush.msra.mxu0 %v858
    %1587 = vmatpush.msra.mxu0 %v857
    %1588 = vmatpush.msra.mxu0 %v856
    %1589 = vmatpush.msra.mxu0 %v855
    %1590 = vmatpush.msra.mxu0 %v854
    %1591 = vmatpush.msra.mxu0 %v853
    %1592 = vmatpush.msra.mxu0 %v852
    %1593 = vmatpush.msra.mxu0 %v851
    %1594 = vmatpush.msra.mxu0 %v850
    %1595 = vmatpush.msra.mxu0 %v849
    %1596 = vmatpush.msra.mxu0 %v848
    %1597 = vmatpush.msra.mxu0 %v847
    %1598 = vmatpush.msra.mxu0 %v846
    %1599 = vmatmul.f32.gmra.mxu0 %v863
    %v1600 = vpop.f32.mrf.mxu0
    %v1601 = vadd.f32 %v1392, %v1600
    %1602 = vmatmul.f32.gmra.mxu0 %v865
    %v1603 = vpop.f32.mrf.mxu0
    %v1604 = vadd.f32 %v1395, %v1603
    %1605 = vmatmul.f32.gmra.mxu0 %v867
    %v1606 = vpop.f32.mrf.mxu0
    %v1607 = vadd.f32 %v1398, %v1606
    %1608 = vmatmul.f32.gmra.mxu0 %v869
    %v1609 = vpop.f32.mrf.mxu0
    %v1610 = vadd.f32 %v1401, %v1609
    %1611 = vmatmul.f32.gmra.mxu0 %v871
    %v1612 = vpop.f32.mrf.mxu0
    %v1613 = vadd.f32 %v1404, %v1612
    %1614 = vmatmul.f32.gmra.mxu0 %v873
    %v1615 = vpop.f32.mrf.mxu0
    %v1616 = vadd.f32 %v1407, %v1615
    %1617 = vmatmul.f32.gmra.mxu0 %v875
    %v1618 = vpop.f32.mrf.mxu0
    %v1619 = vadd.f32 %v1410, %v1618
    %1620 = vmatmul.f32.gmra.mxu0 %v877
    %v1621 = vpop.f32.mrf.mxu0
    %v1622 = vadd.f32 %v1413, %v1621
    %1623 = vmatmul.f32.gmra.mxu0 %v879
    %v1624 = vpop.f32.mrf.mxu0
    %v1625 = vadd.f32 %v1416, %v1624
    %1626 = vmatmul.f32.gmra.mxu0 %v881
    %v1627 = vpop.f32.mrf.mxu0
    %v1628 = vadd.f32 %v1419, %v1627
    %1629 = vmatmul.f32.gmra.mxu0 %v883
    %v1630 = vpop.f32.mrf.mxu0
    %v1631 = vadd.f32 %v1422, %v1630
    %1632 = vmatmul.f32.gmra.mxu0 %v885
    %v1633 = vpop.f32.mrf.mxu0
    %v1634 = vadd.f32 %v1425, %v1633
    %1635 = vmatmul.f32.gmra.mxu0 %v887
    %v1636 = vpop.f32.mrf.mxu0
    %v1637 = vadd.f32 %v1428, %v1636
    %1638 = vmatmul.f32.gmra.mxu0 %v889
    %v1639 = vpop.f32.mrf.mxu0
    %v1640 = vadd.f32 %v1431, %v1639
    %1641 = vmatmul.f32.gmra.mxu0 %v891
    %v1642 = vpop.f32.mrf.mxu0
    %v1643 = vadd.f32 %v1434, %v1642
    %1644 = vmatmul.f32.gmra.mxu0 %v893
    %v1645 = vpop.f32.mrf.mxu0
    %v1646 = vadd.f32 %v1437, %v1645
    %1647 = vmatmul.f32.gmra.mxu0 %v895
    %v1648 = vpop.f32.mrf.mxu0
    %v1649 = vadd.f32 %v1440, %v1648
    %1650 = vmatmul.f32.gmra.mxu0 %v897
    %v1651 = vpop.f32.mrf.mxu0
    %v1652 = vadd.f32 %v1443, %v1651
    %1653 = vmatmul.f32.gmra.mxu0 %v899
    %v1654 = vpop.f32.mrf.mxu0
    %v1655 = vadd.f32 %v1446, %v1654
    %1656 = vmatmul.f32.gmra.mxu0 %v901
    %v1657 = vpop.f32.mrf.mxu0
    %v1658 = vadd.f32 %v1449, %v1657
    %1659 = vmatmul.f32.gmra.mxu0 %v903
    %v1660 = vpop.f32.mrf.mxu0
    %v1661 = vadd.f32 %v1452, %v1660
    %1662 = vmatmul.f32.gmra.mxu0 %v905
    %v1663 = vpop.f32.mrf.mxu0
    %v1664 = vadd.f32 %v1455, %v1663
    %1665 = vmatmul.f32.gmra.mxu0 %v907
    %v1666 = vpop.f32.mrf.mxu0
    %v1667 = vadd.f32 %v1458, %v1666
    %1668 = vmatmul.f32.gmra.mxu0 %v909
    %v1669 = vpop.f32.mrf.mxu0
    %v1670 = vadd.f32 %v1461, %v1669
    %1671 = vmatmul.f32.gmra.mxu0 %v911
    %v1672 = vpop.f32.mrf.mxu0
    %v1673 = vadd.f32 %v1464, %v1672
    %1674 = vmatmul.f32.gmra.mxu0 %v913
    %v1675 = vpop.f32.mrf.mxu0
    %v1676 = vadd.f32 %v1467, %v1675
    %1677 = vmatmul.f32.gmra.mxu0 %v915
    %v1678 = vpop.f32.mrf.mxu0
    %v1679 = vadd.f32 %v1470, %v1678
    %1680 = vmatmul.f32.gmra.mxu0 %v917
    %v1681 = vpop.f32.mrf.mxu0
    %v1682 = vadd.f32 %v1473, %v1681
    %1683 = vmatmul.f32.gmra.mxu0 %v919
    %v1684 = vpop.f32.mrf.mxu0
    %v1685 = vadd.f32 %v1476, %v1684
    %1686 = vmatmul.f32.gmra.mxu0 %v921
    %v1687 = vpop.f32.mrf.mxu0
    %v1688 = vadd.f32 %v1479, %v1687
    %1689 = vmatmul.f32.gmra.mxu0 %v923
    %v1690 = vpop.f32.mrf.mxu0
    %v1691 = vadd.f32 %v1482, %v1690
    %1692 = vmatmul.f32.gmra.mxu0 %v925
    %v1693 = vpop.f32.mrf.mxu0
    %v1694 = vadd.f32 %v1485, %v1693
    %1695 = vmatmul.f32.gmra.mxu0 %v927
    %v1696 = vpop.f32.mrf.mxu0
    %v1697 = vadd.f32 %v1488, %v1696
    %1698 = vmatmul.f32.gmra.mxu0 %v929
    %v1699 = vpop.f32.mrf.mxu0
    %v1700 = vadd.f32 %v1491, %v1699
    %1701 = vmatmul.f32.gmra.mxu0 %v931
    %v1702 = vpop.f32.mrf.mxu0
    %v1703 = vadd.f32 %v1494, %v1702
    %1704 = vmatmul.f32.gmra.mxu0 %v933
    %v1705 = vpop.f32.mrf.mxu0
    %v1706 = vadd.f32 %v1497, %v1705
    %1707 = vmatmul.f32.gmra.mxu0 %v935
    %v1708 = vpop.f32.mrf.mxu0
    %v1709 = vadd.f32 %v1500, %v1708
    %1710 = vmatmul.f32.gmra.mxu0 %v937
    %v1711 = vpop.f32.mrf.mxu0
    %v1712 = vadd.f32 %v1503, %v1711
    %1713 = vmatmul.f32.gmra.mxu0 %v939
    %v1714 = vpop.f32.mrf.mxu0
    %v1715 = vadd.f32 %v1506, %v1714
    %1716 = vmatmul.f32.gmra.mxu0 %v941
    %v1717 = vpop.f32.mrf.mxu0
    %v1718 = vadd.f32 %v1509, %v1717
    %1719 = vmatmul.f32.gmra.mxu0 %v943
    %v1720 = vpop.f32.mrf.mxu0
    %v1721 = vadd.f32 %v1512, %v1720
    %1722 = vmatmul.f32.gmra.mxu0 %v945
    %v1723 = vpop.f32.mrf.mxu0
    %v1724 = vadd.f32 %v1515, %v1723
    %1725 = vmatmul.f32.gmra.mxu0 %v947
    %v1726 = vpop.f32.mrf.mxu0
    %v1727 = vadd.f32 %v1518, %v1726
    %1728 = vmatmul.f32.gmra.mxu0 %v949
    %v1729 = vpop.f32.mrf.mxu0
    %v1730 = vadd.f32 %v1521, %v1729
    %1731 = vmatmul.f32.gmra.mxu0 %v951
    %v1732 = vpop.f32.mrf.mxu0
    %v1733 = vadd.f32 %v1524, %v1732
    %1734 = vmatmul.f32.gmra.mxu0 %v953
    %v1735 = vpop.f32.mrf.mxu0
    %v1736 = vadd.f32 %v1527, %v1735
    %1737 = vmatmul.f32.gmra.mxu0 %v955
    %v1738 = vpop.f32.mrf.mxu0
    %v1739 = vadd.f32 %v1530, %v1738
    %1740 = vmatmul.f32.gmra.mxu0 %v957
    %v1741 = vpop.f32.mrf.mxu0
    %v1742 = vadd.f32 %v1533, %v1741
    %1743 = vmatmul.f32.gmra.mxu0 %v959
    %v1744 = vpop.f32.mrf.mxu0
    %v1745 = vadd.f32 %v1536, %v1744
    %1746 = vmatmul.f32.gmra.mxu0 %v961
    %v1747 = vpop.f32.mrf.mxu0
    %v1748 = vadd.f32 %v1539, %v1747
    %1749 = vmatmul.f32.gmra.mxu0 %v963
    %v1750 = vpop.f32.mrf.mxu0
    %v1751 = vadd.f32 %v1542, %v1750
    %1752 = vmatmul.f32.gmra.mxu0 %v965
    %v1753 = vpop.f32.mrf.mxu0
    %v1754 = vadd.f32 %v1545, %v1753
    %1755 = vmatmul.f32.gmra.mxu0 %v967
    %v1756 = vpop.f32.mrf.mxu0
    %v1757 = vadd.f32 %v1548, %v1756
    %1758 = vmatmul.f32.gmra.mxu0 %v969
    %v1759 = vpop.f32.mrf.mxu0
    %v1760 = vadd.f32 %v1551, %v1759
    %1761 = vmatmul.f32.gmra.mxu0 %v971
    %v1762 = vpop.f32.mrf.mxu0
    %v1763 = vadd.f32 %v1554, %v1762
    %1764 = vmatmul.f32.gmra.mxu0 %v973
    %v1765 = vpop.f32.mrf.mxu0
    %v1766 = vadd.f32 %v1557, %v1765
    %1767 = vmatmul.f32.gmra.mxu0 %v975
    %v1768 = vpop.f32.mrf.mxu0
    %v1769 = vadd.f32 %v1560, %v1768
    %1770 = vmatmul.f32.gmra.mxu0 %v977
    %v1771 = vpop.f32.mrf.mxu0
    %v1772 = vadd.f32 %v1563, %v1771
    %1773 = vmatmul.f32.gmra.mxu0 %v979
    %v1774 = vpop.f32.mrf.mxu0
    %v1775 = vadd.f32 %v1566, %v1774
    %1776 = vmatmul.f32.gmra.mxu0 %v981
    %v1777 = vpop.f32.mrf.mxu0
    %v1778 = vadd.f32 %v1569, %v1777
    %1779 = vmatmul.f32.gmra.mxu0 %v983
    %v1780 = vpop.f32.mrf.mxu0
    %v1781 = vadd.f32 %v1572, %v1780
    %1782 = vmatmul.f32.gmra.mxu0 %v985
    %v1783 = vpop.f32.mrf.mxu0
    %v1784 = vadd.f32 %v1575, %v1783
    %1785 = vmatmul.f32.gmra.mxu0 %v987
    %v1786 = vpop.f32.mrf.mxu0
    %v1787 = vadd.f32 %v1578, %v1786
    %1788 = vmatmul.f32.gmra.mxu0 %v989
    %v1789 = vpop.f32.mrf.mxu0
    %v1790 = vadd.f32 %v1581, %v1789
    %1791 = vdwg.mxu0
    %v1792 = vmax.f32 %v1601, 0.0
    %v1793 = vmax.f32 %v1604, 0.0
    %v1794 = vmax.f32 %v1607, 0.0
    %v1795 = vmax.f32 %v1610, 0.0
    %v1796 = vmax.f32 %v1613, 0.0
    %v1797 = vmax.f32 %v1616, 0.0
    %v1798 = vmax.f32 %v1619, 0.0
    %v1799 = vmax.f32 %v1622, 0.0
    %v1800 = vmax.f32 %v1625, 0.0
    %v1801 = vmax.f32 %v1628, 0.0
    %v1802 = vmax.f32 %v1631, 0.0
    %v1803 = vmax.f32 %v1634, 0.0
    %v1804 = vmax.f32 %v1637, 0.0
    %v1805 = vmax.f32 %v1640, 0.0
    %v1806 = vmax.f32 %v1643, 0.0
    %v1807 = vmax.f32 %v1646, 0.0
    %v1808 = vmax.f32 %v1649, 0.0
    %v1809 = vmax.f32 %v1652, 0.0
    %v1810 = vmax.f32 %v1655, 0.0
    %v1811 = vmax.f32 %v1658, 0.0
    %v1812 = vmax.f32 %v1661, 0.0
    %v1813 = vmax.f32 %v1664, 0.0
    %v1814 = vmax.f32 %v1667, 0.0
    %v1815 = vmax.f32 %v1670, 0.0
    %v1816 = vmax.f32 %v1673, 0.0
    %v1817 = vmax.f32 %v1676, 0.0
    %v1818 = vmax.f32 %v1679, 0.0
    %v1819 = vmax.f32 %v1682, 0.0
    %v1820 = vmax.f32 %v1685, 0.0
    %v1821 = vmax.f32 %v1688, 0.0
    %v1822 = vmax.f32 %v1691, 0.0
    %v1823 = vmax.f32 %v1694, 0.0
    %v1824 = vmax.f32 %v1697, 0.0
    %v1825 = vmax.f32 %v1700, 0.0
    %v1826 = vmax.f32 %v1703, 0.0
    %v1827 = vmax.f32 %v1706, 0.0
    %v1828 = vmax.f32 %v1709, 0.0
    %v1829 = vmax.f32 %v1712, 0.0
    %v1830 = vmax.f32 %v1715, 0.0
    %v1831 = vmax.f32 %v1718, 0.0
    %v1832 = vmax.f32 %v1721, 0.0
    %v1833 = vmax.f32 %v1724, 0.0
    %v1834 = vmax.f32 %v1727, 0.0
    %v1835 = vmax.f32 %v1730, 0.0
    %v1836 = vmax.f32 %v1733, 0.0
    %v1837 = vmax.f32 %v1736, 0.0
    %v1838 = vmax.f32 %v1739, 0.0
    %v1839 = vmax.f32 %v1742, 0.0
    %v1840 = vmax.f32 %v1745, 0.0
    %v1841 = vmax.f32 %v1748, 0.0
    %v1842 = vmax.f32 %v1751, 0.0
    %v1843 = vmax.f32 %v1754, 0.0
    %v1844 = vmax.f32 %v1757, 0.0
    %v1845 = vmax.f32 %v1760, 0.0
    %v1846 = vmax.f32 %v1763, 0.0
    %v1847 = vmax.f32 %v1766, 0.0
    %v1848 = vmax.f32 %v1769, 0.0
    %v1849 = vmax.f32 %v1772, 0.0
    %v1850 = vmax.f32 %v1775, 0.0
    %v1851 = vmax.f32 %v1778, 0.0
    %v1852 = vmax.f32 %v1781, 0.0
    %v1853 = vmax.f32 %v1784, 0.0
    %v1854 = vmax.f32 %v1787, 0.0
    %v1855 = vmax.f32 %v1790, 0.0
    %v1856 = vld [vmem:[#allocation6] sm:$0xff]
    %v1857 = vld [vmem:[#allocation6 + $0x8] sm:$0xff]
    %v1858 = vld [vmem:[#allocation6 + $0x10] sm:$0xff]
    %v1859 = vld [vmem:[#allocation6 + $0x18] sm:$0xff]
    %v1860 = vld [vmem:[#allocation6 + $0x20] sm:$0xff]
    %v1861 = vld [vmem:[#allocation6 + $0x28] sm:$0xff]
    %v1862 = vld [vmem:[#allocation6 + $0x30] sm:$0xff]
    %v1863 = vld [vmem:[#allocation6 + $0x38] sm:$0xff]
    %v1864 = vld [vmem:[#allocation6 + $0x40] sm:$0xff]
    %v1865 = vld [vmem:[#allocation6 + $0x48] sm:$0xff]
    %v1866 = vld [vmem:[#allocation6 + $0x50] sm:$0xff]
    %v1867 = vld [vmem:[#allocation6 + $0x58] sm:$0xff]
    %v1868 = vld [vmem:[#allocation6 + $0x60] sm:$0xff]
    %v1869 = vld [vmem:[#allocation6 + $0x68] sm:$0xff]
    %v1870 = vld [vmem:[#allocation6 + $0x70] sm:$0xff]
    %v1871 = vld [vmem:[#allocation6 + $0x78] sm:$0xff]
    %v1872 = vld [vmem:[#allocation6 + $0x80] sm:$0xff]
    %v1873 = vld [vmem:[#allocation6 + $0x88] sm:$0xff]
    %v1874 = vld [vmem:[#allocation6 + $0x90] sm:$0xff]
    %v1875 = vld [vmem:[#allocation6 + $0x98] sm:$0xff]
    %v1876 = vld [vmem:[#allocation6 + $0xa0] sm:$0xff]
    %v1877 = vld [vmem:[#allocation6 + $0xa8] sm:$0xff]
    %v1878 = vld [vmem:[#allocation6 + $0xb0] sm:$0xff]
    %v1879 = vld [vmem:[#allocation6 + $0xb8] sm:$0xff]
    %v1880 = vld [vmem:[#allocation6 + $0xc0] sm:$0xff]
    %v1881 = vld [vmem:[#allocation6 + $0xc8] sm:$0xff]
    %v1882 = vld [vmem:[#allocation6 + $0xd0] sm:$0xff]
    %v1883 = vld [vmem:[#allocation6 + $0xd8] sm:$0xff]
    %v1884 = vld [vmem:[#allocation6 + $0xe0] sm:$0xff]
    %v1885 = vld [vmem:[#allocation6 + $0xe8] sm:$0xff]
    %v1886 = vld [vmem:[#allocation6 + $0xf0] sm:$0xff]
    %v1887 = vld [vmem:[#allocation6 + $0xf8] sm:$0xff]
    %v1888 = vld [vmem:[#allocation6 + $0x100] sm:$0xff]
    %v1889 = vld [vmem:[#allocation6 + $0x108] sm:$0xff]
    %v1890 = vld [vmem:[#allocation6 + $0x110] sm:$0xff]
    %v1891 = vld [vmem:[#allocation6 + $0x118] sm:$0xff]
    %v1892 = vld [vmem:[#allocation6 + $0x120] sm:$0xff]
    %v1893 = vld [vmem:[#allocation6 + $0x128] sm:$0xff]
    %v1894 = vld [vmem:[#allocation6 + $0x130] sm:$0xff]
    %v1895 = vld [vmem:[#allocation6 + $0x138] sm:$0xff]
    %v1896 = vld [vmem:[#allocation6 + $0x140] sm:$0xff]
    %v1897 = vld [vmem:[#allocation6 + $0x148] sm:$0xff]
    %v1898 = vld [vmem:[#allocation6 + $0x150] sm:$0xff]
    %v1899 = vld [vmem:[#allocation6 + $0x158] sm:$0xff]
    %v1900 = vld [vmem:[#allocation6 + $0x160] sm:$0xff]
    %v1901 = vld [vmem:[#allocation6 + $0x168] sm:$0xff]
    %v1902 = vld [vmem:[#allocation6 + $0x170] sm:$0xff]
    %v1903 = vld [vmem:[#allocation6 + $0x178] sm:$0xff]
    %v1904 = vld [vmem:[#allocation6 + $0x180] sm:$0xff]
    %v1905 = vld [vmem:[#allocation6 + $0x188] sm:$0xff]
    %v1906 = vld [vmem:[#allocation6 + $0x190] sm:$0xff]
    %v1907 = vld [vmem:[#allocation6 + $0x198] sm:$0xff]
    %v1908 = vld [vmem:[#allocation6 + $0x1a0] sm:$0xff]
    %v1909 = vld [vmem:[#allocation6 + $0x1a8] sm:$0xff]
    %v1910 = vld [vmem:[#allocation6 + $0x1b0] sm:$0xff]
    %v1911 = vld [vmem:[#allocation6 + $0x1b8] sm:$0xff]
    %v1912 = vld [vmem:[#allocation6 + $0x1c0] sm:$0xff]
    %v1913 = vld [vmem:[#allocation6 + $0x1c8] sm:$0xff]
    %v1914 = vld [vmem:[#allocation6 + $0x1d0] sm:$0xff]
    %v1915 = vld [vmem:[#allocation6 + $0x1d8] sm:$0xff]
    %v1916 = vld [vmem:[#allocation6 + $0x1e0] sm:$0xff]
    %v1917 = vld [vmem:[#allocation6 + $0x1e8] sm:$0xff]
    %v1918 = vld [vmem:[#allocation6 + $0x1f0] sm:$0xff]
    %v1919 = vld [vmem:[#allocation6 + $0x1f8] sm:$0xff]
    %v1920 = vld [vmem:[#allocation6 + $0x200] sm:$0xff]
    %v1921 = vld [vmem:[#allocation6 + $0x208] sm:$0xff]
    %v1922 = vld [vmem:[#allocation6 + $0x210] sm:$0xff]
    %v1923 = vld [vmem:[#allocation6 + $0x218] sm:$0xff]
    %v1924 = vld [vmem:[#allocation6 + $0x220] sm:$0xff]
    %v1925 = vld [vmem:[#allocation6 + $0x228] sm:$0xff]
    %v1926 = vld [vmem:[#allocation6 + $0x230] sm:$0xff]
    %v1927 = vld [vmem:[#allocation6 + $0x238] sm:$0xff]
    %v1928 = vld [vmem:[#allocation6 + $0x240] sm:$0xff]
    %v1929 = vld [vmem:[#allocation6 + $0x248] sm:$0xff]
    %v1930 = vld [vmem:[#allocation6 + $0x250] sm:$0xff]
    %v1931 = vld [vmem:[#allocation6 + $0x258] sm:$0xff]
    %v1932 = vld [vmem:[#allocation6 + $0x260] sm:$0xff]
    %v1933 = vld [vmem:[#allocation6 + $0x268] sm:$0xff]
    %v1934 = vld [vmem:[#allocation6 + $0x270] sm:$0xff]
    %v1935 = vld [vmem:[#allocation6 + $0x278] sm:$0xff]
    %v1936 = vld [vmem:[#allocation6 + $0x280] sm:$0xff]
    %v1937 = vld [vmem:[#allocation6 + $0x288] sm:$0xff]
    %v1938 = vld [vmem:[#allocation6 + $0x290] sm:$0xff]
    %v1939 = vld [vmem:[#allocation6 + $0x298] sm:$0xff]
    %v1940 = vld [vmem:[#allocation6 + $0x2a0] sm:$0xff]
    %v1941 = vld [vmem:[#allocation6 + $0x2a8] sm:$0xff]
    %v1942 = vld [vmem:[#allocation6 + $0x2b0] sm:$0xff]
    %v1943 = vld [vmem:[#allocation6 + $0x2b8] sm:$0xff]
    %v1944 = vld [vmem:[#allocation6 + $0x2c0] sm:$0xff]
    %v1945 = vld [vmem:[#allocation6 + $0x2c8] sm:$0xff]
    %v1946 = vld [vmem:[#allocation6 + $0x2d0] sm:$0xff]
    %v1947 = vld [vmem:[#allocation6 + $0x2d8] sm:$0xff]
    %v1948 = vld [vmem:[#allocation6 + $0x2e0] sm:$0xff]
    %v1949 = vld [vmem:[#allocation6 + $0x2e8] sm:$0xff]
    %v1950 = vld [vmem:[#allocation6 + $0x2f0] sm:$0xff]
    %v1951 = vld [vmem:[#allocation6 + $0x2f8] sm:$0xff]
    %v1952 = vld [vmem:[#allocation6 + $0x300] sm:$0xff]
    %v1953 = vld [vmem:[#allocation6 + $0x308] sm:$0xff]
    %v1954 = vld [vmem:[#allocation6 + $0x310] sm:$0xff]
    %v1955 = vld [vmem:[#allocation6 + $0x318] sm:$0xff]
    %v1956 = vld [vmem:[#allocation6 + $0x320] sm:$0xff]
    %v1957 = vld [vmem:[#allocation6 + $0x328] sm:$0xff]
    %v1958 = vld [vmem:[#allocation6 + $0x330] sm:$0xff]
    %v1959 = vld [vmem:[#allocation6 + $0x338] sm:$0xff]
    %v1960 = vld [vmem:[#allocation6 + $0x340] sm:$0xff]
    %v1961 = vld [vmem:[#allocation6 + $0x348] sm:$0xff]
    %v1962 = vld [vmem:[#allocation6 + $0x350] sm:$0xff]
    %v1963 = vld [vmem:[#allocation6 + $0x358] sm:$0xff]
    %v1964 = vld [vmem:[#allocation6 + $0x360] sm:$0xff]
    %v1965 = vld [vmem:[#allocation6 + $0x368] sm:$0xff]
    %v1966 = vld [vmem:[#allocation6 + $0x370] sm:$0xff]
    %v1967 = vld [vmem:[#allocation6 + $0x378] sm:$0xff]
    %v1968 = vld [vmem:[#allocation6 + $0x380] sm:$0xff]
    %v1969 = vld [vmem:[#allocation6 + $0x388] sm:$0xff]
    %v1970 = vld [vmem:[#allocation6 + $0x390] sm:$0xff]
    %v1971 = vld [vmem:[#allocation6 + $0x398] sm:$0xff]
    %v1972 = vld [vmem:[#allocation6 + $0x3a0] sm:$0xff]
    %v1973 = vld [vmem:[#allocation6 + $0x3a8] sm:$0xff]
    %v1974 = vld [vmem:[#allocation6 + $0x3b0] sm:$0xff]
    %v1975 = vld [vmem:[#allocation6 + $0x3b8] sm:$0xff]
    %v1976 = vld [vmem:[#allocation6 + $0x3c0] sm:$0xff]
    %v1977 = vld [vmem:[#allocation6 + $0x3c8] sm:$0xff]
    %v1978 = vld [vmem:[#allocation6 + $0x3d0] sm:$0xff]
    %v1979 = vld [vmem:[#allocation6 + $0x3d8] sm:$0xff]
    %v1980 = vld [vmem:[#allocation6 + $0x3e0] sm:$0xff]
    %v1981 = vld [vmem:[#allocation6 + $0x3e8] sm:$0xff]
    %v1982 = vld [vmem:[#allocation6 + $0x3f0] sm:$0xff]
    %v1983 = vld [vmem:[#allocation6 + $0x3f8] sm:$0xff]
    %v1984 = vld [vmem:[%s10] sm:$0xff]
    %v1985 = vld [vmem:[%s10 + $0x8] sm:$0xff]
    %v1986 = vld [vmem:[%s10 + $0x10] sm:$0xff]
    %v1987 = vld [vmem:[%s10 + $0x18] sm:$0xff]
    %v1988 = vld [vmem:[%s10 + $0x20] sm:$0xff]
    %v1989 = vld [vmem:[%s10 + $0x28] sm:$0xff]
    %v1990 = vld [vmem:[%s10 + $0x30] sm:$0xff]
    %v1991 = vld [vmem:[%s10 + $0x38] sm:$0xff]
    %v1992 = vld [vmem:[%s10 + $0x40] sm:$0xff]
    %v1993 = vld [vmem:[%s10 + $0x48] sm:$0xff]
    %v1994 = vld [vmem:[%s10 + $0x50] sm:$0xff]
    %v1995 = vld [vmem:[%s10 + $0x58] sm:$0xff]
    %v1996 = vld [vmem:[%s10 + $0x60] sm:$0xff]
    %v1997 = vld [vmem:[%s10 + $0x68] sm:$0xff]
    %v1998 = vld [vmem:[%s10 + $0x70] sm:$0xff]
    %v1999 = vld [vmem:[%s10 + $0x78] sm:$0xff]
    %v2000 = vld [vmem:[%s10 + $0x80] sm:$0xff]
    %v2001 = vld [vmem:[%s10 + $0x88] sm:$0xff]
    %v2002 = vld [vmem:[%s10 + $0x90] sm:$0xff]
    %v2003 = vld [vmem:[%s10 + $0x98] sm:$0xff]
    %v2004 = vld [vmem:[%s10 + $0xa0] sm:$0xff]
    %v2005 = vld [vmem:[%s10 + $0xa8] sm:$0xff]
    %v2006 = vld [vmem:[%s10 + $0xb0] sm:$0xff]
    %v2007 = vld [vmem:[%s10 + $0xb8] sm:$0xff]
    %v2008 = vld [vmem:[%s10 + $0xc0] sm:$0xff]
    %v2009 = vld [vmem:[%s10 + $0xc8] sm:$0xff]
    %v2010 = vld [vmem:[%s10 + $0xd0] sm:$0xff]
    %v2011 = vld [vmem:[%s10 + $0xd8] sm:$0xff]
    %v2012 = vld [vmem:[%s10 + $0xe0] sm:$0xff]
    %v2013 = vld [vmem:[%s10 + $0xe8] sm:$0xff]
    %v2014 = vld [vmem:[%s10 + $0xf0] sm:$0xff]
    %v2015 = vld [vmem:[%s10 + $0xf8] sm:$0xff]
    %2017 = vset.pattern.permute.xlu0 0
    %2018 = vperm.xlu0 %2017, %v1984
    %v2019 = vpop.permute.xlu0 %2018
    %2022 = vset.pattern.permute.xlu0 0
    %2023 = vperm.xlu0 %2022, %v1985
    %v2024 = vpop.permute.xlu0 %2023
    %2027 = vset.pattern.permute.xlu0 0
    %2028 = vperm.xlu0 %2027, %v1986
    %v2029 = vpop.permute.xlu0 %2028
    %2032 = vset.pattern.permute.xlu0 0
    %2033 = vperm.xlu0 %2032, %v1987
    %v2034 = vpop.permute.xlu0 %2033
    %2037 = vset.pattern.permute.xlu0 0
    %2038 = vperm.xlu0 %2037, %v1988
    %v2039 = vpop.permute.xlu0 %2038
    %2042 = vset.pattern.permute.xlu0 0
    %2043 = vperm.xlu0 %2042, %v1989
    %v2044 = vpop.permute.xlu0 %2043
    %2047 = vset.pattern.permute.xlu0 0
    %2048 = vperm.xlu0 %2047, %v1990
    %v2049 = vpop.permute.xlu0 %2048
    %2052 = vset.pattern.permute.xlu0 0
    %2053 = vperm.xlu0 %2052, %v1991
    %v2054 = vpop.permute.xlu0 %2053
    %2057 = vset.pattern.permute.xlu0 0
    %2058 = vperm.xlu0 %2057, %v1992
    %v2059 = vpop.permute.xlu0 %2058
    %2062 = vset.pattern.permute.xlu0 0
    %2063 = vperm.xlu0 %2062, %v1993
    %v2064 = vpop.permute.xlu0 %2063
    %2067 = vset.pattern.permute.xlu0 0
    %2068 = vperm.xlu0 %2067, %v1994
    %v2069 = vpop.permute.xlu0 %2068
    %2072 = vset.pattern.permute.xlu0 0
    %2073 = vperm.xlu0 %2072, %v1995
    %v2074 = vpop.permute.xlu0 %2073
    %2077 = vset.pattern.permute.xlu0 0
    %2078 = vperm.xlu0 %2077, %v1996
    %v2079 = vpop.permute.xlu0 %2078
    %2082 = vset.pattern.permute.xlu0 0
    %2083 = vperm.xlu0 %2082, %v1997
    %v2084 = vpop.permute.xlu0 %2083
    %2087 = vset.pattern.permute.xlu0 0
    %2088 = vperm.xlu0 %2087, %v1998
    %v2089 = vpop.permute.xlu0 %2088
    %2092 = vset.pattern.permute.xlu0 0
    %2093 = vperm.xlu0 %2092, %v1999
    %v2094 = vpop.permute.xlu0 %2093
    %2097 = vset.pattern.permute.xlu0 0
    %2098 = vperm.xlu0 %2097, %v2000
    %v2099 = vpop.permute.xlu0 %2098
    %2102 = vset.pattern.permute.xlu0 0
    %2103 = vperm.xlu0 %2102, %v2001
    %v2104 = vpop.permute.xlu0 %2103
    %2107 = vset.pattern.permute.xlu0 0
    %2108 = vperm.xlu0 %2107, %v2002
    %v2109 = vpop.permute.xlu0 %2108
    %2112 = vset.pattern.permute.xlu0 0
    %2113 = vperm.xlu0 %2112, %v2003
    %v2114 = vpop.permute.xlu0 %2113
    %2117 = vset.pattern.permute.xlu0 0
    %2118 = vperm.xlu0 %2117, %v2004
    %v2119 = vpop.permute.xlu0 %2118
    %2122 = vset.pattern.permute.xlu0 0
    %2123 = vperm.xlu0 %2122, %v2005
    %v2124 = vpop.permute.xlu0 %2123
    %2127 = vset.pattern.permute.xlu0 0
    %2128 = vperm.xlu0 %2127, %v2006
    %v2129 = vpop.permute.xlu0 %2128
    %2132 = vset.pattern.permute.xlu0 0
    %2133 = vperm.xlu0 %2132, %v2007
    %v2134 = vpop.permute.xlu0 %2133
    %2137 = vset.pattern.permute.xlu0 0
    %2138 = vperm.xlu0 %2137, %v2008
    %v2139 = vpop.permute.xlu0 %2138
    %2142 = vset.pattern.permute.xlu0 0
    %2143 = vperm.xlu0 %2142, %v2009
    %v2144 = vpop.permute.xlu0 %2143
    %2147 = vset.pattern.permute.xlu0 0
    %2148 = vperm.xlu0 %2147, %v2010
    %v2149 = vpop.permute.xlu0 %2148
    %2152 = vset.pattern.permute.xlu0 0
    %2153 = vperm.xlu0 %2152, %v2011
    %v2154 = vpop.permute.xlu0 %2153
    %2157 = vset.pattern.permute.xlu0 0
    %2158 = vperm.xlu0 %2157, %v2012
    %v2159 = vpop.permute.xlu0 %2158
    %2162 = vset.pattern.permute.xlu0 0
    %2163 = vperm.xlu0 %2162, %v2013
    %v2164 = vpop.permute.xlu0 %2163
    %2167 = vset.pattern.permute.xlu0 0
    %2168 = vperm.xlu0 %2167, %v2014
    %v2169 = vpop.permute.xlu0 %2168
    %2172 = vset.pattern.permute.xlu0 0
    %2173 = vperm.xlu0 %2172, %v2015
    %v2174 = vpop.permute.xlu0 %2173
    %2176 = vmatpush.msra.mxu0 %v1807
    %2177 = vmatpush.msra.mxu0 %v1806
    %2178 = vmatpush.msra.mxu0 %v1805
    %2179 = vmatpush.msra.mxu0 %v1804
    %2180 = vmatpush.msra.mxu0 %v1803
    %2181 = vmatpush.msra.mxu0 %v1802
    %2182 = vmatpush.msra.mxu0 %v1801
    %2183 = vmatpush.msra.mxu0 %v1800
    %2184 = vmatpush.msra.mxu0 %v1799
    %2185 = vmatpush.msra.mxu0 %v1798
    %2186 = vmatpush.msra.mxu0 %v1797
    %2187 = vmatpush.msra.mxu0 %v1796
    %2188 = vmatpush.msra.mxu0 %v1795
    %2189 = vmatpush.msra.mxu0 %v1794
    %2190 = vmatpush.msra.mxu0 %v1793
    %2191 = vmatpush.msra.mxu0 %v1792
    %2192 = vmatmul.f32.gmra.mxu0 %v1856
    %v2193 = vpop.f32.mrf.mxu0
    %v2194 = vadd.f32 %v2019, %v2193
    %2195 = vmatmul.f32.gmra.mxu0 %v1860
    %v2196 = vpop.f32.mrf.mxu0
    %v2197 = vadd.f32 %v2024, %v2196
    %2198 = vmatmul.f32.gmra.mxu0 %v1864
    %v2199 = vpop.f32.mrf.mxu0
    %v2200 = vadd.f32 %v2029, %v2199
    %2201 = vmatmul.f32.gmra.mxu0 %v1868
    %v2202 = vpop.f32.mrf.mxu0
    %v2203 = vadd.f32 %v2034, %v2202
    %2204 = vmatmul.f32.gmra.mxu0 %v1872
    %v2205 = vpop.f32.mrf.mxu0
    %v2206 = vadd.f32 %v2039, %v2205
    %2207 = vmatmul.f32.gmra.mxu0 %v1876
    %v2208 = vpop.f32.mrf.mxu0
    %v2209 = vadd.f32 %v2044, %v2208
    %2210 = vmatmul.f32.gmra.mxu0 %v1880
    %v2211 = vpop.f32.mrf.mxu0
    %v2212 = vadd.f32 %v2049, %v2211
    %2213 = vmatmul.f32.gmra.mxu0 %v1884
    %v2214 = vpop.f32.mrf.mxu0
    %v2215 = vadd.f32 %v2054, %v2214
    %2216 = vmatmul.f32.gmra.mxu0 %v1888
    %v2217 = vpop.f32.mrf.mxu0
    %v2218 = vadd.f32 %v2059, %v2217
    %2219 = vmatmul.f32.gmra.mxu0 %v1892
    %v2220 = vpop.f32.mrf.mxu0
    %v2221 = vadd.f32 %v2064, %v2220
    %2222 = vmatmul.f32.gmra.mxu0 %v1896
    %v2223 = vpop.f32.mrf.mxu0
    %v2224 = vadd.f32 %v2069, %v2223
    %2225 = vmatmul.f32.gmra.mxu0 %v1900
    %v2226 = vpop.f32.mrf.mxu0
    %v2227 = vadd.f32 %v2074, %v2226
    %2228 = vmatmul.f32.gmra.mxu0 %v1904
    %v2229 = vpop.f32.mrf.mxu0
    %v2230 = vadd.f32 %v2079, %v2229
    %2231 = vmatmul.f32.gmra.mxu0 %v1908
    %v2232 = vpop.f32.mrf.mxu0
    %v2233 = vadd.f32 %v2084, %v2232
    %2234 = vmatmul.f32.gmra.mxu0 %v1912
    %v2235 = vpop.f32.mrf.mxu0
    %v2236 = vadd.f32 %v2089, %v2235
    %2237 = vmatmul.f32.gmra.mxu0 %v1916
    %v2238 = vpop.f32.mrf.mxu0
    %v2239 = vadd.f32 %v2094, %v2238
    %2240 = vmatmul.f32.gmra.mxu0 %v1920
    %v2241 = vpop.f32.mrf.mxu0
    %v2242 = vadd.f32 %v2099, %v2241
    %2243 = vmatmul.f32.gmra.mxu0 %v1924
    %v2244 = vpop.f32.mrf.mxu0
    %v2245 = vadd.f32 %v2104, %v2244
    %2246 = vmatmul.f32.gmra.mxu0 %v1928
    %v2247 = vpop.f32.mrf.mxu0
    %v2248 = vadd.f32 %v2109, %v2247
    %2249 = vmatmul.f32.gmra.mxu0 %v1932
    %v2250 = vpop.f32.mrf.mxu0
    %v2251 = vadd.f32 %v2114, %v2250
    %2252 = vmatmul.f32.gmra.mxu0 %v1936
    %v2253 = vpop.f32.mrf.mxu0
    %v2254 = vadd.f32 %v2119, %v2253
    %2255 = vmatmul.f32.gmra.mxu0 %v1940
    %v2256 = vpop.f32.mrf.mxu0
    %v2257 = vadd.f32 %v2124, %v2256
    %2258 = vmatmul.f32.gmra.mxu0 %v1944
    %v2259 = vpop.f32.mrf.mxu0
    %v2260 = vadd.f32 %v2129, %v2259
    %2261 = vmatmul.f32.gmra.mxu0 %v1948
    %v2262 = vpop.f32.mrf.mxu0
    %v2263 = vadd.f32 %v2134, %v2262
    %2264 = vmatmul.f32.gmra.mxu0 %v1952
    %v2265 = vpop.f32.mrf.mxu0
    %v2266 = vadd.f32 %v2139, %v2265
    %2267 = vmatmul.f32.gmra.mxu0 %v1956
    %v2268 = vpop.f32.mrf.mxu0
    %v2269 = vadd.f32 %v2144, %v2268
    %2270 = vmatmul.f32.gmra.mxu0 %v1960
    %v2271 = vpop.f32.mrf.mxu0
    %v2272 = vadd.f32 %v2149, %v2271
    %2273 = vmatmul.f32.gmra.mxu0 %v1964
    %v2274 = vpop.f32.mrf.mxu0
    %v2275 = vadd.f32 %v2154, %v2274
    %2276 = vmatmul.f32.gmra.mxu0 %v1968
    %v2277 = vpop.f32.mrf.mxu0
    %v2278 = vadd.f32 %v2159, %v2277
    %2279 = vmatmul.f32.gmra.mxu0 %v1972
    %v2280 = vpop.f32.mrf.mxu0
    %v2281 = vadd.f32 %v2164, %v2280
    %2282 = vmatmul.f32.gmra.mxu0 %v1976
    %v2283 = vpop.f32.mrf.mxu0
    %v2284 = vadd.f32 %v2169, %v2283
    %2285 = vmatmul.f32.gmra.mxu0 %v1980
    %v2286 = vpop.f32.mrf.mxu0
    %v2287 = vadd.f32 %v2174, %v2286
    %2288 = vdwg.mxu0
    %2289 = vmatpush.msra.mxu0 %v1823
    %2290 = vmatpush.msra.mxu0 %v1822
    %2291 = vmatpush.msra.mxu0 %v1821
    %2292 = vmatpush.msra.mxu0 %v1820
    %2293 = vmatpush.msra.mxu0 %v1819
    %2294 = vmatpush.msra.mxu0 %v1818
    %2295 = vmatpush.msra.mxu0 %v1817
    %2296 = vmatpush.msra.mxu0 %v1816
    %2297 = vmatpush.msra.mxu0 %v1815
    %2298 = vmatpush.msra.mxu0 %v1814
    %2299 = vmatpush.msra.mxu0 %v1813
    %2300 = vmatpush.msra.mxu0 %v1812
    %2301 = vmatpush.msra.mxu0 %v1811
    %2302 = vmatpush.msra.mxu0 %v1810
    %2303 = vmatpush.msra.mxu0 %v1809
    %2304 = vmatpush.msra.mxu0 %v1808
    %2305 = vmatmul.f32.gmra.mxu0 %v1857
    %v2306 = vpop.f32.mrf.mxu0
    %v2307 = vadd.f32 %v2194, %v2306
    %2308 = vmatmul.f32.gmra.mxu0 %v1861
    %v2309 = vpop.f32.mrf.mxu0
    %v2310 = vadd.f32 %v2197, %v2309
    %2311 = vmatmul.f32.gmra.mxu0 %v1865
    %v2312 = vpop.f32.mrf.mxu0
    %v2313 = vadd.f32 %v2200, %v2312
    %2314 = vmatmul.f32.gmra.mxu0 %v1869
    %v2315 = vpop.f32.mrf.mxu0
    %v2316 = vadd.f32 %v2203, %v2315
    %2317 = vmatmul.f32.gmra.mxu0 %v1873
    %v2318 = vpop.f32.mrf.mxu0
    %v2319 = vadd.f32 %v2206, %v2318
    %2320 = vmatmul.f32.gmra.mxu0 %v1877
    %v2321 = vpop.f32.mrf.mxu0
    %v2322 = vadd.f32 %v2209, %v2321
    %2323 = vmatmul.f32.gmra.mxu0 %v1881
    %v2324 = vpop.f32.mrf.mxu0
    %v2325 = vadd.f32 %v2212, %v2324
    %2326 = vmatmul.f32.gmra.mxu0 %v1885
    %v2327 = vpop.f32.mrf.mxu0
    %v2328 = vadd.f32 %v2215, %v2327
    %2329 = vmatmul.f32.gmra.mxu0 %v1889
    %v2330 = vpop.f32.mrf.mxu0
    %v2331 = vadd.f32 %v2218, %v2330
    %2332 = vmatmul.f32.gmra.mxu0 %v1893
    %v2333 = vpop.f32.mrf.mxu0
    %v2334 = vadd.f32 %v2221, %v2333
    %2335 = vmatmul.f32.gmra.mxu0 %v1897
    %v2336 = vpop.f32.mrf.mxu0
    %v2337 = vadd.f32 %v2224, %v2336
    %2338 = vmatmul.f32.gmra.mxu0 %v1901
    %v2339 = vpop.f32.mrf.mxu0
    %v2340 = vadd.f32 %v2227, %v2339
    %2341 = vmatmul.f32.gmra.mxu0 %v1905
    %v2342 = vpop.f32.mrf.mxu0
    %v2343 = vadd.f32 %v2230, %v2342
    %2344 = vmatmul.f32.gmra.mxu0 %v1909
    %v2345 = vpop.f32.mrf.mxu0
    %v2346 = vadd.f32 %v2233, %v2345
    %2347 = vmatmul.f32.gmra.mxu0 %v1913
    %v2348 = vpop.f32.mrf.mxu0
    %v2349 = vadd.f32 %v2236, %v2348
    %2350 = vmatmul.f32.gmra.mxu0 %v1917
    %v2351 = vpop.f32.mrf.mxu0
    %v2352 = vadd.f32 %v2239, %v2351
    %2353 = vmatmul.f32.gmra.mxu0 %v1921
    %v2354 = vpop.f32.mrf.mxu0
    %v2355 = vadd.f32 %v2242, %v2354
    %2356 = vmatmul.f32.gmra.mxu0 %v1925
    %v2357 = vpop.f32.mrf.mxu0
    %v2358 = vadd.f32 %v2245, %v2357
    %2359 = vmatmul.f32.gmra.mxu0 %v1929
    %v2360 = vpop.f32.mrf.mxu0
    %v2361 = vadd.f32 %v2248, %v2360
    %2362 = vmatmul.f32.gmra.mxu0 %v1933
    %v2363 = vpop.f32.mrf.mxu0
    %v2364 = vadd.f32 %v2251, %v2363
    %2365 = vmatmul.f32.gmra.mxu0 %v1937
    %v2366 = vpop.f32.mrf.mxu0
    %v2367 = vadd.f32 %v2254, %v2366
    %2368 = vmatmul.f32.gmra.mxu0 %v1941
    %v2369 = vpop.f32.mrf.mxu0
    %v2370 = vadd.f32 %v2257, %v2369
    %2371 = vmatmul.f32.gmra.mxu0 %v1945
    %v2372 = vpop.f32.mrf.mxu0
    %v2373 = vadd.f32 %v2260, %v2372
    %2374 = vmatmul.f32.gmra.mxu0 %v1949
    %v2375 = vpop.f32.mrf.mxu0
    %v2376 = vadd.f32 %v2263, %v2375
    %2377 = vmatmul.f32.gmra.mxu0 %v1953
    %v2378 = vpop.f32.mrf.mxu0
    %v2379 = vadd.f32 %v2266, %v2378
    %2380 = vmatmul.f32.gmra.mxu0 %v1957
    %v2381 = vpop.f32.mrf.mxu0
    %v2382 = vadd.f32 %v2269, %v2381
    %2383 = vmatmul.f32.gmra.mxu0 %v1961
    %v2384 = vpop.f32.mrf.mxu0
    %v2385 = vadd.f32 %v2272, %v2384
    %2386 = vmatmul.f32.gmra.mxu0 %v1965
    %v2387 = vpop.f32.mrf.mxu0
    %v2388 = vadd.f32 %v2275, %v2387
    %2389 = vmatmul.f32.gmra.mxu0 %v1969
    %v2390 = vpop.f32.mrf.mxu0
    %v2391 = vadd.f32 %v2278, %v2390
    %2392 = vmatmul.f32.gmra.mxu0 %v1973
    %v2393 = vpop.f32.mrf.mxu0
    %v2394 = vadd.f32 %v2281, %v2393
    %2395 = vmatmul.f32.gmra.mxu0 %v1977
    %v2396 = vpop.f32.mrf.mxu0
    %v2397 = vadd.f32 %v2284, %v2396
    %2398 = vmatmul.f32.gmra.mxu0 %v1981
    %v2399 = vpop.f32.mrf.mxu0
    %v2400 = vadd.f32 %v2287, %v2399
    %2401 = vdwg.mxu0
    %2402 = vmatpush.msra.mxu0 %v1839
    %2403 = vmatpush.msra.mxu0 %v1838
    %2404 = vmatpush.msra.mxu0 %v1837
    %2405 = vmatpush.msra.mxu0 %v1836
    %2406 = vmatpush.msra.mxu0 %v1835
    %2407 = vmatpush.msra.mxu0 %v1834
    %2408 = vmatpush.msra.mxu0 %v1833
    %2409 = vmatpush.msra.mxu0 %v1832
    %2410 = vmatpush.msra.mxu0 %v1831
    %2411 = vmatpush.msra.mxu0 %v1830
    %2412 = vmatpush.msra.mxu0 %v1829
    %2413 = vmatpush.msra.mxu0 %v1828
    %2414 = vmatpush.msra.mxu0 %v1827
    %2415 = vmatpush.msra.mxu0 %v1826
    %2416 = vmatpush.msra.mxu0 %v1825
    %2417 = vmatpush.msra.mxu0 %v1824
    %2418 = vmatmul.f32.gmra.mxu0 %v1858
    %v2419 = vpop.f32.mrf.mxu0
    %v2420 = vadd.f32 %v2307, %v2419
    %2421 = vmatmul.f32.gmra.mxu0 %v1862
    %v2422 = vpop.f32.mrf.mxu0
    %v2423 = vadd.f32 %v2310, %v2422
    %2424 = vmatmul.f32.gmra.mxu0 %v1866
    %v2425 = vpop.f32.mrf.mxu0
    %v2426 = vadd.f32 %v2313, %v2425
    %2427 = vmatmul.f32.gmra.mxu0 %v1870
    %v2428 = vpop.f32.mrf.mxu0
    %v2429 = vadd.f32 %v2316, %v2428
    %2430 = vmatmul.f32.gmra.mxu0 %v1874
    %v2431 = vpop.f32.mrf.mxu0
    %v2432 = vadd.f32 %v2319, %v2431
    %2433 = vmatmul.f32.gmra.mxu0 %v1878
    %v2434 = vpop.f32.mrf.mxu0
    %v2435 = vadd.f32 %v2322, %v2434
    %2436 = vmatmul.f32.gmra.mxu0 %v1882
    %v2437 = vpop.f32.mrf.mxu0
    %v2438 = vadd.f32 %v2325, %v2437
    %2439 = vmatmul.f32.gmra.mxu0 %v1886
    %v2440 = vpop.f32.mrf.mxu0
    %v2441 = vadd.f32 %v2328, %v2440
    %2442 = vmatmul.f32.gmra.mxu0 %v1890
    %v2443 = vpop.f32.mrf.mxu0
    %v2444 = vadd.f32 %v2331, %v2443
    %2445 = vmatmul.f32.gmra.mxu0 %v1894
    %v2446 = vpop.f32.mrf.mxu0
    %v2447 = vadd.f32 %v2334, %v2446
    %2448 = vmatmul.f32.gmra.mxu0 %v1898
    %v2449 = vpop.f32.mrf.mxu0
    %v2450 = vadd.f32 %v2337, %v2449
    %2451 = vmatmul.f32.gmra.mxu0 %v1902
    %v2452 = vpop.f32.mrf.mxu0
    %v2453 = vadd.f32 %v2340, %v2452
    %2454 = vmatmul.f32.gmra.mxu0 %v1906
    %v2455 = vpop.f32.mrf.mxu0
    %v2456 = vadd.f32 %v2343, %v2455
    %2457 = vmatmul.f32.gmra.mxu0 %v1910
    %v2458 = vpop.f32.mrf.mxu0
    %v2459 = vadd.f32 %v2346, %v2458
    %2460 = vmatmul.f32.gmra.mxu0 %v1914
    %v2461 = vpop.f32.mrf.mxu0
    %v2462 = vadd.f32 %v2349, %v2461
    %2463 = vmatmul.f32.gmra.mxu0 %v1918
    %v2464 = vpop.f32.mrf.mxu0
    %v2465 = vadd.f32 %v2352, %v2464
    %2466 = vmatmul.f32.gmra.mxu0 %v1922
    %v2467 = vpop.f32.mrf.mxu0
    %v2468 = vadd.f32 %v2355, %v2467
    %2469 = vmatmul.f32.gmra.mxu0 %v1926
    %v2470 = vpop.f32.mrf.mxu0
    %v2471 = vadd.f32 %v2358, %v2470
    %2472 = vmatmul.f32.gmra.mxu0 %v1930
    %v2473 = vpop.f32.mrf.mxu0
    %v2474 = vadd.f32 %v2361, %v2473
    %2475 = vmatmul.f32.gmra.mxu0 %v1934
    %v2476 = vpop.f32.mrf.mxu0
    %v2477 = vadd.f32 %v2364, %v2476
    %2478 = vmatmul.f32.gmra.mxu0 %v1938
    %v2479 = vpop.f32.mrf.mxu0
    %v2480 = vadd.f32 %v2367, %v2479
    %2481 = vmatmul.f32.gmra.mxu0 %v1942
    %v2482 = vpop.f32.mrf.mxu0
    %v2483 = vadd.f32 %v2370, %v2482
    %2484 = vmatmul.f32.gmra.mxu0 %v1946
    %v2485 = vpop.f32.mrf.mxu0
    %v2486 = vadd.f32 %v2373, %v2485
    %2487 = vmatmul.f32.gmra.mxu0 %v1950
    %v2488 = vpop.f32.mrf.mxu0
    %v2489 = vadd.f32 %v2376, %v2488
    %2490 = vmatmul.f32.gmra.mxu0 %v1954
    %v2491 = vpop.f32.mrf.mxu0
    %v2492 = vadd.f32 %v2379, %v2491
    %2493 = vmatmul.f32.gmra.mxu0 %v1958
    %v2494 = vpop.f32.mrf.mxu0
    %v2495 = vadd.f32 %v2382, %v2494
    %2496 = vmatmul.f32.gmra.mxu0 %v1962
    %v2497 = vpop.f32.mrf.mxu0
    %v2498 = vadd.f32 %v2385, %v2497
    %2499 = vmatmul.f32.gmra.mxu0 %v1966
    %v2500 = vpop.f32.mrf.mxu0
    %v2501 = vadd.f32 %v2388, %v2500
    %2502 = vmatmul.f32.gmra.mxu0 %v1970
    %v2503 = vpop.f32.mrf.mxu0
    %v2504 = vadd.f32 %v2391, %v2503
    %2505 = vmatmul.f32.gmra.mxu0 %v1974
    %v2506 = vpop.f32.mrf.mxu0
    %v2507 = vadd.f32 %v2394, %v2506
    %2508 = vmatmul.f32.gmra.mxu0 %v1978
    %v2509 = vpop.f32.mrf.mxu0
    %v2510 = vadd.f32 %v2397, %v2509
    %2511 = vmatmul.f32.gmra.mxu0 %v1982
    %v2512 = vpop.f32.mrf.mxu0
    %v2513 = vadd.f32 %v2400, %v2512
    %2514 = vdwg.mxu0
    %2515 = vmatpush.msra.mxu0 %v1855
    %2516 = vmatpush.msra.mxu0 %v1854
    %2517 = vmatpush.msra.mxu0 %v1853
    %2518 = vmatpush.msra.mxu0 %v1852
    %2519 = vmatpush.msra.mxu0 %v1851
    %2520 = vmatpush.msra.mxu0 %v1850
    %2521 = vmatpush.msra.mxu0 %v1849
    %2522 = vmatpush.msra.mxu0 %v1848
    %2523 = vmatpush.msra.mxu0 %v1847
    %2524 = vmatpush.msra.mxu0 %v1846
    %2525 = vmatpush.msra.mxu0 %v1845
    %2526 = vmatpush.msra.mxu0 %v1844
    %2527 = vmatpush.msra.mxu0 %v1843
    %2528 = vmatpush.msra.mxu0 %v1842
    %2529 = vmatpush.msra.mxu0 %v1841
    %2530 = vmatpush.msra.mxu0 %v1840
    %2531 = vmatmul.f32.gmra.mxu0 %v1859
    %v2532 = vpop.f32.mrf.mxu0
    %v2533 = vadd.f32 %v2420, %v2532
    %2534 = vmatmul.f32.gmra.mxu0 %v1863
    %v2535 = vpop.f32.mrf.mxu0
    %v2536 = vadd.f32 %v2423, %v2535
    %2537 = vmatmul.f32.gmra.mxu0 %v1867
    %v2538 = vpop.f32.mrf.mxu0
    %v2539 = vadd.f32 %v2426, %v2538
    %2540 = vmatmul.f32.gmra.mxu0 %v1871
    %v2541 = vpop.f32.mrf.mxu0
    %v2542 = vadd.f32 %v2429, %v2541
    %2543 = vmatmul.f32.gmra.mxu0 %v1875
    %v2544 = vpop.f32.mrf.mxu0
    %v2545 = vadd.f32 %v2432, %v2544
    %2546 = vmatmul.f32.gmra.mxu0 %v1879
    %v2547 = vpop.f32.mrf.mxu0
    %v2548 = vadd.f32 %v2435, %v2547
    %2549 = vmatmul.f32.gmra.mxu0 %v1883
    %v2550 = vpop.f32.mrf.mxu0
    %v2551 = vadd.f32 %v2438, %v2550
    %2552 = vmatmul.f32.gmra.mxu0 %v1887
    %v2553 = vpop.f32.mrf.mxu0
    %v2554 = vadd.f32 %v2441, %v2553
    %2555 = vmatmul.f32.gmra.mxu0 %v1891
    %v2556 = vpop.f32.mrf.mxu0
    %v2557 = vadd.f32 %v2444, %v2556
    %2558 = vmatmul.f32.gmra.mxu0 %v1895
    %v2559 = vpop.f32.mrf.mxu0
    %v2560 = vadd.f32 %v2447, %v2559
    %2561 = vmatmul.f32.gmra.mxu0 %v1899
    %v2562 = vpop.f32.mrf.mxu0
    %v2563 = vadd.f32 %v2450, %v2562
    %2564 = vmatmul.f32.gmra.mxu0 %v1903
    %v2565 = vpop.f32.mrf.mxu0
    %v2566 = vadd.f32 %v2453, %v2565
    %2567 = vmatmul.f32.gmra.mxu0 %v1907
    %v2568 = vpop.f32.mrf.mxu0
    %v2569 = vadd.f32 %v2456, %v2568
    %2570 = vmatmul.f32.gmra.mxu0 %v1911
    %v2571 = vpop.f32.mrf.mxu0
    %v2572 = vadd.f32 %v2459, %v2571
    %2573 = vmatmul.f32.gmra.mxu0 %v1915
    %v2574 = vpop.f32.mrf.mxu0
    %v2575 = vadd.f32 %v2462, %v2574
    %2576 = vmatmul.f32.gmra.mxu0 %v1919
    %v2577 = vpop.f32.mrf.mxu0
    %v2578 = vadd.f32 %v2465, %v2577
    %2579 = vmatmul.f32.gmra.mxu0 %v1923
    %v2580 = vpop.f32.mrf.mxu0
    %v2581 = vadd.f32 %v2468, %v2580
    %2582 = vmatmul.f32.gmra.mxu0 %v1927
    %v2583 = vpop.f32.mrf.mxu0
    %v2584 = vadd.f32 %v2471, %v2583
    %2585 = vmatmul.f32.gmra.mxu0 %v1931
    %v2586 = vpop.f32.mrf.mxu0
    %v2587 = vadd.f32 %v2474, %v2586
    %2588 = vmatmul.f32.gmra.mxu0 %v1935
    %v2589 = vpop.f32.mrf.mxu0
    %v2590 = vadd.f32 %v2477, %v2589
    %2591 = vmatmul.f32.gmra.mxu0 %v1939
    %v2592 = vpop.f32.mrf.mxu0
    %v2593 = vadd.f32 %v2480, %v2592
    %2594 = vmatmul.f32.gmra.mxu0 %v1943
    %v2595 = vpop.f32.mrf.mxu0
    %v2596 = vadd.f32 %v2483, %v2595
    %2597 = vmatmul.f32.gmra.mxu0 %v1947
    %v2598 = vpop.f32.mrf.mxu0
    %v2599 = vadd.f32 %v2486, %v2598
    %2600 = vmatmul.f32.gmra.mxu0 %v1951
    %v2601 = vpop.f32.mrf.mxu0
    %v2602 = vadd.f32 %v2489, %v2601
    %2603 = vmatmul.f32.gmra.mxu0 %v1955
    %v2604 = vpop.f32.mrf.mxu0
    %v2605 = vadd.f32 %v2492, %v2604
    %2606 = vmatmul.f32.gmra.mxu0 %v1959
    %v2607 = vpop.f32.mrf.mxu0
    %v2608 = vadd.f32 %v2495, %v2607
    %2609 = vmatmul.f32.gmra.mxu0 %v1963
    %v2610 = vpop.f32.mrf.mxu0
    %v2611 = vadd.f32 %v2498, %v2610
    %2612 = vmatmul.f32.gmra.mxu0 %v1967
    %v2613 = vpop.f32.mrf.mxu0
    %v2614 = vadd.f32 %v2501, %v2613
    %2615 = vmatmul.f32.gmra.mxu0 %v1971
    %v2616 = vpop.f32.mrf.mxu0
    %v2617 = vadd.f32 %v2504, %v2616
    %2618 = vmatmul.f32.gmra.mxu0 %v1975
    %v2619 = vpop.f32.mrf.mxu0
    %v2620 = vadd.f32 %v2507, %v2619
    %2621 = vmatmul.f32.gmra.mxu0 %v1979
    %v2622 = vpop.f32.mrf.mxu0
    %v2623 = vadd.f32 %v2510, %v2622
    %2624 = vmatmul.f32.gmra.mxu0 %v1983
    %v2625 = vpop.f32.mrf.mxu0
    %v2626 = vadd.f32 %v2513, %v2625
    %2627 = vdwg.mxu0
    %v2628 = vmax.f32 %v2533, 0.0
    %v2629 = vmax.f32 %v2536, 0.0
    %v2630 = vmax.f32 %v2539, 0.0
    %v2631 = vmax.f32 %v2542, 0.0
    %v2632 = vmax.f32 %v2545, 0.0
    %v2633 = vmax.f32 %v2548, 0.0
    %v2634 = vmax.f32 %v2551, 0.0
    %v2635 = vmax.f32 %v2554, 0.0
    %v2636 = vmax.f32 %v2557, 0.0
    %v2637 = vmax.f32 %v2560, 0.0
    %v2638 = vmax.f32 %v2563, 0.0
    %v2639 = vmax.f32 %v2566, 0.0
    %v2640 = vmax.f32 %v2569, 0.0
    %v2641 = vmax.f32 %v2572, 0.0
    %v2642 = vmax.f32 %v2575, 0.0
    %v2643 = vmax.f32 %v2578, 0.0
    %v2644 = vmax.f32 %v2581, 0.0
    %v2645 = vmax.f32 %v2584, 0.0
    %v2646 = vmax.f32 %v2587, 0.0
    %v2647 = vmax.f32 %v2590, 0.0
    %v2648 = vmax.f32 %v2593, 0.0
    %v2649 = vmax.f32 %v2596, 0.0
    %v2650 = vmax.f32 %v2599, 0.0
    %v2651 = vmax.f32 %v2602, 0.0
    %v2652 = vmax.f32 %v2605, 0.0
    %v2653 = vmax.f32 %v2608, 0.0
    %v2654 = vmax.f32 %v2611, 0.0
    %v2655 = vmax.f32 %v2614, 0.0
    %v2656 = vmax.f32 %v2617, 0.0
    %v2657 = vmax.f32 %v2620, 0.0
    %v2658 = vmax.f32 %v2623, 0.0
    %v2659 = vmax.f32 %v2626, 0.0
    %v2660 = vld [vmem:[%s11] sm:$0xff]
    %v2661 = vld [vmem:[%s11 + $0x8] sm:$0xff]
    %v2662 = vld [vmem:[%s11 + $0x10] sm:$0xff]
    %v2663 = vld [vmem:[%s11 + $0x18] sm:$0xff]
    %v2664 = vld [vmem:[%s11 + $0x20] sm:$0xff]
    %v2665 = vld [vmem:[%s11 + $0x28] sm:$0xff]
    %v2666 = vld [vmem:[%s11 + $0x30] sm:$0xff]
    %v2667 = vld [vmem:[%s11 + $0x38] sm:$0xff]
    %v2668 = vld [vmem:[%s11 + $0x40] sm:$0xff]
    %v2669 = vld [vmem:[%s11 + $0x48] sm:$0xff]
    %v2670 = vld [vmem:[%s11 + $0x50] sm:$0xff]
    %v2671 = vld [vmem:[%s11 + $0x58] sm:$0xff]
    %v2672 = vld [vmem:[%s11 + $0x60] sm:$0xff]
    %v2673 = vld [vmem:[%s11 + $0x68] sm:$0xff]
    %v2674 = vld [vmem:[%s11 + $0x70] sm:$0xff]
    %v2675 = vld [vmem:[%s11 + $0x78] sm:$0xff]
    %v2676 = vld [vmem:[%s11 + $0x80] sm:$0xff]
    %v2677 = vld [vmem:[%s11 + $0x88] sm:$0xff]
    %v2678 = vld [vmem:[%s11 + $0x90] sm:$0xff]
    %v2679 = vld [vmem:[%s11 + $0x98] sm:$0xff]
    %v2680 = vld [vmem:[%s11 + $0xa0] sm:$0xff]
    %v2681 = vld [vmem:[%s11 + $0xa8] sm:$0xff]
    %v2682 = vld [vmem:[%s11 + $0xb0] sm:$0xff]
    %v2683 = vld [vmem:[%s11 + $0xb8] sm:$0xff]
    %v2684 = vld [vmem:[%s11 + $0xc0] sm:$0xff]
    %v2685 = vld [vmem:[%s11 + $0xc8] sm:$0xff]
    %v2686 = vld [vmem:[%s11 + $0xd0] sm:$0xff]
    %v2687 = vld [vmem:[%s11 + $0xd8] sm:$0xff]
    %v2688 = vld [vmem:[%s11 + $0xe0] sm:$0xff]
    %v2689 = vld [vmem:[%s11 + $0xe8] sm:$0xff]
    %v2690 = vld [vmem:[%s11 + $0xf0] sm:$0xff]
    %v2691 = vld [vmem:[%s11 + $0xf8] sm:$0xff]
    %v2692 = vld [vmem:[%s12] sm:$0xff]
    %v2693 = vld [vmem:[%s12 + $0x8] sm:$0xff]
    %v2694 = vld [vmem:[%s12 + $0x10] sm:$0xff]
    %v2695 = vld [vmem:[%s12 + $0x18] sm:$0xff]
    %v2696 = vld [vmem:[%s12 + $0x20] sm:$0xff]
    %v2697 = vld [vmem:[%s12 + $0x28] sm:$0xff]
    %v2698 = vld [vmem:[%s12 + $0x30] sm:$0xff]
    %v2699 = vld [vmem:[%s12 + $0x38] sm:$0xff]
    %v2700 = vld [vmem:[%s12 + $0x40] sm:$0xff]
    %v2701 = vld [vmem:[%s12 + $0x48] sm:$0xff]
    %v2702 = vld [vmem:[%s12 + $0x50] sm:$0xff]
    %v2703 = vld [vmem:[%s12 + $0x58] sm:$0xff]
    %v2704 = vld [vmem:[%s12 + $0x60] sm:$0xff]
    %v2705 = vld [vmem:[%s12 + $0x68] sm:$0xff]
    %v2706 = vld [vmem:[%s12 + $0x70] sm:$0xff]
    %v2707 = vld [vmem:[%s12 + $0x78] sm:$0xff]
    %2709 = vset.pattern.permute.xlu0 0
    %2710 = vperm.xlu0 %2709, %v2692
    %v2711 = vpop.permute.xlu0 %2710
    %2714 = vset.pattern.permute.xlu0 0
    %2715 = vperm.xlu0 %2714, %v2693
    %v2716 = vpop.permute.xlu0 %2715
    %2719 = vset.pattern.permute.xlu0 0
    %2720 = vperm.xlu0 %2719, %v2694
    %v2721 = vpop.permute.xlu0 %2720
    %2724 = vset.pattern.permute.xlu0 0
    %2725 = vperm.xlu0 %2724, %v2695
    %v2726 = vpop.permute.xlu0 %2725
    %2729 = vset.pattern.permute.xlu0 0
    %2730 = vperm.xlu0 %2729, %v2696
    %v2731 = vpop.permute.xlu0 %2730
    %2734 = vset.pattern.permute.xlu0 0
    %2735 = vperm.xlu0 %2734, %v2697
    %v2736 = vpop.permute.xlu0 %2735
    %2739 = vset.pattern.permute.xlu0 0
    %2740 = vperm.xlu0 %2739, %v2698
    %v2741 = vpop.permute.xlu0 %2740
    %2744 = vset.pattern.permute.xlu0 0
    %2745 = vperm.xlu0 %2744, %v2699
    %v2746 = vpop.permute.xlu0 %2745
    %2749 = vset.pattern.permute.xlu0 0
    %2750 = vperm.xlu0 %2749, %v2700
    %v2751 = vpop.permute.xlu0 %2750
    %2754 = vset.pattern.permute.xlu0 0
    %2755 = vperm.xlu0 %2754, %v2701
    %v2756 = vpop.permute.xlu0 %2755
    %2759 = vset.pattern.permute.xlu0 0
    %2760 = vperm.xlu0 %2759, %v2702
    %v2761 = vpop.permute.xlu0 %2760
    %2764 = vset.pattern.permute.xlu0 0
    %2765 = vperm.xlu0 %2764, %v2703
    %v2766 = vpop.permute.xlu0 %2765
    %2769 = vset.pattern.permute.xlu0 0
    %2770 = vperm.xlu0 %2769, %v2704
    %v2771 = vpop.permute.xlu0 %2770
    %2774 = vset.pattern.permute.xlu0 0
    %2775 = vperm.xlu0 %2774, %v2705
    %v2776 = vpop.permute.xlu0 %2775
    %2779 = vset.pattern.permute.xlu0 0
    %2780 = vperm.xlu0 %2779, %v2706
    %v2781 = vpop.permute.xlu0 %2780
    %2784 = vset.pattern.permute.xlu0 0
    %2785 = vperm.xlu0 %2784, %v2707
    %v2786 = vpop.permute.xlu0 %2785
    %2788 = vmatpush.msra.mxu0 %v2643
    %2789 = vmatpush.msra.mxu0 %v2642
    %2790 = vmatpush.msra.mxu0 %v2641
    %2791 = vmatpush.msra.mxu0 %v2640
    %2792 = vmatpush.msra.mxu0 %v2639
    %2793 = vmatpush.msra.mxu0 %v2638
    %2794 = vmatpush.msra.mxu0 %v2637
    %2795 = vmatpush.msra.mxu0 %v2636
    %2796 = vmatpush.msra.mxu0 %v2635
    %2797 = vmatpush.msra.mxu0 %v2634
    %2798 = vmatpush.msra.mxu0 %v2633
    %2799 = vmatpush.msra.mxu0 %v2632
    %2800 = vmatpush.msra.mxu0 %v2631
    %2801 = vmatpush.msra.mxu0 %v2630
    %2802 = vmatpush.msra.mxu0 %v2629
    %2803 = vmatpush.msra.mxu0 %v2628
    %2804 = vmatmul.f32.gmra.mxu0 %v2660
    %v2805 = vpop.f32.mrf.mxu0
    %v2806 = vadd.f32 %v2711, %v2805
    %2807 = vmatmul.f32.gmra.mxu0 %v2662
    %v2808 = vpop.f32.mrf.mxu0
    %v2809 = vadd.f32 %v2716, %v2808
    %2810 = vmatmul.f32.gmra.mxu0 %v2664
    %v2811 = vpop.f32.mrf.mxu0
    %v2812 = vadd.f32 %v2721, %v2811
    %2813 = vmatmul.f32.gmra.mxu0 %v2666
    %v2814 = vpop.f32.mrf.mxu0
    %v2815 = vadd.f32 %v2726, %v2814
    %2816 = vmatmul.f32.gmra.mxu0 %v2668
    %v2817 = vpop.f32.mrf.mxu0
    %v2818 = vadd.f32 %v2731, %v2817
    %2819 = vmatmul.f32.gmra.mxu0 %v2670
    %v2820 = vpop.f32.mrf.mxu0
    %v2821 = vadd.f32 %v2736, %v2820
    %2822 = vmatmul.f32.gmra.mxu0 %v2672
    %v2823 = vpop.f32.mrf.mxu0
    %v2824 = vadd.f32 %v2741, %v2823
    %2825 = vmatmul.f32.gmra.mxu0 %v2674
    %v2826 = vpop.f32.mrf.mxu0
    %v2827 = vadd.f32 %v2746, %v2826
    %2828 = vmatmul.f32.gmra.mxu0 %v2676
    %v2829 = vpop.f32.mrf.mxu0
    %v2830 = vadd.f32 %v2751, %v2829
    %2831 = vmatmul.f32.gmra.mxu0 %v2678
    %v2832 = vpop.f32.mrf.mxu0
    %v2833 = vadd.f32 %v2756, %v2832
    %2834 = vmatmul.f32.gmra.mxu0 %v2680
    %v2835 = vpop.f32.mrf.mxu0
    %v2836 = vadd.f32 %v2761, %v2835
    %2837 = vmatmul.f32.gmra.mxu0 %v2682
    %v2838 = vpop.f32.mrf.mxu0
    %v2839 = vadd.f32 %v2766, %v2838
    %2840 = vmatmul.f32.gmra.mxu0 %v2684
    %v2841 = vpop.f32.mrf.mxu0
    %v2842 = vadd.f32 %v2771, %v2841
    %2843 = vmatmul.f32.gmra.mxu0 %v2686
    %v2844 = vpop.f32.mrf.mxu0
    %v2845 = vadd.f32 %v2776, %v2844
    %2846 = vmatmul.f32.gmra.mxu0 %v2688
    %v2847 = vpop.f32.mrf.mxu0
    %v2848 = vadd.f32 %v2781, %v2847
    %2849 = vmatmul.f32.gmra.mxu0 %v2690
    %v2850 = vpop.f32.mrf.mxu0
    %v2851 = vadd.f32 %v2786, %v2850
    %2852 = vdwg.mxu0
    %2853 = vmatpush.msra.mxu0 %v2659
    %2854 = vmatpush.msra.mxu0 %v2658
    %2855 = vmatpush.msra.mxu0 %v2657
    %2856 = vmatpush.msra.mxu0 %v2656
    %2857 = vmatpush.msra.mxu0 %v2655
    %2858 = vmatpush.msra.mxu0 %v2654
    %2859 = vmatpush.msra.mxu0 %v2653
    %2860 = vmatpush.msra.mxu0 %v2652
    %2861 = vmatpush.msra.mxu0 %v2651
    %2862 = vmatpush.msra.mxu0 %v2650
    %2863 = vmatpush.msra.mxu0 %v2649
    %2864 = vmatpush.msra.mxu0 %v2648
    %2865 = vmatpush.msra.mxu0 %v2647
    %2866 = vmatpush.msra.mxu0 %v2646
    %2867 = vmatpush.msra.mxu0 %v2645
    %2868 = vmatpush.msra.mxu0 %v2644
    %2869 = vmatmul.f32.gmra.mxu0 %v2661
    %v2870 = vpop.f32.mrf.mxu0
    %v2871 = vadd.f32 %v2806, %v2870
    %2872 = vmatmul.f32.gmra.mxu0 %v2663
    %v2873 = vpop.f32.mrf.mxu0
    %v2874 = vadd.f32 %v2809, %v2873
    %2875 = vmatmul.f32.gmra.mxu0 %v2665
    %v2876 = vpop.f32.mrf.mxu0
    %v2877 = vadd.f32 %v2812, %v2876
    %2878 = vmatmul.f32.gmra.mxu0 %v2667
    %v2879 = vpop.f32.mrf.mxu0
    %v2880 = vadd.f32 %v2815, %v2879
    %2881 = vmatmul.f32.gmra.mxu0 %v2669
    %v2882 = vpop.f32.mrf.mxu0
    %v2883 = vadd.f32 %v2818, %v2882
    %2884 = vmatmul.f32.gmra.mxu0 %v2671
    %v2885 = vpop.f32.mrf.mxu0
    %v2886 = vadd.f32 %v2821, %v2885
    %2887 = vmatmul.f32.gmra.mxu0 %v2673
    %v2888 = vpop.f32.mrf.mxu0
    %v2889 = vadd.f32 %v2824, %v2888
    %2890 = vmatmul.f32.gmra.mxu0 %v2675
    %v2891 = vpop.f32.mrf.mxu0
    %v2892 = vadd.f32 %v2827, %v2891
    %2893 = vmatmul.f32.gmra.mxu0 %v2677
    %v2894 = vpop.f32.mrf.mxu0
    %v2895 = vadd.f32 %v2830, %v2894
    %2896 = vmatmul.f32.gmra.mxu0 %v2679
    %v2897 = vpop.f32.mrf.mxu0
    %v2898 = vadd.f32 %v2833, %v2897
    %2899 = vmatmul.f32.gmra.mxu0 %v2681
    %v2900 = vpop.f32.mrf.mxu0
    %v2901 = vadd.f32 %v2836, %v2900
    %2902 = vmatmul.f32.gmra.mxu0 %v2683
    %v2903 = vpop.f32.mrf.mxu0
    %v2904 = vadd.f32 %v2839, %v2903
    %2905 = vmatmul.f32.gmra.mxu0 %v2685
    %v2906 = vpop.f32.mrf.mxu0
    %v2907 = vadd.f32 %v2842, %v2906
    %2908 = vmatmul.f32.gmra.mxu0 %v2687
    %v2909 = vpop.f32.mrf.mxu0
    %v2910 = vadd.f32 %v2845, %v2909
    %2911 = vmatmul.f32.gmra.mxu0 %v2689
    %v2912 = vpop.f32.mrf.mxu0
    %v2913 = vadd.f32 %v2848, %v2912
    %2914 = vmatmul.f32.gmra.mxu0 %v2691
    %v2915 = vpop.f32.mrf.mxu0
    %v2916 = vadd.f32 %v2851, %v2915
    %2917 = vdwg.mxu0
    %v2918 = vmax.f32 %v2871, 0.0
    %v2919 = vmax.f32 %v2874, 0.0
    %v2920 = vmax.f32 %v2877, 0.0
    %v2921 = vmax.f32 %v2880, 0.0
    %v2922 = vmax.f32 %v2883, 0.0
    %v2923 = vmax.f32 %v2886, 0.0
    %v2924 = vmax.f32 %v2889, 0.0
    %v2925 = vmax.f32 %v2892, 0.0
    %v2926 = vmax.f32 %v2895, 0.0
    %v2927 = vmax.f32 %v2898, 0.0
    %v2928 = vmax.f32 %v2901, 0.0
    %v2929 = vmax.f32 %v2904, 0.0
    %v2930 = vmax.f32 %v2907, 0.0
    %v2931 = vmax.f32 %v2910, 0.0
    %v2932 = vmax.f32 %v2913, 0.0
    %v2933 = vmax.f32 %v2916, 0.0
    %v2934 = vld [vmem:[%s13] sm:$0xff]
    %v2935 = vld [vmem:[%s13 + $0x8] sm:$0xff]
    %v2936 = vld [vmem:[%s13 + $0x10] sm:$0xff]
    %v2937 = vld [vmem:[%s13 + $0x18] sm:$0xff]
    %v2938 = vld [vmem:[%s13 + $0x20] sm:$0xff]
    %v2939 = vld [vmem:[%s13 + $0x28] sm:$0xff]
    %v2940 = vld [vmem:[%s13 + $0x30] sm:$0xff]
    %v2941 = vld [vmem:[%s13 + $0x38] sm:$0xff]
    %v2942 = vld [vmem:[%s14] sm:$0xff]
    %v2943 = vld [vmem:[%s14 + $0x8] sm:$0xff]
    %v2944 = vld [vmem:[%s14 + $0x10] sm:$0xff]
    %v2945 = vld [vmem:[%s14 + $0x18] sm:$0xff]
    %v2946 = vld [vmem:[%s14 + $0x20] sm:$0xff]
    %v2947 = vld [vmem:[%s14 + $0x28] sm:$0xff]
    %v2948 = vld [vmem:[%s14 + $0x30] sm:$0xff]
    %v2949 = vld [vmem:[%s14 + $0x38] sm:$0xff]
    %2951 = vset.pattern.permute.xlu0 0
    %2952 = vperm.xlu0 %2951, %v2942
    %v2953 = vpop.permute.xlu0 %2952
    %2956 = vset.pattern.permute.xlu0 0
    %2957 = vperm.xlu0 %2956, %v2943
    %v2958 = vpop.permute.xlu0 %2957
    %2961 = vset.pattern.permute.xlu0 0
    %2962 = vperm.xlu0 %2961, %v2944
    %v2963 = vpop.permute.xlu0 %2962
    %2966 = vset.pattern.permute.xlu0 0
    %2967 = vperm.xlu0 %2966, %v2945
    %v2968 = vpop.permute.xlu0 %2967
    %2971 = vset.pattern.permute.xlu0 0
    %2972 = vperm.xlu0 %2971, %v2946
    %v2973 = vpop.permute.xlu0 %2972
    %2976 = vset.pattern.permute.xlu0 0
    %2977 = vperm.xlu0 %2976, %v2947
    %v2978 = vpop.permute.xlu0 %2977
    %2981 = vset.pattern.permute.xlu0 0
    %2982 = vperm.xlu0 %2981, %v2948
    %v2983 = vpop.permute.xlu0 %2982
    %2986 = vset.pattern.permute.xlu0 0
    %2987 = vperm.xlu0 %2986, %v2949
    %v2988 = vpop.permute.xlu0 %2987
    %2990 = vmatpush.msra.mxu0 %v2933
    %2991 = vmatpush.msra.mxu0 %v2932
    %2992 = vmatpush.msra.mxu0 %v2931
    %2993 = vmatpush.msra.mxu0 %v2930
    %2994 = vmatpush.msra.mxu0 %v2929
    %2995 = vmatpush.msra.mxu0 %v2928
    %2996 = vmatpush.msra.mxu0 %v2927
    %2997 = vmatpush.msra.mxu0 %v2926
    %2998 = vmatpush.msra.mxu0 %v2925
    %2999 = vmatpush.msra.mxu0 %v2924
    %3000 = vmatpush.msra.mxu0 %v2923
    %3001 = vmatpush.msra.mxu0 %v2922
    %3002 = vmatpush.msra.mxu0 %v2921
    %3003 = vmatpush.msra.mxu0 %v2920
    %3004 = vmatpush.msra.mxu0 %v2919
    %3005 = vmatpush.msra.mxu0 %v2918
    %3006 = vmatmul.f32.gmra.mxu0 %v2934
    %v3007 = vpop.f32.mrf.mxu0
    %v3008 = vadd.f32 %v2953, %v3007
    %3009 = vmatmul.f32.gmra.mxu0 %v2935
    %v3010 = vpop.f32.mrf.mxu0
    %v3011 = vadd.f32 %v2958, %v3010
    %3012 = vmatmul.f32.gmra.mxu0 %v2936
    %v3013 = vpop.f32.mrf.mxu0
    %v3014 = vadd.f32 %v2963, %v3013
    %3015 = vmatmul.f32.gmra.mxu0 %v2937
    %v3016 = vpop.f32.mrf.mxu0
    %v3017 = vadd.f32 %v2968, %v3016
    %3018 = vmatmul.f32.gmra.mxu0 %v2938
    %v3019 = vpop.f32.mrf.mxu0
    %v3020 = vadd.f32 %v2973, %v3019
    %3021 = vmatmul.f32.gmra.mxu0 %v2939
    %v3022 = vpop.f32.mrf.mxu0
    %v3023 = vadd.f32 %v2978, %v3022
    %3024 = vmatmul.f32.gmra.mxu0 %v2940
    %v3025 = vpop.f32.mrf.mxu0
    %v3026 = vadd.f32 %v2983, %v3025
    %3027 = vmatmul.f32.gmra.mxu0 %v2941
    %v3028 = vpop.f32.mrf.mxu0
    %v3029 = vadd.f32 %v2988, %v3028
    %3030 = vdwg.mxu0
    %v3031 = vmax.f32 %v3008, 0.0
    %v3032 = vmax.f32 %v3011, 0.0
    %v3033 = vmax.f32 %v3014, 0.0
    %v3034 = vmax.f32 %v3017, 0.0
    %v3035 = vmax.f32 %v3020, 0.0
    %v3036 = vmax.f32 %v3023, 0.0
    %v3037 = vmax.f32 %v3026, 0.0
    %v3038 = vmax.f32 %v3029, 0.0
    %v3039 = vld [vmem:[%s15] sm:$0xff]
    %v3040 = vld [vmem:[%s15 + $0x8] sm:$0xff]
    %v3041 = vld [vmem:[%s15 + $0x10] sm:$0xff]
    %v3042 = vld [vmem:[%s15 + $0x18] sm:$0xff]
    %v3043 = vld [vmem:[%s16] sm:$0xff]
    %v3044 = vld [vmem:[%s16 + $0x8] sm:$0xff]
    %v3045 = vld [vmem:[%s16 + $0x10] sm:$0xff]
    %v3046 = vld [vmem:[%s16 + $0x18] sm:$0xff]
    %3048 = vset.pattern.permute.xlu0 0
    %3049 = vperm.xlu0 %3048, %v3043
    %v3050 = vpop.permute.xlu0 %3049
    %3053 = vset.pattern.permute.xlu0 0
    %3054 = vperm.xlu0 %3053, %v3044
    %v3055 = vpop.permute.xlu0 %3054
    %3058 = vset.pattern.permute.xlu0 0
    %3059 = vperm.xlu0 %3058, %v3045
    %v3060 = vpop.permute.xlu0 %3059
    %3063 = vset.pattern.permute.xlu0 0
    %3064 = vperm.xlu0 %3063, %v3046
    %v3065 = vpop.permute.xlu0 %3064
    %v3068 = vsel %vm363, %v3039, 0
    %v3071 = vsel %vm363, %v3040, 0
    %v3074 = vsel %vm363, %v3041, 0
    %v3077 = vsel %vm363, %v3042, 0
    %3079 = vmatpush.msra.mxu0 0.0
    %3080 = vmatpush.msra.mxu0 0.0
    %3081 = vmatpush.msra.mxu0 0.0
    %3082 = vmatpush.msra.mxu0 0.0
    %3083 = vmatpush.msra.mxu0 0.0
    %3084 = vmatpush.msra.mxu0 0.0
    %3085 = vmatpush.msra.mxu0 0.0
    %3086 = vmatpush.msra.mxu0 0.0
    %3087 = vmatpush.msra.mxu0 %v3038
    %3088 = vmatpush.msra.mxu0 %v3037
    %3089 = vmatpush.msra.mxu0 %v3036
    %3090 = vmatpush.msra.mxu0 %v3035
    %3091 = vmatpush.msra.mxu0 %v3034
    %3092 = vmatpush.msra.mxu0 %v3033
    %3093 = vmatpush.msra.mxu0 %v3032
    %3094 = vmatpush.msra.mxu0 %v3031
    %3095 = vmatmul.f32.gmra.mxu0 %v3068
    %v3096 = vpop.f32.mrf.mxu0
    %v3097 = vadd.f32 %v3050, %v3096
    %3098 = vmatmul.f32.gmra.mxu0 %v3071
    %v3099 = vpop.f32.mrf.mxu0
    %v3100 = vadd.f32 %v3055, %v3099
    %3101 = vmatmul.f32.gmra.mxu0 %v3074
    %v3102 = vpop.f32.mrf.mxu0
    %v3103 = vadd.f32 %v3060, %v3102
    %3104 = vmatmul.f32.gmra.mxu0 %v3077
    %v3105 = vpop.f32.mrf.mxu0
    %v3106 = vadd.f32 %v3065, %v3105
    %3107 = vdwg.mxu0
    %v3108 = vmax.f32 %v3097, 0.0
    %v3109 = vmax.f32 %v3100, 0.0
    %v3110 = vmax.f32 %v3103, 0.0
    %v3111 = vmax.f32 %v3106, 0.0
    %v3112 = vld [vmem:[%s17] sm:$0xff]
    %v3113 = vld [vmem:[%s17 + $0x8] sm:$0xff]
    %v3114 = vld [vmem:[%s18] sm:$0xff]
    %v3115 = vld [vmem:[%s18 + $0x8] sm:$0xff]
    %3117 = vset.pattern.permute.xlu0 0
    %3118 = vperm.xlu0 %3117, %v3114
    %v3119 = vpop.permute.xlu0 %3118
    %3122 = vset.pattern.permute.xlu0 0
    %3123 = vperm.xlu0 %3122, %v3115
    %v3124 = vpop.permute.xlu0 %3123
    %vm3126 = vcmask 261120
    %v3128 = vsel %vm3126, %v3112, 0
    %v3131 = vsel %vm3126, %v3113, 0
    %3133 = vmatpush.msra.mxu0 0.0
    %3134 = vmatpush.msra.mxu0 0.0
    %3135 = vmatpush.msra.mxu0 0.0
    %3136 = vmatpush.msra.mxu0 0.0
    %3137 = vmatpush.msra.mxu0 0.0
    %3138 = vmatpush.msra.mxu0 0.0
    %3139 = vmatpush.msra.mxu0 0.0
    %3140 = vmatpush.msra.mxu0 0.0
    %3141 = vmatpush.msra.mxu0 0.0
    %3142 = vmatpush.msra.mxu0 0.0
    %3143 = vmatpush.msra.mxu0 0.0
    %3144 = vmatpush.msra.mxu0 0.0
    %3145 = vmatpush.msra.mxu0 %v3111
    %3146 = vmatpush.msra.mxu0 %v3110
    %3147 = vmatpush.msra.mxu0 %v3109
    %3148 = vmatpush.msra.mxu0 %v3108
    %3149 = vmatmul.f32.gmra.mxu0 %v3128
    %v3150 = vpop.f32.mrf.mxu0
    %v3151 = vadd.f32 %v3119, %v3150
    %3152 = vmatmul.f32.gmra.mxu0 %v3131
    %v3153 = vpop.f32.mrf.mxu0
    %v3154 = vadd.f32 %v3124, %v3153
    %3155 = vdwg.mxu0
    %v3156 = vmax.f32 %v3151, 0.0
    %v3157 = vmax.f32 %v3154, 0.0
    %v3158 = vld [vmem:[%s19] sm:$0xff]
    %v3159 = vld [vmem:[%s20] sm:$0xff]
    %3161 = vset.pattern.permute.xlu0 0
    %3162 = vperm.xlu0 %3161, %v3159
    %v3163 = vpop.permute.xlu0 %3162
    %vm3165 = vcmask 130048
    %v3167 = vsel %vm3165, %v3158, 0
    %3169 = vmatpush.msra.mxu0 0.0
    %3170 = vmatpush.msra.mxu0 0.0
    %3171 = vmatpush.msra.mxu0 0.0
    %3172 = vmatpush.msra.mxu0 0.0
    %3173 = vmatpush.msra.mxu0 0.0
    %3174 = vmatpush.msra.mxu0 0.0
    %3175 = vmatpush.msra.mxu0 0.0
    %3176 = vmatpush.msra.mxu0 0.0
    %3177 = vmatpush.msra.mxu0 0.0
    %3178 = vmatpush.msra.mxu0 0.0
    %3179 = vmatpush.msra.mxu0 0.0
    %3180 = vmatpush.msra.mxu0 0.0
    %3181 = vmatpush.msra.mxu0 0.0
    %3182 = vmatpush.msra.mxu0 0.0
    %3183 = vmatpush.msra.mxu0 %v3157
    %3184 = vmatpush.msra.mxu0 %v3156
    %3185 = vmatmul.f32.gmra.mxu0 %v3167
    %v3186 = vpop.f32.mrf.mxu0
    %v3187 = vadd.f32 %v3163, %v3186
    %3188 = vdwg.mxu0
    %v3189 = vmax.f32 %v3187, 0.0
    %v3190 = vld [vmem:[%s21] sm:$0xf]
    %v3191 = vld [vmem:[%s22] sm:$0xf]
    %3193 = vset.pattern.permute.xlu0 0
    %3194 = vperm.xlu0 %3193, %v3191
    %v3195 = vpop.permute.xlu0 %3194
    %vm3197 = vcmask 64512
    %v3199 = vsel %vm3197, %v3190, 0
    %3201 = vmatpush.msra.mxu0 0.0
    %3202 = vmatpush.msra.mxu0 0.0
    %3203 = vmatpush.msra.mxu0 0.0
    %3204 = vmatpush.msra.mxu0 0.0
    %3205 = vmatpush.msra.mxu0 0.0
    %3206 = vmatpush.msra.mxu0 0.0
    %3207 = vmatpush.msra.mxu0 0.0
    %3208 = vmatpush.msra.mxu0 0.0
    %3209 = vmatpush.msra.mxu0 0.0
    %3210 = vmatpush.msra.mxu0 0.0
    %3211 = vmatpush.msra.mxu0 0.0
    %3212 = vmatpush.msra.mxu0 0.0
    %3213 = vmatpush.msra.mxu0 0.0
    %3214 = vmatpush.msra.mxu0 0.0
    %3215 = vmatpush.msra.mxu0 0.0
    %3216 = vmatpush.msra.mxu0 %v3189
    %3217 = vmatmul.f32.gmra.mxu0 %v3199
    %v3218 = vpop.f32.mrf.mxu0
    %v3219 = vadd.f32 %v3195, %v3218
    %3220 = vdwg.mxu0
    %v3221 = vmax.f32 %v3219, 0.0
    %v3222 = vld [vmem:[%s23] sm:$0x1]
    %v3223 = vld [vmem:[#allocation2] sm:$0x1]
    %3225 = vset.pattern.permute.xlu0 0
    %3226 = vperm.xlu0 %3225, %v3223
    %v3227 = vpop.permute.xlu0 %3226
    %v3229 = vperm.slane %v3227, 0
    %vm3230 = vcmask 31744
    %v3232 = vsel %vm3230, %v3222, 0
    %vm3234 = vcmask 1043456
    %v3236 = vsel %vm3234, %v3221, 0
    %3238 = vmatpush.msra.mxu0 0.0
    %3239 = vmatpush.msra.mxu0 0.0
    %3240 = vmatpush.msra.mxu0 0.0
    %3241 = vmatpush.msra.mxu0 0.0
    %3242 = vmatpush.msra.mxu0 0.0
    %3243 = vmatpush.msra.mxu0 0.0
    %3244 = vmatpush.msra.mxu0 0.0
    %3245 = vmatpush.msra.mxu0 0.0
    %3246 = vmatpush.msra.mxu0 0.0
    %3247 = vmatpush.msra.mxu0 0.0
    %3248 = vmatpush.msra.mxu0 0.0
    %3249 = vmatpush.msra.mxu0 0.0
    %3250 = vmatpush.msra.mxu0 0.0
    %3251 = vmatpush.msra.mxu0 0.0
    %3252 = vmatpush.msra.mxu0 0.0
    %3253 = vmatpush.msra.mxu0 %v3236
    %3254 = vmatmul.f32.gmra.mxu0 %v3232
    %v3255 = vpop.f32.mrf.mxu0
    %v3256 = vadd.f32 %v3229, %v3255
    %3257 = vdwg.mxu0
    %v3258 = vsub.f32 0.0, %v3256
    %v3259 = vmul.f32 %v3258, 1.442695
    %v3260 = vpow.pop %v3259
    %v3261 = vadd.f32 %v3260, 1.0
    %v3262 = vrcp.pop %v3261
    %v3263 = vmul.f32 %v3261, %v3262
    %v3264 = vsub.f32 1.0, %v3263
    %v3265 = vmul.f32 %v3262, %v3264
    %v3266 = vadd.f32 %v3262, %v3265
    %vm3267 = vweird.f32 %v3261
    %vm3268 = vweird.f32 %v3262
    %vm3269 = vmor %vm3267, %vm3268
    %v3270 = vsel %vm3269, %v3262, %v3266
    %v3271 = vand.u32 2147483647, %v3261
    %vm3272 = vcmp.eq.f32.partialorder %v3271, 8.507059e+37
    %v3273 = vand.u32 %v3261, 2147483648
    %v3274 = vor.u32 1.1754944e-38, %v3273
    %v3275 = vsel %vm3272, %v3274, %v3270
    %vm3276 = vcmask 122880
    %3277 = vst.msk [vmem:[#allocation8] sm:$0x1] %vm3276, %v3275
    // Predicated region
    $region110: #{tpu_custom_call.1} parent=1 // pred_check
      _
    $region111: #{tpu_custom_call.1} parent=1 // pred_check_branch
      %3279 = sbr.rel (0) target = $region113
    $region112: #{tpu_custom_call.1} parent=1 // pred_region
      %3281 = vsyncadd [#allocation5], 0
      %s3283 = sshll.u32 [#allocation8], 4
      %s3284 = int_to_ptr.vmem [resolvable:$true] %s3283
      %s3285 = sshll.u32 %s25, 4
      %s3286 = int_to_ptr.hbm [resolvable:$true] %s3285
      %3288 = dma.vmem_to_hbm [thread:$0]  %s3284, 16, %s3286, [#allocation5]
    $region113: #{tpu_custom_call.1} parent=1 // pred_fallthru
      _
    // Predicated region
    $region114: #{tpu_custom_call.1} parent=1 // pred_check
      _
    $region115: #{tpu_custom_call.1} parent=1 // pred_check_branch
      %3290 = sbr.rel (0) target = $region117
    $region116: #{tpu_custom_call.1} parent=1 // pred_region
      %3292 = dma.done [#allocation5], 16
    $region117: #{tpu_custom_call.1} parent=1 // pred_fallthru
      _
    %3293 = vsyncpa [#allocation4], 1
    %3294 = vsyncpa [#allocation7], 1
    %3295 = vsyncpa [#allocation5], 1

</llo_original>
